<compile_context>
chip_gen: v5e
topology: v5e:2x2
jax: 0.10.0
libtpu: 0.0.40
codegen_flags: <defaults>
</compile_context>

<pallas_src>
import functools

import jax
import jax.numpy as jnp
from jax.experimental import pallas as pl
from jax.experimental.pallas import tpu as pltpu


# ----------------------------------------------------------------------------- Pallas kernel

def _fused_matmul_kernel(*refs, group_sizes, n_extra, relu):
    """y = act( sum_g dot(sum(x in group g), W_g) + bias + sum(extras) ).

    refs = (x_0 .. x_{nx-1}, W_0 .. W_{nw-1}, bias, extra_0 .. extra_{ne-1}, out)
    """
    n_x = sum(group_sizes)
    n_w = len(group_sizes)
    x_refs = refs[:n_x]
    w_refs = refs[n_x:n_x + n_w]
    b_ref = refs[n_x + n_w]
    e_refs = refs[n_x + n_w + 1:n_x + n_w + 1 + n_extra]
    o_ref = refs[n_x + n_w + 1 + n_extra]

    acc = None
    xi = 0
    for g, w_ref in zip(group_sizes, w_refs):
        x = x_refs[xi][...]
        for j in range(1, g):            # prologue sum in VMEM (no HBM materialization)
            x = x + x_refs[xi + j][...]
        xi += g
        part = jnp.dot(x, w_ref[...], preferred_element_type=jnp.float32)
        acc = part if acc is None else acc + part
    y = acc + b_ref[...]                 # f32 bias (BN scale already folded into W)
    for e_ref in e_refs:                 # e.g. fused residual for the last layer
        y = y + e_ref[...].astype(jnp.float32)
    if relu:
        y = jnp.maximum(y, 0.0)
    o_ref[...] = y.astype(o_ref.dtype)


def _choose_tm(m):
    """Largest row tile that divides M exactly (no pad + slice round trips).

    For M >= 128, prefer >=2 tiles so both v7x TensorCores get work under the 'parallel'
    grid axis; tiles stay multiples of 8 sublanes (block == full dim is exempt)."""
    if m < 128:
        return m
    half = m // 2
    for tm in range(min(half, 512), 7, -1):
        if m % tm == 0 and tm % 8 == 0:
            return tm
    return m


def pallas_fused_matmul(x_groups, ws, bias, extras, relu):
    """act( sum_g (sum(x_groups[g]) @ ws[g]) + bias + sum(extras) ) on (M, *) bf16 slabs."""
    xs = [x for grp in x_groups for x in grp]
    group_sizes = tuple(len(grp) for grp in x_groups)
    m = xs[0].shape[0]
    n_out = ws[0].shape[1]
    tm = _choose_tm(m)

    in_specs = []
    args = []
    for x in xs:
        in_specs.append(pl.BlockSpec((tm, x.shape[1]), lambda i: (i, 0)))
        args.append(x)
    for w in ws:
        in_specs.append(pl.BlockSpec(w.shape, lambda i: (0, 0)))     # weights fully resident
        args.append(w)
    in_specs.append(pl.BlockSpec((1, n_out), lambda i: (0, 0)))
    args.append(bias)
    for e in extras:
        in_specs.append(pl.BlockSpec((tm, n_out), lambda i: (i, 0)))
        args.append(e)

    kernel = functools.partial(_fused_matmul_kernel, group_sizes=group_sizes,
                               n_extra=len(extras), relu=relu)
    return pl.pallas_call(
        kernel,
        out_shape=jax.ShapeDtypeStruct((m, n_out), jnp.bfloat16),
        grid_spec=pltpu.PrefetchScalarGridSpec(
            num_scalar_prefetch=0,
            grid=(m // tm,),
            in_specs=in_specs,
            out_specs=pl.BlockSpec((tm, n_out), lambda i: (i, 0)),
        ),
        compiler_params=pltpu.CompilerParams(
            dimension_semantics=("parallel",),
            vmem_limit_bytes=32 * 1024 * 1024,   # safe on v5e/v6e (128 MiB) and v7x (64 MiB)
        ),
    )(*args)


# ----------------------------------------------------------------------------- JAX glue helpers

def im2col3x3(x_nhwc):
    """3x3, stride 1, pad 1 patches; per-row ordering (c_in, kh, kw) matches torch weights."""
    # TODO(synk): replace with in-kernel 9-tap shifted accumulation at production sizes.
    n, h, w, c = x_nhwc.shape
    xp = jnp.pad(x_nhwc, ((0, 0), (1, 1), (1, 1), (0, 0)))
    cols = [xp[:, kh:kh + h, kw:kw + w, :] for kh in range(3) for kw in range(3)]
    p = jnp.stack(cols, axis=-1)          # (n, h, w, c, 9)
    return p.reshape(n * h * w, c * 9)


def fourier_unit_fwd(x_f32, p):
    """FourierUnit: rfft2(ortho) -> fused [Re|Im] split-K 1x1 conv + BN + ReLU -> irfft2(ortho)."""
    n, h, w, c = x_f32.shape
    ff = jnp.fft.rfftn(x_f32, s=(h, w), axes=(1, 2), norm="ortho")   # (n, h, w//2+1, c) complex
    w2 = ff.shape[2]
    m = n * h * w2
    re = jnp.real(ff).reshape(m, c).astype(jnp.bfloat16)
    im = jnp.imag(ff).reshape(m, c).astype(jnp.bfloat16)
    # split-K accumulation inside the kernel: no wrapper-side [Re; Im] concat in HBM
    y = pallas_fused_matmul([[re], [im]], [p["w_re"], p["w_im"]], p["bias"], [], relu=True)
    y = y.astype(jnp.float32).reshape(n, h, w2, 2 * c)
    comp = jax.lax.complex(y[..., :c], y[..., c:])
    return jnp.fft.irfftn(comp, s=(h, w), axes=(1, 2), norm="ortho")  # f32 (n, h, w, c)


def spectral_branch(x_g_sp, p):
    """SpectralTransform up to (x1 + fu + lfu); returns the 3 slabs for the fused head matmul."""
    n, h, w, cg = x_g_sp.shape
    m = n * h * w
    c = p["w1"].shape[1]
    x1 = pallas_fused_matmul([[x_g_sp.reshape(m, cg)]], [p["w1"]], p["b1"], [], relu=True)
    x1_sp = x1.reshape(n, h, w, c).astype(jnp.float32)

    fu = fourier_unit_fwd(x1_sp, p["fu"])

    # local Fourier unit (LFU): 2x2 spatial split -> channel concat -> FU -> spatial tile
    c4 = c // 4
    h2, w2 = h // 2, w // 2
    xs = x1_sp[..., :c4]
    xs = jnp.concatenate([xs[:, :h2], xs[:, h2:]], axis=-1)
    xs = jnp.concatenate([xs[:, :, :w2], xs[:, :, w2:]], axis=-1)
    xs = fourier_unit_fwd(xs, p["lfu"])
    xs = jnp.tile(xs, (1, 2, 2, 1))

    return [x1,
            fu.reshape(m, c).astype(jnp.bfloat16),
            xs.reshape(m, c).astype(jnp.bfloat16)]


def ffc_layer_fwd(x_flat, spatial, p, relu, residual=None):
    """FFC_BN_ACT (ratio 0.5/0.5) on the fused [local | global] slab; ONE head matmul:
       group0 = input slab @ W_head (l2l / g2l / l2g, BN scale folded),
       group1 = (x1 + fu + lfu) @ W_st2 (zero-padded left, bn_g scale folded),
       epilogue: + bias (+ residual) (+ ReLU)."""
    n, h, w = spatial
    cin = p["in_cl"] + p["in_cg"]
    x_sp = x_flat.reshape(n, h, w, cin)

    st_slabs = spectral_branch(x_sp[..., p["in_cl"]:], p["st"])
    xin = x_flat if p["k"] == 1 else im2col3x3(x_sp)
    extras = [] if residual is None else [residual]
    return pallas_fused_matmul([[xin], st_slabs], [p["w_head"], p["st"]["w2_full"]],
                               p["b_head"], extras, relu=relu)


def bottleneck_fwd(x_l_nchw, x_g_nchw, params):
    n, _, h, w = x_l_nchw.shape
    x_l = jnp.transpose(x_l_nchw, (0, 2, 3, 1))
    x_g = jnp.transpose(x_g_nchw, (0, 2, 3, 1))
    x = jnp.concatenate([x_l, x_g], axis=-1).astype(jnp.bfloat16)     # fused channels-last slab
    x_flat = x.reshape(n * h * w, -1)
    spatial = (n, h, w)

    y = ffc_layer_fwd(x_flat, spatial, params["conv1"], relu=True)
    y = ffc_layer_fwd(y, spatial, params["conv2"], relu=True)
    # conv3 has Identity activation; residual add + final ReLU fused into its epilogue.
    y = ffc_layer_fwd(y, spatial, params["conv3"], relu=True, residual=x_flat)
    # se_block = nn.Identity()

    out_cl = params["conv3"]["out_cl"]
    out = y.astype(jnp.float32).reshape(n, h, w, -1)
    out_l = jnp.transpose(out[..., :out_cl], (0, 3, 1, 2))
    out_g = jnp.transpose(out[..., out_cl:], (0, 3, 1, 2))
    return out_l, out_g


# ----------------------------------------------------------------------------- parameter setup

class KeyGen:
    def __init__(self, key):
        self._key = key

    def __call__(self):
        self._key, sub = jax.random.split(self._key)
        return sub


def conv2d_weight(kg, c_out, c_in, k):
    return (0.1 * jax.random.normal(kg(), (c_out, c_in, k, k))).astype(jnp.float32)


def w_to_2d(w):
    # torch Conv2d weight (c_out, c_in, k, k) -> (c_in*k*k, c_out), row ordering (c_in, kh, kw)
    return w.reshape(w.shape[0], -1).T


def make_bn(kg, c, eps=1e-5):
    gamma = 1.0 + 0.1 * jax.random.normal(kg(), (c,))
    beta = 0.1 * jax.random.normal(kg(), (c,))
    mean = 0.1 * jax.random.normal(kg(), (c,))
    var = 1.0 + 0.1 * jnp.abs(jax.random.normal(kg(), (c,)))
    scale = gamma / jnp.sqrt(var + eps)
    bias = beta - mean * scale
    return scale.astype(jnp.float32), bias.astype(jnp.float32)


def make_fourier_unit(kg, c):
    s, b = make_bn(kg, 2 * c)
    w2d = w_to_2d(conv2d_weight(kg, 2 * c, 2 * c, 1)) * s            # BN scale folded
    return {"w_re": w2d[:c].astype(jnp.bfloat16),                    # split-K halves (Re / Im)
            "w_im": w2d[c:].astype(jnp.bfloat16),
            "bias": b.reshape(1, 2 * c)}


def make_spectral(kg, in_c, out_c, out_cl_pad, s_g_outer):
    c = out_c // 2
    s1, b1 = make_bn(kg, c)
    w1 = (w_to_2d(conv2d_weight(kg, c, in_c, 1)) * s1).astype(jnp.bfloat16)
    fu = make_fourier_unit(kg, c)
    lfu = make_fourier_unit(kg, c)
    # conv2 weight: fold the OUTER bn_g scale, zero-pad on the left so its output lands on the
    # global half of the fused [local | global] head output.
    w2 = w_to_2d(conv2d_weight(kg, out_c, c, 1)) * s_g_outer
    w2_full = jnp.concatenate([jnp.zeros((c, out_cl_pad), jnp.float32), w2],
                              axis=1).astype(jnp.bfloat16)
    return {"w1": w1, "b1": b1.reshape(1, c), "fu": fu, "lfu": lfu, "w2_full": w2_full}


def make_ffc(kg, in_c, out_c, k):
    in_cg = in_c // 2
    in_cl = in_c - in_cg
    out_cg = out_c // 2
    out_cl = out_c - out_cg
    w_l2l = w_to_2d(conv2d_weight(kg, out_cl, in_cl, k))             # (in_cl*k*k, out_cl)
    w_g2l = w_to_2d(conv2d_weight(kg, out_cl, in_cg, k))
    w_l2g = w_to_2d(conv2d_weight(kg, out_cg, in_cl, k))
    s_l, b_l = make_bn(kg, out_cl)
    s_g, b_g = make_bn(kg, out_cg)
    st = make_spectral(kg, in_cg, out_cg, out_cl, s_g)
    # Fused head weight (BN scale folded): columns = [local out | global out]
    top = jnp.concatenate([w_l2l * s_l, w_l2g * s_g], axis=1)        # rows: local input channels
    bot = jnp.concatenate([w_g2l * s_l,
                           jnp.zeros((in_cg * k * k, out_cg), jnp.float32)], axis=1)
    w_head = jnp.concatenate([top, bot], axis=0).astype(jnp.bfloat16)
    b_head = jnp.concatenate([b_l, b_g]).reshape(1, out_cl + out_cg)
    return {"k": k, "in_cl": in_cl, "in_cg": in_cg, "out_cl": out_cl, "out_cg": out_cg,
            "w_head": w_head, "b_head": b_head, "st": st}


def make_bottleneck_params(kg, inplanes, planes, base_width=64, groups=1, expansion=4):
    width = int(planes * (base_width / 64.0)) * groups
    return {
        "conv1": make_ffc(kg, inplanes, width, 1),
        "conv2": make_ffc(kg, width, width, 3),
        "conv3": make_ffc(kg, width, planes * expansion, 1),
    }


# ----------------------------------------------------------------------------- main

if __name__ == "__main__":
    N, H, W = 2, 8, 8
    PLANES = 16
    INPLANES = PLANES * 4          # residual (no downsample) requires inplanes == planes*expansion

    root = jax.random.PRNGKey(0)
    kp, kxl, kxg = jax.random.split(root, 3)
    params = make_bottleneck_params(KeyGen(kp), INPLANES, PLANES)

    # Bottleneck input is the (local, global) tuple with the 0.5/0.5 channel split.
    x_l = jax.random.normal(kxl, (N, INPLANES // 2, H, W), jnp.float32)
    x_g = jax.random.normal(kxg, (N, INPLANES // 2, H, W), jnp.float32)

    fwd = jax.jit(lambda a, b: bottleneck_fwd(a, b, params))
    out_l, out_g = fwd(x_l, x_g)
    jax.block_until_ready((out_l, out_g))

    assert out_l.shape == (N, PLANES * 4 // 2, H, W)
    assert out_g.shape == (N, PLANES * 4 // 2, H, W)
    print("KERNEL_OK")
</pallas_src>

<mosaic_0001>
module attributes {stable_mosaic.version = 11 : i64} {
  func.func @_fused_matmul_kernel(%arg0: i32, %arg1: memref<64x32xbf16, #tpu.memory_space<vmem>>, %arg2: memref<32x4xbf16, #tpu.memory_space<vmem>>, %arg3: memref<1x4xf32, #tpu.memory_space<vmem>>, %arg4: memref<64x4xbf16, #tpu.memory_space<vmem>>) attributes {dimension_semantics = [#tpu.dimension_semantics<parallel>], iteration_bounds = array<i64: 2>, scalar_prefetch = 0 : i64, scratch_operands = 0 : i64, tpu.core_type = #tpu.core_type<tc>, window_params = [{transform_indices = @transform_0, window_bounds = array<i64: 64, 32>}, {pipeline_mode = #tpu.pipeline_mode<synchronous>, transform_indices = @transform_1, window_bounds = array<i64: 32, 4>}, {pipeline_mode = #tpu.pipeline_mode<synchronous>, transform_indices = @transform_2, window_bounds = array<i64: 1, 4>}, {transform_indices = @transform_3, window_bounds = array<i64: 64, 4>}]} {
    %c0 = arith.constant 0 : index
    %c0_0 = arith.constant 0 : index
    %0 = vector.load %arg1[%c0, %c0_0] : memref<64x32xbf16, #tpu.memory_space<vmem>>, vector<64x32xbf16>
    %c0_1 = arith.constant 0 : index
    %c0_2 = arith.constant 0 : index
    %1 = vector.load %arg2[%c0_1, %c0_2] : memref<32x4xbf16, #tpu.memory_space<vmem>>, vector<32x4xbf16>
    %cst = arith.constant dense<0.000000e+00> : vector<64x4xf32>
    %2 = tpu.matmul %0, %1, %cst {dimension_numbers = #tpu.dot_dimension_numbers<[1], [0], [0], [1], [0, 0, 1, 1], [], []>} : vector<64x32xbf16>, vector<32x4xbf16>, vector<64x4xf32> -> vector<64x4xf32>
    %c0_3 = arith.constant 0 : index
    %c0_4 = arith.constant 0 : index
    %3 = vector.load %arg3[%c0_3, %c0_4] : memref<1x4xf32, #tpu.memory_space<vmem>>, vector<1x4xf32>
    %4 = vector.broadcast %3 : vector<1x4xf32> to vector<64x4xf32>
    %5 = arith.addf %2, %4 : vector<64x4xf32>
    %cst_5 = arith.constant 0.000000e+00 : f32
    %6 = vector.broadcast %cst_5 : f32 to vector<64x4xf32>
    %7 = arith.maximumf %5, %6 : vector<64x4xf32>
    %8 = arith.truncf %7 : vector<64x4xf32> to vector<64x4xbf16>
    %c0_6 = arith.constant 0 : index
    %c0_7 = arith.constant 0 : index
    %9 = vector.load %arg4[%c0_6, %c0_7] : memref<64x4xbf16, #tpu.memory_space<vmem>>, vector<64x4xbf16>
    tpu.vector_store %arg4[%c0_6, %c0_7], %8 {strides = array<i32>} : memref<64x4xbf16, #tpu.memory_space<vmem>>, vector<64x4xbf16>,
    return
  }
  func.func @transform_0(%arg0: i32) -> (i32, i32) {
    %c0_i32 = arith.constant 0 : i32
    %c0_i32_0 = arith.constant 0 : i32
    return %arg0, %c0_i32 : i32, i32
  }
  func.func @transform_1(%arg0: i32) -> (i32, i32) {
    %c0_i32 = arith.constant 0 : i32
    %c0_i32_0 = arith.constant 0 : i32
    %c0_i32_1 = arith.constant 0 : i32
    return %c0_i32, %c0_i32_0 : i32, i32
  }
  func.func @transform_2(%arg0: i32) -> (i32, i32) {
    %c0_i32 = arith.constant 0 : i32
    %c0_i32_0 = arith.constant 0 : i32
    %c0_i32_1 = arith.constant 0 : i32
    return %c0_i32, %c0_i32_0 : i32, i32
  }
  func.func @transform_3(%arg0: i32) -> (i32, i32) {
    %c0_i32 = arith.constant 0 : i32
    %c0_i32_0 = arith.constant 0 : i32
    return %arg0, %c0_i32 : i32, i32
  }
}

module attributes {stable_mosaic.version = 11 : i64} {
  func.func @_fused_matmul_kernel(%arg0: i32, %arg1: memref<80x4xbf16, #tpu.memory_space<vmem>>, %arg2: memref<80x4xbf16, #tpu.memory_space<vmem>>, %arg3: memref<4x8xbf16, #tpu.memory_space<vmem>>, %arg4: memref<4x8xbf16, #tpu.memory_space<vmem>>, %arg5: memref<1x8xf32, #tpu.memory_space<vmem>>, %arg6: memref<80x8xbf16, #tpu.memory_space<vmem>>) attributes {dimension_semantics = [#tpu.dimension_semantics<parallel>], iteration_bounds = array<i64: 1>, scalar_prefetch = 0 : i64, scratch_operands = 0 : i64, tpu.core_type = #tpu.core_type<tc>, window_params = [{transform_indices = @transform_0, window_bounds = array<i64: 80, 4>}, {transform_indices = @transform_1, window_bounds = array<i64: 80, 4>}, {pipeline_mode = #tpu.pipeline_mode<synchronous>, transform_indices = @transform_2, window_bounds = array<i64: 4, 8>}, {pipeline_mode = #tpu.pipeline_mode<synchronous>, transform_indices = @transform_3, window_bounds = array<i64: 4, 8>}, {pipeline_mode = #tpu.pipeline_mode<synchronous>, transform_indices = @transform_4, window_bounds = array<i64: 1, 8>}, {transform_indices = @transform_5, window_bounds = array<i64: 80, 8>}]} {
    %c0 = arith.constant 0 : index
    %c0_0 = arith.constant 0 : index
    %0 = vector.load %arg1[%c0, %c0_0] : memref<80x4xbf16, #tpu.memory_space<vmem>>, vector<80x4xbf16>
    %c0_1 = arith.constant 0 : index
    %c0_2 = arith.constant 0 : index
    %1 = vector.load %arg3[%c0_1, %c0_2] : memref<4x8xbf16, #tpu.memory_space<vmem>>, vector<4x8xbf16>
    %cst = arith.constant dense<0.000000e+00> : vector<80x8xf32>
    %2 = tpu.matmul %0, %1, %cst {dimension_numbers = #tpu.dot_dimension_numbers<[1], [0], [0], [1], [0, 0, 1, 1], [], []>} : vector<80x4xbf16>, vector<4x8xbf16>, vector<80x8xf32> -> vector<80x8xf32>
    %c0_3 = arith.constant 0 : index
    %c0_4 = arith.constant 0 : index
    %3 = vector.load %arg2[%c0_3, %c0_4] : memref<80x4xbf16, #tpu.memory_space<vmem>>, vector<80x4xbf16>
    %c0_5 = arith.constant 0 : index
    %c0_6 = arith.constant 0 : index
    %4 = vector.load %arg4[%c0_5, %c0_6] : memref<4x8xbf16, #tpu.memory_space<vmem>>, vector<4x8xbf16>
    %cst_7 = arith.constant dense<0.000000e+00> : vector<80x8xf32>
    %5 = tpu.matmul %3, %4, %cst_7 {dimension_numbers = #tpu.dot_dimension_numbers<[1], [0], [0], [1], [0, 0, 1, 1], [], []>} : vector<80x4xbf16>, vector<4x8xbf16>, vector<80x8xf32> -> vector<80x8xf32>
    %6 = arith.addf %2, %5 : vector<80x8xf32>
    %c0_8 = arith.constant 0 : index
    %c0_9 = arith.constant 0 : index
    %7 = vector.load %arg5[%c0_8, %c0_9] : memref<1x8xf32, #tpu.memory_space<vmem>>, vector<1x8xf32>
    %8 = vector.broadcast %7 : vector<1x8xf32> to vector<80x8xf32>
    %9 = arith.addf %6, %8 : vector<80x8xf32>
    %cst_10 = arith.constant 0.000000e+00 : f32
    %10 = vector.broadcast %cst_10 : f32 to vector<80x8xf32>
    %11 = arith.maximumf %9, %10 : vector<80x8xf32>
    %12 = arith.truncf %11 : vector<80x8xf32> to vector<80x8xbf16>
    %c0_11 = arith.constant 0 : index
    %c0_12 = arith.constant 0 : index
    %13 = vector.load %arg6[%c0_11, %c0_12] : memref<80x8xbf16, #tpu.memory_space<vmem>>, vector<80x8xbf16>
    tpu.vector_store %arg6[%c0_11, %c0_12], %12 {strides = array<i32>} : memref<80x8xbf16, #tpu.memory_space<vmem>>, vector<80x8xbf16>,
    return
  }
  func.func @transform_0(%arg0: i32) -> (i32, i32) {
    %c0_i32 = arith.constant 0 : i32
    %c0_i32_0 = arith.constant 0 : i32
    return %arg0, %c0_i32 : i32, i32
  }
  func.func @transform_1(%arg0: i32) -> (i32, i32) {
    %c0_i32 = arith.constant 0 : i32
    %c0_i32_0 = arith.constant 0 : i32
    return %arg0, %c0_i32 : i32, i32
  }
  func.func @transform_2(%arg0: i32) -> (i32, i32) {
    %c0_i32 = arith.constant 0 : i32
    %c0_i32_0 = arith.constant 0 : i32
    %c0_i32_1 = arith.constant 0 : i32
    return %c0_i32, %c0_i32_0 : i32, i32
  }
  func.func @transform_3(%arg0: i32) -> (i32, i32) {
    %c0_i32 = arith.constant 0 : i32
    %c0_i32_0 = arith.constant 0 : i32
    %c0_i32_1 = arith.constant 0 : i32
    return %c0_i32, %c0_i32_0 : i32, i32
  }
  func.func @transform_4(%arg0: i32) -> (i32, i32) {
    %c0_i32 = arith.constant 0 : i32
    %c0_i32_0 = arith.constant 0 : i32
    %c0_i32_1 = arith.constant 0 : i32
    return %c0_i32, %c0_i32_0 : i32, i32
  }
  func.func @transform_5(%arg0: i32) -> (i32, i32) {
    %c0_i32 = arith.constant 0 : i32
    %c0_i32_0 = arith.constant 0 : i32
    return %arg0, %c0_i32 : i32, i32
  }
}

module attributes {stable_mosaic.version = 11 : i64} {
  func.func @_fused_matmul_kernel(%arg0: i32, %arg1: memref<24x4xbf16, #tpu.memory_space<vmem>>, %arg2: memref<24x4xbf16, #tpu.memory_space<vmem>>, %arg3: memref<4x8xbf16, #tpu.memory_space<vmem>>, %arg4: memref<4x8xbf16, #tpu.memory_space<vmem>>, %arg5: memref<1x8xf32, #tpu.memory_space<vmem>>, %arg6: memref<24x8xbf16, #tpu.memory_space<vmem>>) attributes {dimension_semantics = [#tpu.dimension_semantics<parallel>], iteration_bounds = array<i64: 1>, scalar_prefetch = 0 : i64, scratch_operands = 0 : i64, tpu.core_type = #tpu.core_type<tc>, window_params = [{transform_indices = @transform_0, window_bounds = array<i64: 24, 4>}, {transform_indices = @transform_1, window_bounds = array<i64: 24, 4>}, {pipeline_mode = #tpu.pipeline_mode<synchronous>, transform_indices = @transform_2, window_bounds = array<i64: 4, 8>}, {pipeline_mode = #tpu.pipeline_mode<synchronous>, transform_indices = @transform_3, window_bounds = array<i64: 4, 8>}, {pipeline_mode = #tpu.pipeline_mode<synchronous>, transform_indices = @transform_4, window_bounds = array<i64: 1, 8>}, {transform_indices = @transform_5, window_bounds = array<i64: 24, 8>}]} {
    %c0 = arith.constant 0 : index
    %c0_0 = arith.constant 0 : index
    %0 = vector.load %arg1[%c0, %c0_0] : memref<24x4xbf16, #tpu.memory_space<vmem>>, vector<24x4xbf16>
    %c0_1 = arith.constant 0 : index
    %c0_2 = arith.constant 0 : index
    %1 = vector.load %arg3[%c0_1, %c0_2] : memref<4x8xbf16, #tpu.memory_space<vmem>>, vector<4x8xbf16>
    %cst = arith.constant dense<0.000000e+00> : vector<24x8xf32>
    %2 = tpu.matmul %0, %1, %cst {dimension_numbers = #tpu.dot_dimension_numbers<[1], [0], [0], [1], [0, 0, 1, 1], [], []>} : vector<24x4xbf16>, vector<4x8xbf16>, vector<24x8xf32> -> vector<24x8xf32>
    %c0_3 = arith.constant 0 : index
    %c0_4 = arith.constant 0 : index
    %3 = vector.load %arg2[%c0_3, %c0_4] : memref<24x4xbf16, #tpu.memory_space<vmem>>, vector<24x4xbf16>
    %c0_5 = arith.constant 0 : index
    %c0_6 = arith.constant 0 : index
    %4 = vector.load %arg4[%c0_5, %c0_6] : memref<4x8xbf16, #tpu.memory_space<vmem>>, vector<4x8xbf16>
    %cst_7 = arith.constant dense<0.000000e+00> : vector<24x8xf32>
    %5 = tpu.matmul %3, %4, %cst_7 {dimension_numbers = #tpu.dot_dimension_numbers<[1], [0], [0], [1], [0, 0, 1, 1], [], []>} : vector<24x4xbf16>, vector<4x8xbf16>, vector<24x8xf32> -> vector<24x8xf32>
    %6 = arith.addf %2, %5 : vector<24x8xf32>
    %c0_8 = arith.constant 0 : index
    %c0_9 = arith.constant 0 : index
    %7 = vector.load %arg5[%c0_8, %c0_9] : memref<1x8xf32, #tpu.memory_space<vmem>>, vector<1x8xf32>
    %8 = vector.broadcast %7 : vector<1x8xf32> to vector<24x8xf32>
    %9 = arith.addf %6, %8 : vector<24x8xf32>
    %cst_10 = arith.constant 0.000000e+00 : f32
    %10 = vector.broadcast %cst_10 : f32 to vector<24x8xf32>
    %11 = arith.maximumf %9, %10 : vector<24x8xf32>
    %12 = arith.truncf %11 : vector<24x8xf32> to vector<24x8xbf16>
    %c0_11 = arith.constant 0 : index
    %c0_12 = arith.constant 0 : index
    %13 = vector.load %arg6[%c0_11, %c0_12] : memref<24x8xbf16, #tpu.memory_space<vmem>>, vector<24x8xbf16>
    tpu.vector_store %arg6[%c0_11, %c0_12], %12 {strides = array<i32>} : memref<24x8xbf16, #tpu.memory_space<vmem>>, vector<24x8xbf16>,
    return
  }
  func.func @transform_0(%arg0: i32) -> (i32, i32) {
    %c0_i32 = arith.constant 0 : i32
    %c0_i32_0 = arith.constant 0 : i32
    return %arg0, %c0_i32 : i32, i32
  }
  func.func @transform_1(%arg0: i32) -> (i32, i32) {
    %c0_i32 = arith.constant 0 : i32
    %c0_i32_0 = arith.constant 0 : i32
    return %arg0, %c0_i32 : i32, i32
  }
  func.func @transform_2(%arg0: i32) -> (i32, i32) {
    %c0_i32 = arith.constant 0 : i32
    %c0_i32_0 = arith.constant 0 : i32
    %c0_i32_1 = arith.constant 0 : i32
    return %c0_i32, %c0_i32_0 : i32, i32
  }
  func.func @transform_3(%arg0: i32) -> (i32, i32) {
    %c0_i32 = arith.constant 0 : i32
    %c0_i32_0 = arith.constant 0 : i32
    %c0_i32_1 = arith.constant 0 : i32
    return %c0_i32, %c0_i32_0 : i32, i32
  }
  func.func @transform_4(%arg0: i32) -> (i32, i32) {
    %c0_i32 = arith.constant 0 : i32
    %c0_i32_0 = arith.constant 0 : i32
    %c0_i32_1 = arith.constant 0 : i32
    return %c0_i32, %c0_i32_0 : i32, i32
  }
  func.func @transform_5(%arg0: i32) -> (i32, i32) {
    %c0_i32 = arith.constant 0 : i32
    %c0_i32_0 = arith.constant 0 : i32
    return %arg0, %c0_i32 : i32, i32
  }
}

module attributes {stable_mosaic.version = 11 : i64} {
  func.func @_fused_matmul_kernel(%arg0: i32, %arg1: memref<64x64xbf16, #tpu.memory_space<vmem>>, %arg2: memref<64x4xbf16, #tpu.memory_space<vmem>>, %arg3: memref<64x4xbf16, #tpu.memory_space<vmem>>, %arg4: memref<64x4xbf16, #tpu.memory_space<vmem>>, %arg5: memref<64x16xbf16, #tpu.memory_space<vmem>>, %arg6: memref<4x16xbf16, #tpu.memory_space<vmem>>, %arg7: memref<1x16xf32, #tpu.memory_space<vmem>>, %arg8: memref<64x16xbf16, #tpu.memory_space<vmem>>) attributes {dimension_semantics = [#tpu.dimension_semantics<parallel>], iteration_bounds = array<i64: 2>, scalar_prefetch = 0 : i64, scratch_operands = 0 : i64, tpu.core_type = #tpu.core_type<tc>, window_params = [{transform_indices = @transform_0, window_bounds = array<i64: 64, 64>}, {transform_indices = @transform_1, window_bounds = array<i64: 64, 4>}, {transform_indices = @transform_2, window_bounds = array<i64: 64, 4>}, {transform_indices = @transform_3, window_bounds = array<i64: 64, 4>}, {pipeline_mode = #tpu.pipeline_mode<synchronous>, transform_indices = @transform_4, window_bounds = array<i64: 64, 16>}, {pipeline_mode = #tpu.pipeline_mode<synchronous>, transform_indices = @transform_5, window_bounds = array<i64: 4, 16>}, {pipeline_mode = #tpu.pipeline_mode<synchronous>, transform_indices = @transform_6, window_bounds = array<i64: 1, 16>}, {transform_indices = @transform_7, window_bounds = array<i64: 64, 16>}]} {
    %c0 = arith.constant 0 : index
    %c0_0 = arith.constant 0 : index
    %0 = vector.load %arg1[%c0, %c0_0] : memref<64x64xbf16, #tpu.memory_space<vmem>>, vector<64x64xbf16>
    %c0_1 = arith.constant 0 : index
    %c0_2 = arith.constant 0 : index
    %1 = vector.load %arg5[%c0_1, %c0_2] : memref<64x16xbf16, #tpu.memory_space<vmem>>, vector<64x16xbf16>
    %cst = arith.constant dense<0.000000e+00> : vector<64x16xf32>
    %2 = tpu.matmul %0, %1, %cst {dimension_numbers = #tpu.dot_dimension_numbers<[1], [0], [0], [1], [0, 0, 1, 1], [], []>} : vector<64x64xbf16>, vector<64x16xbf16>, vector<64x16xf32> -> vector<64x16xf32>
    %c0_3 = arith.constant 0 : index
    %c0_4 = arith.constant 0 : index
    %3 = vector.load %arg2[%c0_3, %c0_4] : memref<64x4xbf16, #tpu.memory_space<vmem>>, vector<64x4xbf16>
    %c0_5 = arith.constant 0 : index
    %c0_6 = arith.constant 0 : index
    %4 = vector.load %arg3[%c0_5, %c0_6] : memref<64x4xbf16, #tpu.memory_space<vmem>>, vector<64x4xbf16>
    %5 = arith.addf %3, %4 : vector<64x4xbf16>
    %c0_7 = arith.constant 0 : index
    %c0_8 = arith.constant 0 : index
    %6 = vector.load %arg4[%c0_7, %c0_8] : memref<64x4xbf16, #tpu.memory_space<vmem>>, vector<64x4xbf16>
    %7 = arith.addf %5, %6 : vector<64x4xbf16>
    %c0_9 = arith.constant 0 : index
    %c0_10 = arith.constant 0 : index
    %8 = vector.load %arg6[%c0_9, %c0_10] : memref<4x16xbf16, #tpu.memory_space<vmem>>, vector<4x16xbf16>
    %cst_11 = arith.constant dense<0.000000e+00> : vector<64x16xf32>
    %9 = tpu.matmul %7, %8, %cst_11 {dimension_numbers = #tpu.dot_dimension_numbers<[1], [0], [0], [1], [0, 0, 1, 1], [], []>} : vector<64x4xbf16>, vector<4x16xbf16>, vector<64x16xf32> -> vector<64x16xf32>
    %10 = arith.addf %2, %9 : vector<64x16xf32>
    %c0_12 = arith.constant 0 : index
    %c0_13 = arith.constant 0 : index
    %11 = vector.load %arg7[%c0_12, %c0_13] : memref<1x16xf32, #tpu.memory_space<vmem>>, vector<1x16xf32>
    %12 = vector.broadcast %11 : vector<1x16xf32> to vector<64x16xf32>
    %13 = arith.addf %10, %12 : vector<64x16xf32>
    %cst_14 = arith.constant 0.000000e+00 : f32
    %14 = vector.broadcast %cst_14 : f32 to vector<64x16xf32>
    %15 = arith.maximumf %13, %14 : vector<64x16xf32>
    %16 = arith.truncf %15 : vector<64x16xf32> to vector<64x16xbf16>
    %c0_15 = arith.constant 0 : index
    %c0_16 = arith.constant 0 : index
    %17 = vector.load %arg8[%c0_15, %c0_16] : memref<64x16xbf16, #tpu.memory_space<vmem>>, vector<64x16xbf16>
    tpu.vector_store %arg8[%c0_15, %c0_16], %16 {strides = array<i32>} : memref<64x16xbf16, #tpu.memory_space<vmem>>, vector<64x16xbf16>,
    return
  }
  func.func @transform_0(%arg0: i32) -> (i32, i32) {
    %c0_i32 = arith.constant 0 : i32
    %c0_i32_0 = arith.constant 0 : i32
    return %arg0, %c0_i32 : i32, i32
  }
  func.func @transform_1(%arg0: i32) -> (i32, i32) {
    %c0_i32 = arith.constant 0 : i32
    %c0_i32_0 = arith.constant 0 : i32
    return %arg0, %c0_i32 : i32, i32
  }
  func.func @transform_2(%arg0: i32) -> (i32, i32) {
    %c0_i32 = arith.constant 0 : i32
    %c0_i32_0 = arith.constant 0 : i32
    return %arg0, %c0_i32 : i32, i32
  }
  func.func @transform_3(%arg0: i32) -> (i32, i32) {
    %c0_i32 = arith.constant 0 : i32
    %c0_i32_0 = arith.constant 0 : i32
    return %arg0, %c0_i32 : i32, i32
  }
  func.func @transform_4(%arg0: i32) -> (i32, i32) {
    %c0_i32 = arith.constant 0 : i32
    %c0_i32_0 = arith.constant 0 : i32
    %c0_i32_1 = arith.constant 0 : i32
    return %c0_i32, %c0_i32_0 : i32, i32
  }
  func.func @transform_5(%arg0: i32) -> (i32, i32) {
    %c0_i32 = arith.constant 0 : i32
    %c0_i32_0 = arith.constant 0 : i32
    %c0_i32_1 = arith.constant 0 : i32
    return %c0_i32, %c0_i32_0 : i32, i32
  }
  func.func @transform_6(%arg0: i32) -> (i32, i32) {
    %c0_i32 = arith.constant 0 : i32
    %c0_i32_0 = arith.constant 0 : i32
    %c0_i32_1 = arith.constant 0 : i32
    return %c0_i32, %c0_i32_0 : i32, i32
  }
  func.func @transform_7(%arg0: i32) -> (i32, i32) {
    %c0_i32 = arith.constant 0 : i32
    %c0_i32_0 = arith.constant 0 : i32
    return %arg0, %c0_i32 : i32, i32
  }
}

module attributes {stable_mosaic.version = 11 : i64} {
  func.func @_fused_matmul_kernel(%arg0: i32, %arg1: memref<64x8xbf16, #tpu.memory_space<vmem>>, %arg2: memref<8x4xbf16, #tpu.memory_space<vmem>>, %arg3: memref<1x4xf32, #tpu.memory_space<vmem>>, %arg4: memref<64x4xbf16, #tpu.memory_space<vmem>>) attributes {dimension_semantics = [#tpu.dimension_semantics<parallel>], iteration_bounds = array<i64: 2>, scalar_prefetch = 0 : i64, scratch_operands = 0 : i64, tpu.core_type = #tpu.core_type<tc>, window_params = [{transform_indices = @transform_0, window_bounds = array<i64: 64, 8>}, {pipeline_mode = #tpu.pipeline_mode<synchronous>, transform_indices = @transform_1, window_bounds = array<i64: 8, 4>}, {pipeline_mode = #tpu.pipeline_mode<synchronous>, transform_indices = @transform_2, window_bounds = array<i64: 1, 4>}, {transform_indices = @transform_3, window_bounds = array<i64: 64, 4>}]} {
    %c0 = arith.constant 0 : index
    %c0_0 = arith.constant 0 : index
    %0 = vector.load %arg1[%c0, %c0_0] : memref<64x8xbf16, #tpu.memory_space<vmem>>, vector<64x8xbf16>
    %c0_1 = arith.constant 0 : index
    %c0_2 = arith.constant 0 : index
    %1 = vector.load %arg2[%c0_1, %c0_2] : memref<8x4xbf16, #tpu.memory_space<vmem>>, vector<8x4xbf16>
    %cst = arith.constant dense<0.000000e+00> : vector<64x4xf32>
    %2 = tpu.matmul %0, %1, %cst {dimension_numbers = #tpu.dot_dimension_numbers<[1], [0], [0], [1], [0, 0, 1, 1], [], []>} : vector<64x8xbf16>, vector<8x4xbf16>, vector<64x4xf32> -> vector<64x4xf32>
    %c0_3 = arith.constant 0 : index
    %c0_4 = arith.constant 0 : index
    %3 = vector.load %arg3[%c0_3, %c0_4] : memref<1x4xf32, #tpu.memory_space<vmem>>, vector<1x4xf32>
    %4 = vector.broadcast %3 : vector<1x4xf32> to vector<64x4xf32>
    %5 = arith.addf %2, %4 : vector<64x4xf32>
    %cst_5 = arith.constant 0.000000e+00 : f32
    %6 = vector.broadcast %cst_5 : f32 to vector<64x4xf32>
    %7 = arith.maximumf %5, %6 : vector<64x4xf32>
    %8 = arith.truncf %7 : vector<64x4xf32> to vector<64x4xbf16>
    %c0_6 = arith.constant 0 : index
    %c0_7 = arith.constant 0 : index
    %9 = vector.load %arg4[%c0_6, %c0_7] : memref<64x4xbf16, #tpu.memory_space<vmem>>, vector<64x4xbf16>
    tpu.vector_store %arg4[%c0_6, %c0_7], %8 {strides = array<i32>} : memref<64x4xbf16, #tpu.memory_space<vmem>>, vector<64x4xbf16>,
    return
  }
  func.func @transform_0(%arg0: i32) -> (i32, i32) {
    %c0_i32 = arith.constant 0 : i32
    %c0_i32_0 = arith.constant 0 : i32
    return %arg0, %c0_i32 : i32, i32
  }
  func.func @transform_1(%arg0: i32) -> (i32, i32) {
    %c0_i32 = arith.constant 0 : i32
    %c0_i32_0 = arith.constant 0 : i32
    %c0_i32_1 = arith.constant 0 : i32
    return %c0_i32, %c0_i32_0 : i32, i32
  }
  func.func @transform_2(%arg0: i32) -> (i32, i32) {
    %c0_i32 = arith.constant 0 : i32
    %c0_i32_0 = arith.constant 0 : i32
    %c0_i32_1 = arith.constant 0 : i32
    return %c0_i32, %c0_i32_0 : i32, i32
  }
  func.func @transform_3(%arg0: i32) -> (i32, i32) {
    %c0_i32 = arith.constant 0 : i32
    %c0_i32_0 = arith.constant 0 : i32
    return %arg0, %c0_i32 : i32, i32
  }
}

module attributes {stable_mosaic.version = 11 : i64} {
  func.func @_fused_matmul_kernel(%arg0: i32, %arg1: memref<64x144xbf16, #tpu.memory_space<vmem>>, %arg2: memref<64x4xbf16, #tpu.memory_space<vmem>>, %arg3: memref<64x4xbf16, #tpu.memory_space<vmem>>, %arg4: memref<64x4xbf16, #tpu.memory_space<vmem>>, %arg5: memref<144x16xbf16, #tpu.memory_space<vmem>>, %arg6: memref<4x16xbf16, #tpu.memory_space<vmem>>, %arg7: memref<1x16xf32, #tpu.memory_space<vmem>>, %arg8: memref<64x16xbf16, #tpu.memory_space<vmem>>) attributes {dimension_semantics = [#tpu.dimension_semantics<parallel>], iteration_bounds = array<i64: 2>, scalar_prefetch = 0 : i64, scratch_operands = 0 : i64, tpu.core_type = #tpu.core_type<tc>, window_params = [{transform_indices = @transform_0, window_bounds = array<i64: 64, 144>}, {transform_indices = @transform_1, window_bounds = array<i64: 64, 4>}, {transform_indices = @transform_2, window_bounds = array<i64: 64, 4>}, {transform_indices = @transform_3, window_bounds = array<i64: 64, 4>}, {pipeline_mode = #tpu.pipeline_mode<synchronous>, transform_indices = @transform_4, window_bounds = array<i64: 144, 16>}, {pipeline_mode = #tpu.pipeline_mode<synchronous>, transform_indices = @transform_5, window_bounds = array<i64: 4, 16>}, {pipeline_mode = #tpu.pipeline_mode<synchronous>, transform_indices = @transform_6, window_bounds = array<i64: 1, 16>}, {transform_indices = @transform_7, window_bounds = array<i64: 64, 16>}]} {
    %c0 = arith.constant 0 : index
    %c0_0 = arith.constant 0 : index
    %0 = vector.load %arg1[%c0, %c0_0] : memref<64x144xbf16, #tpu.memory_space<vmem>>, vector<64x144xbf16>
    %c0_1 = arith.constant 0 : index
    %c0_2 = arith.constant 0 : index
    %1 = vector.load %arg5[%c0_1, %c0_2] : memref<144x16xbf16, #tpu.memory_space<vmem>>, vector<144x16xbf16>
    %cst = arith.constant dense<0.000000e+00> : vector<64x16xf32>
    %2 = tpu.matmul %0, %1, %cst {dimension_numbers = #tpu.dot_dimension_numbers<[1], [0], [0], [1], [0, 0, 1, 1], [], []>} : vector<64x144xbf16>, vector<144x16xbf16>, vector<64x16xf32> -> vector<64x16xf32>
    %c0_3 = arith.constant 0 : index
    %c0_4 = arith.constant 0 : index
    %3 = vector.load %arg2[%c0_3, %c0_4] : memref<64x4xbf16, #tpu.memory_space<vmem>>, vector<64x4xbf16>
    %c0_5 = arith.constant 0 : index
    %c0_6 = arith.constant 0 : index
    %4 = vector.load %arg3[%c0_5, %c0_6] : memref<64x4xbf16, #tpu.memory_space<vmem>>, vector<64x4xbf16>
    %5 = arith.addf %3, %4 : vector<64x4xbf16>
    %c0_7 = arith.constant 0 : index
    %c0_8 = arith.constant 0 : index
    %6 = vector.load %arg4[%c0_7, %c0_8] : memref<64x4xbf16, #tpu.memory_space<vmem>>, vector<64x4xbf16>
    %7 = arith.addf %5, %6 : vector<64x4xbf16>
    %c0_9 = arith.constant 0 : index
    %c0_10 = arith.constant 0 : index
    %8 = vector.load %arg6[%c0_9, %c0_10] : memref<4x16xbf16, #tpu.memory_space<vmem>>, vector<4x16xbf16>
    %cst_11 = arith.constant dense<0.000000e+00> : vector<64x16xf32>
    %9 = tpu.matmul %7, %8, %cst_11 {dimension_numbers = #tpu.dot_dimension_numbers<[1], [0], [0], [1], [0, 0, 1, 1], [], []>} : vector<64x4xbf16>, vector<4x16xbf16>, vector<64x16xf32> -> vector<64x16xf32>
    %10 = arith.addf %2, %9 : vector<64x16xf32>
    %c0_12 = arith.constant 0 : index
    %c0_13 = arith.constant 0 : index
    %11 = vector.load %arg7[%c0_12, %c0_13] : memref<1x16xf32, #tpu.memory_space<vmem>>, vector<1x16xf32>
    %12 = vector.broadcast %11 : vector<1x16xf32> to vector<64x16xf32>
    %13 = arith.addf %10, %12 : vector<64x16xf32>
    %cst_14 = arith.constant 0.000000e+00 : f32
    %14 = vector.broadcast %cst_14 : f32 to vector<64x16xf32>
    %15 = arith.maximumf %13, %14 : vector<64x16xf32>
    %16 = arith.truncf %15 : vector<64x16xf32> to vector<64x16xbf16>
    %c0_15 = arith.constant 0 : index
    %c0_16 = arith.constant 0 : index
    %17 = vector.load %arg8[%c0_15, %c0_16] : memref<64x16xbf16, #tpu.memory_space<vmem>>, vector<64x16xbf16>
    tpu.vector_store %arg8[%c0_15, %c0_16], %16 {strides = array<i32>} : memref<64x16xbf16, #tpu.memory_space<vmem>>, vector<64x16xbf16>,
    return
  }
  func.func @transform_0(%arg0: i32) -> (i32, i32) {
    %c0_i32 = arith.constant 0 : i32
    %c0_i32_0 = arith.constant 0 : i32
    return %arg0, %c0_i32 : i32, i32
  }
  func.func @transform_1(%arg0: i32) -> (i32, i32) {
    %c0_i32 = arith.constant 0 : i32
    %c0_i32_0 = arith.constant 0 : i32
    return %arg0, %c0_i32 : i32, i32
  }
  func.func @transform_2(%arg0: i32) -> (i32, i32) {
    %c0_i32 = arith.constant 0 : i32
    %c0_i32_0 = arith.constant 0 : i32
    return %arg0, %c0_i32 : i32, i32
  }
  func.func @transform_3(%arg0: i32) -> (i32, i32) {
    %c0_i32 = arith.constant 0 : i32
    %c0_i32_0 = arith.constant 0 : i32
    return %arg0, %c0_i32 : i32, i32
  }
  func.func @transform_4(%arg0: i32) -> (i32, i32) {
    %c0_i32 = arith.constant 0 : i32
    %c0_i32_0 = arith.constant 0 : i32
    %c0_i32_1 = arith.constant 0 : i32
    return %c0_i32, %c0_i32_0 : i32, i32
  }
  func.func @transform_5(%arg0: i32) -> (i32, i32) {
    %c0_i32 = arith.constant 0 : i32
    %c0_i32_0 = arith.constant 0 : i32
    %c0_i32_1 = arith.constant 0 : i32
    return %c0_i32, %c0_i32_0 : i32, i32
  }
  func.func @transform_6(%arg0: i32) -> (i32, i32) {
    %c0_i32 = arith.constant 0 : i32
    %c0_i32_0 = arith.constant 0 : i32
    %c0_i32_1 = arith.constant 0 : i32
    return %c0_i32, %c0_i32_0 : i32, i32
  }
  func.func @transform_7(%arg0: i32) -> (i32, i32) {
    %c0_i32 = arith.constant 0 : i32
    %c0_i32_0 = arith.constant 0 : i32
    return %arg0, %c0_i32 : i32, i32
  }
}

module attributes {stable_mosaic.version = 11 : i64} {
  func.func @_fused_matmul_kernel(%arg0: i32, %arg1: memref<64x8xbf16, #tpu.memory_space<vmem>>, %arg2: memref<8x16xbf16, #tpu.memory_space<vmem>>, %arg3: memref<1x16xf32, #tpu.memory_space<vmem>>, %arg4: memref<64x16xbf16, #tpu.memory_space<vmem>>) attributes {dimension_semantics = [#tpu.dimension_semantics<parallel>], iteration_bounds = array<i64: 2>, scalar_prefetch = 0 : i64, scratch_operands = 0 : i64, tpu.core_type = #tpu.core_type<tc>, window_params = [{transform_indices = @transform_0, window_bounds = array<i64: 64, 8>}, {pipeline_mode = #tpu.pipeline_mode<synchronous>, transform_indices = @transform_1, window_bounds = array<i64: 8, 16>}, {pipeline_mode = #tpu.pipeline_mode<synchronous>, transform_indices = @transform_2, window_bounds = array<i64: 1, 16>}, {transform_indices = @transform_3, window_bounds = array<i64: 64, 16>}]} {
    %c0 = arith.constant 0 : index
    %c0_0 = arith.constant 0 : index
    %0 = vector.load %arg1[%c0, %c0_0] : memref<64x8xbf16, #tpu.memory_space<vmem>>, vector<64x8xbf16>
    %c0_1 = arith.constant 0 : index
    %c0_2 = arith.constant 0 : index
    %1 = vector.load %arg2[%c0_1, %c0_2] : memref<8x16xbf16, #tpu.memory_space<vmem>>, vector<8x16xbf16>
    %cst = arith.constant dense<0.000000e+00> : vector<64x16xf32>
    %2 = tpu.matmul %0, %1, %cst {dimension_numbers = #tpu.dot_dimension_numbers<[1], [0], [0], [1], [0, 0, 1, 1], [], []>} : vector<64x8xbf16>, vector<8x16xbf16>, vector<64x16xf32> -> vector<64x16xf32>
    %c0_3 = arith.constant 0 : index
    %c0_4 = arith.constant 0 : index
    %3 = vector.load %arg3[%c0_3, %c0_4] : memref<1x16xf32, #tpu.memory_space<vmem>>, vector<1x16xf32>
    %4 = vector.broadcast %3 : vector<1x16xf32> to vector<64x16xf32>
    %5 = arith.addf %2, %4 : vector<64x16xf32>
    %cst_5 = arith.constant 0.000000e+00 : f32
    %6 = vector.broadcast %cst_5 : f32 to vector<64x16xf32>
    %7 = arith.maximumf %5, %6 : vector<64x16xf32>
    %8 = arith.truncf %7 : vector<64x16xf32> to vector<64x16xbf16>
    %c0_6 = arith.constant 0 : index
    %c0_7 = arith.constant 0 : index
    %9 = vector.load %arg4[%c0_6, %c0_7] : memref<64x16xbf16, #tpu.memory_space<vmem>>, vector<64x16xbf16>
    tpu.vector_store %arg4[%c0_6, %c0_7], %8 {strides = array<i32>} : memref<64x16xbf16, #tpu.memory_space<vmem>>, vector<64x16xbf16>,
    return
  }
  func.func @transform_0(%arg0: i32) -> (i32, i32) {
    %c0_i32 = arith.constant 0 : i32
    %c0_i32_0 = arith.constant 0 : i32
    return %arg0, %c0_i32 : i32, i32
  }
  func.func @transform_1(%arg0: i32) -> (i32, i32) {
    %c0_i32 = arith.constant 0 : i32
    %c0_i32_0 = arith.constant 0 : i32
    %c0_i32_1 = arith.constant 0 : i32
    return %c0_i32, %c0_i32_0 : i32, i32
  }
  func.func @transform_2(%arg0: i32) -> (i32, i32) {
    %c0_i32 = arith.constant 0 : i32
    %c0_i32_0 = arith.constant 0 : i32
    %c0_i32_1 = arith.constant 0 : i32
    return %c0_i32, %c0_i32_0 : i32, i32
  }
  func.func @transform_3(%arg0: i32) -> (i32, i32) {
    %c0_i32 = arith.constant 0 : i32
    %c0_i32_0 = arith.constant 0 : i32
    return %arg0, %c0_i32 : i32, i32
  }
}

module attributes {stable_mosaic.version = 11 : i64} {
  func.func @_fused_matmul_kernel(%arg0: i32, %arg1: memref<80x16xbf16, #tpu.memory_space<vmem>>, %arg2: memref<80x16xbf16, #tpu.memory_space<vmem>>, %arg3: memref<16x32xbf16, #tpu.memory_space<vmem>>, %arg4: memref<16x32xbf16, #tpu.memory_space<vmem>>, %arg5: memref<1x32xf32, #tpu.memory_space<vmem>>, %arg6: memref<80x32xbf16, #tpu.memory_space<vmem>>) attributes {dimension_semantics = [#tpu.dimension_semantics<parallel>], iteration_bounds = array<i64: 1>, scalar_prefetch = 0 : i64, scratch_operands = 0 : i64, tpu.core_type = #tpu.core_type<tc>, window_params = [{transform_indices = @transform_0, window_bounds = array<i64: 80, 16>}, {transform_indices = @transform_1, window_bounds = array<i64: 80, 16>}, {pipeline_mode = #tpu.pipeline_mode<synchronous>, transform_indices = @transform_2, window_bounds = array<i64: 16, 32>}, {pipeline_mode = #tpu.pipeline_mode<synchronous>, transform_indices = @transform_3, window_bounds = array<i64: 16, 32>}, {pipeline_mode = #tpu.pipeline_mode<synchronous>, transform_indices = @transform_4, window_bounds = array<i64: 1, 32>}, {transform_indices = @transform_5, window_bounds = array<i64: 80, 32>}]} {
    %c0 = arith.constant 0 : index
    %c0_0 = arith.constant 0 : index
    %0 = vector.load %arg1[%c0, %c0_0] : memref<80x16xbf16, #tpu.memory_space<vmem>>, vector<80x16xbf16>
    %c0_1 = arith.constant 0 : index
    %c0_2 = arith.constant 0 : index
    %1 = vector.load %arg3[%c0_1, %c0_2] : memref<16x32xbf16, #tpu.memory_space<vmem>>, vector<16x32xbf16>
    %cst = arith.constant dense<0.000000e+00> : vector<80x32xf32>
    %2 = tpu.matmul %0, %1, %cst {dimension_numbers = #tpu.dot_dimension_numbers<[1], [0], [0], [1], [0, 0, 1, 1], [], []>} : vector<80x16xbf16>, vector<16x32xbf16>, vector<80x32xf32> -> vector<80x32xf32>
    %c0_3 = arith.constant 0 : index
    %c0_4 = arith.constant 0 : index
    %3 = vector.load %arg2[%c0_3, %c0_4] : memref<80x16xbf16, #tpu.memory_space<vmem>>, vector<80x16xbf16>
    %c0_5 = arith.constant 0 : index
    %c0_6 = arith.constant 0 : index
    %4 = vector.load %arg4[%c0_5, %c0_6] : memref<16x32xbf16, #tpu.memory_space<vmem>>, vector<16x32xbf16>
    %cst_7 = arith.constant dense<0.000000e+00> : vector<80x32xf32>
    %5 = tpu.matmul %3, %4, %cst_7 {dimension_numbers = #tpu.dot_dimension_numbers<[1], [0], [0], [1], [0, 0, 1, 1], [], []>} : vector<80x16xbf16>, vector<16x32xbf16>, vector<80x32xf32> -> vector<80x32xf32>
    %6 = arith.addf %2, %5 : vector<80x32xf32>
    %c0_8 = arith.constant 0 : index
    %c0_9 = arith.constant 0 : index
    %7 = vector.load %arg5[%c0_8, %c0_9] : memref<1x32xf32, #tpu.memory_space<vmem>>, vector<1x32xf32>
    %8 = vector.broadcast %7 : vector<1x32xf32> to vector<80x32xf32>
    %9 = arith.addf %6, %8 : vector<80x32xf32>
    %cst_10 = arith.constant 0.000000e+00 : f32
    %10 = vector.broadcast %cst_10 : f32 to vector<80x32xf32>
    %11 = arith.maximumf %9, %10 : vector<80x32xf32>
    %12 = arith.truncf %11 : vector<80x32xf32> to vector<80x32xbf16>
    %c0_11 = arith.constant 0 : index
    %c0_12 = arith.constant 0 : index
    %13 = vector.load %arg6[%c0_11, %c0_12] : memref<80x32xbf16, #tpu.memory_space<vmem>>, vector<80x32xbf16>
    tpu.vector_store %arg6[%c0_11, %c0_12], %12 {strides = array<i32>} : memref<80x32xbf16, #tpu.memory_space<vmem>>, vector<80x32xbf16>,
    return
  }
  func.func @transform_0(%arg0: i32) -> (i32, i32) {
    %c0_i32 = arith.constant 0 : i32
    %c0_i32_0 = arith.constant 0 : i32
    return %arg0, %c0_i32 : i32, i32
  }
  func.func @transform_1(%arg0: i32) -> (i32, i32) {
    %c0_i32 = arith.constant 0 : i32
    %c0_i32_0 = arith.constant 0 : i32
    return %arg0, %c0_i32 : i32, i32
  }
  func.func @transform_2(%arg0: i32) -> (i32, i32) {
    %c0_i32 = arith.constant 0 : i32
    %c0_i32_0 = arith.constant 0 : i32
    %c0_i32_1 = arith.constant 0 : i32
    return %c0_i32, %c0_i32_0 : i32, i32
  }
  func.func @transform_3(%arg0: i32) -> (i32, i32) {
    %c0_i32 = arith.constant 0 : i32
    %c0_i32_0 = arith.constant 0 : i32
    %c0_i32_1 = arith.constant 0 : i32
    return %c0_i32, %c0_i32_0 : i32, i32
  }
  func.func @transform_4(%arg0: i32) -> (i32, i32) {
    %c0_i32 = arith.constant 0 : i32
    %c0_i32_0 = arith.constant 0 : i32
    %c0_i32_1 = arith.constant 0 : i32
    return %c0_i32, %c0_i32_0 : i32, i32
  }
  func.func @transform_5(%arg0: i32) -> (i32, i32) {
    %c0_i32 = arith.constant 0 : i32
    %c0_i32_0 = arith.constant 0 : i32
    return %arg0, %c0_i32 : i32, i32
  }
}

module attributes {stable_mosaic.version = 11 : i64} {
  func.func @_fused_matmul_kernel(%arg0: i32, %arg1: memref<24x16xbf16, #tpu.memory_space<vmem>>, %arg2: memref<24x16xbf16, #tpu.memory_space<vmem>>, %arg3: memref<16x32xbf16, #tpu.memory_space<vmem>>, %arg4: memref<16x32xbf16, #tpu.memory_space<vmem>>, %arg5: memref<1x32xf32, #tpu.memory_space<vmem>>, %arg6: memref<24x32xbf16, #tpu.memory_space<vmem>>) attributes {dimension_semantics = [#tpu.dimension_semantics<parallel>], iteration_bounds = array<i64: 1>, scalar_prefetch = 0 : i64, scratch_operands = 0 : i64, tpu.core_type = #tpu.core_type<tc>, window_params = [{transform_indices = @transform_0, window_bounds = array<i64: 24, 16>}, {transform_indices = @transform_1, window_bounds = array<i64: 24, 16>}, {pipeline_mode = #tpu.pipeline_mode<synchronous>, transform_indices = @transform_2, window_bounds = array<i64: 16, 32>}, {pipeline_mode = #tpu.pipeline_mode<synchronous>, transform_indices = @transform_3, window_bounds = array<i64: 16, 32>}, {pipeline_mode = #tpu.pipeline_mode<synchronous>, transform_indices = @transform_4, window_bounds = array<i64: 1, 32>}, {transform_indices = @transform_5, window_bounds = array<i64: 24, 32>}]} {
    %c0 = arith.constant 0 : index
    %c0_0 = arith.constant 0 : index
    %0 = vector.load %arg1[%c0, %c0_0] : memref<24x16xbf16, #tpu.memory_space<vmem>>, vector<24x16xbf16>
    %c0_1 = arith.constant 0 : index
    %c0_2 = arith.constant 0 : index
    %1 = vector.load %arg3[%c0_1, %c0_2] : memref<16x32xbf16, #tpu.memory_space<vmem>>, vector<16x32xbf16>
    %cst = arith.constant dense<0.000000e+00> : vector<24x32xf32>
    %2 = tpu.matmul %0, %1, %cst {dimension_numbers = #tpu.dot_dimension_numbers<[1], [0], [0], [1], [0, 0, 1, 1], [], []>} : vector<24x16xbf16>, vector<16x32xbf16>, vector<24x32xf32> -> vector<24x32xf32>
    %c0_3 = arith.constant 0 : index
    %c0_4 = arith.constant 0 : index
    %3 = vector.load %arg2[%c0_3, %c0_4] : memref<24x16xbf16, #tpu.memory_space<vmem>>, vector<24x16xbf16>
    %c0_5 = arith.constant 0 : index
    %c0_6 = arith.constant 0 : index
    %4 = vector.load %arg4[%c0_5, %c0_6] : memref<16x32xbf16, #tpu.memory_space<vmem>>, vector<16x32xbf16>
    %cst_7 = arith.constant dense<0.000000e+00> : vector<24x32xf32>
    %5 = tpu.matmul %3, %4, %cst_7 {dimension_numbers = #tpu.dot_dimension_numbers<[1], [0], [0], [1], [0, 0, 1, 1], [], []>} : vector<24x16xbf16>, vector<16x32xbf16>, vector<24x32xf32> -> vector<24x32xf32>
    %6 = arith.addf %2, %5 : vector<24x32xf32>
    %c0_8 = arith.constant 0 : index
    %c0_9 = arith.constant 0 : index
    %7 = vector.load %arg5[%c0_8, %c0_9] : memref<1x32xf32, #tpu.memory_space<vmem>>, vector<1x32xf32>
    %8 = vector.broadcast %7 : vector<1x32xf32> to vector<24x32xf32>
    %9 = arith.addf %6, %8 : vector<24x32xf32>
    %cst_10 = arith.constant 0.000000e+00 : f32
    %10 = vector.broadcast %cst_10 : f32 to vector<24x32xf32>
    %11 = arith.maximumf %9, %10 : vector<24x32xf32>
    %12 = arith.truncf %11 : vector<24x32xf32> to vector<24x32xbf16>
    %c0_11 = arith.constant 0 : index
    %c0_12 = arith.constant 0 : index
    %13 = vector.load %arg6[%c0_11, %c0_12] : memref<24x32xbf16, #tpu.memory_space<vmem>>, vector<24x32xbf16>
    tpu.vector_store %arg6[%c0_11, %c0_12], %12 {strides = array<i32>} : memref<24x32xbf16, #tpu.memory_space<vmem>>, vector<24x32xbf16>,
    return
  }
  func.func @transform_0(%arg0: i32) -> (i32, i32) {
    %c0_i32 = arith.constant 0 : i32
    %c0_i32_0 = arith.constant 0 : i32
    return %arg0, %c0_i32 : i32, i32
  }
  func.func @transform_1(%arg0: i32) -> (i32, i32) {
    %c0_i32 = arith.constant 0 : i32
    %c0_i32_0 = arith.constant 0 : i32
    return %arg0, %c0_i32 : i32, i32
  }
  func.func @transform_2(%arg0: i32) -> (i32, i32) {
    %c0_i32 = arith.constant 0 : i32
    %c0_i32_0 = arith.constant 0 : i32
    %c0_i32_1 = arith.constant 0 : i32
    return %c0_i32, %c0_i32_0 : i32, i32
  }
  func.func @transform_3(%arg0: i32) -> (i32, i32) {
    %c0_i32 = arith.constant 0 : i32
    %c0_i32_0 = arith.constant 0 : i32
    %c0_i32_1 = arith.constant 0 : i32
    return %c0_i32, %c0_i32_0 : i32, i32
  }
  func.func @transform_4(%arg0: i32) -> (i32, i32) {
    %c0_i32 = arith.constant 0 : i32
    %c0_i32_0 = arith.constant 0 : i32
    %c0_i32_1 = arith.constant 0 : i32
    return %c0_i32, %c0_i32_0 : i32, i32
  }
  func.func @transform_5(%arg0: i32) -> (i32, i32) {
    %c0_i32 = arith.constant 0 : i32
    %c0_i32_0 = arith.constant 0 : i32
    return %arg0, %c0_i32 : i32, i32
  }
}

module attributes {stable_mosaic.version = 11 : i64} {
  func.func @_fused_matmul_kernel(%arg0: i32, %arg1: memref<64x16xbf16, #tpu.memory_space<vmem>>, %arg2: memref<64x16xbf16, #tpu.memory_space<vmem>>, %arg3: memref<64x16xbf16, #tpu.memory_space<vmem>>, %arg4: memref<64x16xbf16, #tpu.memory_space<vmem>>, %arg5: memref<16x64xbf16, #tpu.memory_space<vmem>>, %arg6: memref<16x64xbf16, #tpu.memory_space<vmem>>, %arg7: memref<1x64xf32, #tpu.memory_space<vmem>>, %arg8: memref<64x64xbf16, #tpu.memory_space<vmem>>, %arg9: memref<64x64xbf16, #tpu.memory_space<vmem>>) attributes {dimension_semantics = [#tpu.dimension_semantics<parallel>], iteration_bounds = array<i64: 2>, scalar_prefetch = 0 : i64, scratch_operands = 0 : i64, tpu.core_type = #tpu.core_type<tc>, window_params = [{transform_indices = @transform_0, window_bounds = array<i64: 64, 16>}, {transform_indices = @transform_1, window_bounds = array<i64: 64, 16>}, {transform_indices = @transform_2, window_bounds = array<i64: 64, 16>}, {transform_indices = @transform_3, window_bounds = array<i64: 64, 16>}, {pipeline_mode = #tpu.pipeline_mode<synchronous>, transform_indices = @transform_4, window_bounds = array<i64: 16, 64>}, {pipeline_mode = #tpu.pipeline_mode<synchronous>, transform_indices = @transform_5, window_bounds = array<i64: 16, 64>}, {pipeline_mode = #tpu.pipeline_mode<synchronous>, transform_indices = @transform_6, window_bounds = array<i64: 1, 64>}, {transform_indices = @transform_7, window_bounds = array<i64: 64, 64>}, {transform_indices = @transform_8, window_bounds = array<i64: 64, 64>}]} {
    %c0 = arith.constant 0 : index
    %c0_0 = arith.constant 0 : index
    %0 = vector.load %arg1[%c0, %c0_0] : memref<64x16xbf16, #tpu.memory_space<vmem>>, vector<64x16xbf16>
    %c0_1 = arith.constant 0 : index
    %c0_2 = arith.constant 0 : index
    %1 = vector.load %arg5[%c0_1, %c0_2] : memref<16x64xbf16, #tpu.memory_space<vmem>>, vector<16x64xbf16>
    %cst = arith.constant dense<0.000000e+00> : vector<64x64xf32>
    %2 = tpu.matmul %0, %1, %cst {dimension_numbers = #tpu.dot_dimension_numbers<[1], [0], [0], [1], [0, 0, 1, 1], [], []>} : vector<64x16xbf16>, vector<16x64xbf16>, vector<64x64xf32> -> vector<64x64xf32>
    %c0_3 = arith.constant 0 : index
    %c0_4 = arith.constant 0 : index
    %3 = vector.load %arg2[%c0_3, %c0_4] : memref<64x16xbf16, #tpu.memory_space<vmem>>, vector<64x16xbf16>
    %c0_5 = arith.constant 0 : index
    %c0_6 = arith.constant 0 : index
    %4 = vector.load %arg3[%c0_5, %c0_6] : memref<64x16xbf16, #tpu.memory_space<vmem>>, vector<64x16xbf16>
    %5 = arith.addf %3, %4 : vector<64x16xbf16>
    %c0_7 = arith.constant 0 : index
    %c0_8 = arith.constant 0 : index
    %6 = vector.load %arg4[%c0_7, %c0_8] : memref<64x16xbf16, #tpu.memory_space<vmem>>, vector<64x16xbf16>
    %7 = arith.addf %5, %6 : vector<64x16xbf16>
    %c0_9 = arith.constant 0 : index
    %c0_10 = arith.constant 0 : index
    %8 = vector.load %arg6[%c0_9, %c0_10] : memref<16x64xbf16, #tpu.memory_space<vmem>>, vector<16x64xbf16>
    %cst_11 = arith.constant dense<0.000000e+00> : vector<64x64xf32>
    %9 = tpu.matmul %7, %8, %cst_11 {dimension_numbers = #tpu.dot_dimension_numbers<[1], [0], [0], [1], [0, 0, 1, 1], [], []>} : vector<64x16xbf16>, vector<16x64xbf16>, vector<64x64xf32> -> vector<64x64xf32>
    %10 = arith.addf %2, %9 : vector<64x64xf32>
    %c0_12 = arith.constant 0 : index
    %c0_13 = arith.constant 0 : index
    %11 = vector.load %arg7[%c0_12, %c0_13] : memref<1x64xf32, #tpu.memory_space<vmem>>, vector<1x64xf32>
    %12 = vector.broadcast %11 : vector<1x64xf32> to vector<64x64xf32>
    %13 = arith.addf %10, %12 : vector<64x64xf32>
    %c0_14 = arith.constant 0 : index
    %c0_15 = arith.constant 0 : index
    %14 = vector.load %arg8[%c0_14, %c0_15] : memref<64x64xbf16, #tpu.memory_space<vmem>>, vector<64x64xbf16>
    %15 = arith.extf %14 : vector<64x64xbf16> to vector<64x64xf32>
    %16 = arith.addf %13, %15 : vector<64x64xf32>
    %cst_16 = arith.constant 0.000000e+00 : f32
    %17 = vector.broadcast %cst_16 : f32 to vector<64x64xf32>
    %18 = arith.maximumf %16, %17 : vector<64x64xf32>
    %19 = arith.truncf %18 : vector<64x64xf32> to vector<64x64xbf16>
    %c0_17 = arith.constant 0 : index
    %c0_18 = arith.constant 0 : index
    %20 = vector.load %arg9[%c0_17, %c0_18] : memref<64x64xbf16, #tpu.memory_space<vmem>>, vector<64x64xbf16>
    tpu.vector_store %arg9[%c0_17, %c0_18], %19 {strides = array<i32>} : memref<64x64xbf16, #tpu.memory_space<vmem>>, vector<64x64xbf16>,
    return
  }
  func.func @transform_0(%arg0: i32) -> (i32, i32) {
    %c0_i32 = arith.constant 0 : i32
    %c0_i32_0 = arith.constant 0 : i32
    return %arg0, %c0_i32 : i32, i32
  }
  func.func @transform_1(%arg0: i32) -> (i32, i32) {
    %c0_i32 = arith.constant 0 : i32
    %c0_i32_0 = arith.constant 0 : i32
    return %arg0, %c0_i32 : i32, i32
  }
  func.func @transform_2(%arg0: i32) -> (i32, i32) {
    %c0_i32 = arith.constant 0 : i32
    %c0_i32_0 = arith.constant 0 : i32
    return %arg0, %c0_i32 : i32, i32
  }
  func.func @transform_3(%arg0: i32) -> (i32, i32) {
    %c0_i32 = arith.constant 0 : i32
    %c0_i32_0 = arith.constant 0 : i32
    return %arg0, %c0_i32 : i32, i32
  }
  func.func @transform_4(%arg0: i32) -> (i32, i32) {
    %c0_i32 = arith.constant 0 : i32
    %c0_i32_0 = arith.constant 0 : i32
    %c0_i32_1 = arith.constant 0 : i32
    return %c0_i32, %c0_i32_0 : i32, i32
  }
  func.func @transform_5(%arg0: i32) -> (i32, i32) {
    %c0_i32 = arith.constant 0 : i32
    %c0_i32_0 = arith.constant 0 : i32
    %c0_i32_1 = arith.constant 0 : i32
    return %c0_i32, %c0_i32_0 : i32, i32
  }
  func.func @transform_6(%arg0: i32) -> (i32, i32) {
    %c0_i32 = arith.constant 0 : i32
    %c0_i32_0 = arith.constant 0 : i32
    %c0_i32_1 = arith.constant 0 : i32
    return %c0_i32, %c0_i32_0 : i32, i32
  }
  func.func @transform_7(%arg0: i32) -> (i32, i32) {
    %c0_i32 = arith.constant 0 : i32
    %c0_i32_0 = arith.constant 0 : i32
    return %arg0, %c0_i32 : i32, i32
  }
  func.func @transform_8(%arg0: i32) -> (i32, i32) {
    %c0_i32 = arith.constant 0 : i32
    %c0_i32_0 = arith.constant 0 : i32
    return %arg0, %c0_i32 : i32, i32
  }
}

</mosaic_0001>

<llo_original>
// kernel: _lambda_.12
$region0: #{_lambda_.12}
  #allocation0 [shape = 'u32[]', space=smem, size = 0x4, offset = 0x4, fixed_abs, tag = 'smem constant byte address 0x4 - core index']
  #allocation1 [shape = 'u32[72,128]{1,0:T(1,128)}', space=vmem, size = 0x9000, scoped, tag = 'internal scratch']
  %s0 = inlined_call_operand.vmem [shape: bf16[128,32], index: 0, kind: input, shape index: {}]
  %s1 = inlined_call_operand.vmem [shape: bf16[32,4], index: 1, kind: input, shape index: {}]
  %s2 = inlined_call_operand.vmem [shape: f32[1,4], index: 2, kind: input, shape index: {}]
  %s3 = inlined_call_operand.vmem [shape: bf16[128,4], index: 3, kind: output, shape index: {}]
  %s4 = sld [smem:[#allocation0]]
  $region45: #{_lambda_.12} parent=0
    _
  %s6 = ssub.s32 1, %s4
  %s7 = scalar_select 0, %s6, %s4
  loop: start=0, step=1, limit=4
  $region2: #{_lambda_.12} parent=0 // loop_pre_header
    _
  $region3: #{_lambda_.12} parent=0 // loop_header
    %s9 = sphi 0, %s13
    %p10 = scmp.ge.s32.totalorder %s9, 4
    %s19 = sphi 0, %s21
    %s22 = sphi 0, %s19
    %s23 = sphi 0, %s22
    %s39 = sphi 0, %s23
    %s43 = sphi 0, %s43
    %s45 = sphi 0, %s43
    %s46 = sphi 0, %s45
    %s60 = sphi 0, %s46
    %s64 = sphi 0, %s64
    %s66 = sphi 0, %s64
    %s67 = sphi 0, %s66
    %s81 = sphi 0, %s67
    %s87 = sphi 0, %s89
    %s90 = sphi 0, %s87
    %s91 = sphi 0, %s90
    %s107 = sphi 0, %s91
  $region4: #{_lambda_.12} parent=0 // loop_header_branch
    %12 = sbr.rel (%p10) target = $region8
  $region5: #{_lambda_.12} parent=0 // loop_body
    %s14 = ssub.s32 %s9, 1
    %s15 = ssub.s32 %s9, 2
    %s16 = sadd.s32 %s9, 1
    %s17 = ssub.s32 %s9, %s16
    %p18 = scmp.eq.s32.totalorder %s17, 0
    %s20 = sadd.s32 %s19, 1
    %s21 = scalar_select %p18, %s19, %s20
    %p24 = pneg %p18
    %p25 = scmp.eq.s32.totalorder %s9, 1
    %p26 = por %p24, %p25
    %p27 = scmp.ne.s32.totalorder %s19, %s22
    %p28 = scmp.eq.s32.totalorder %s9, 0
    %p29 = por %p27, %p28
    %p30 = scmp.ne.s32.totalorder %s19, %s22
    %p31 = scmp.eq.s32.totalorder %s14, 1
    %p32 = por %p30, %p31
    %p33 = scmp.ne.s32.totalorder %s22, %s23
    %p34 = scmp.eq.s32.totalorder %s14, 0
    %p35 = por %p33, %p34
    %p36 = scmp.ne.s32.totalorder %s22, %s23
    %p37 = scmp.eq.s32.totalorder %s15, 1
    %p38 = por %p36, %p37
    %p40 = scmp.ne.s32.totalorder %s23, %s39
    %p41 = scmp.eq.s32.totalorder %s15, 0
    %p42 = por %p40, %p41
    %s44 = sadd.s32 %s43, 1
    %p47 = scmp.eq.s32.totalorder %s9, 1
    %p48 = scmp.ne.s32.totalorder %s43, %s45
    %p49 = scmp.eq.s32.totalorder %s9, 0
    %p50 = por %p48, %p49
    %p51 = scmp.ne.s32.totalorder %s43, %s45
    %p52 = scmp.eq.s32.totalorder %s14, 1
    %p53 = por %p51, %p52
    %p54 = scmp.ne.s32.totalorder %s45, %s46
    %p55 = scmp.eq.s32.totalorder %s14, 0
    %p56 = por %p54, %p55
    %p57 = scmp.ne.s32.totalorder %s45, %s46
    %p58 = scmp.eq.s32.totalorder %s15, 1
    %p59 = por %p57, %p58
    %p61 = scmp.ne.s32.totalorder %s46, %s60
    %p62 = scmp.eq.s32.totalorder %s15, 0
    %p63 = por %p61, %p62
    %s65 = sadd.s32 %s64, 1
    %p68 = scmp.eq.s32.totalorder %s9, 1
    %p69 = scmp.ne.s32.totalorder %s64, %s66
    %p70 = scmp.eq.s32.totalorder %s9, 0
    %p71 = por %p69, %p70
    %p72 = scmp.ne.s32.totalorder %s64, %s66
    %p73 = scmp.eq.s32.totalorder %s14, 1
    %p74 = por %p72, %p73
    %p75 = scmp.ne.s32.totalorder %s66, %s67
    %p76 = scmp.eq.s32.totalorder %s14, 0
    %p77 = por %p75, %p76
    %p78 = scmp.ne.s32.totalorder %s66, %s67
    %p79 = scmp.eq.s32.totalorder %s15, 1
    %p80 = por %p78, %p79
    %p82 = scmp.ne.s32.totalorder %s67, %s81
    %p83 = scmp.eq.s32.totalorder %s15, 0
    %p84 = por %p82, %p83
    %s85 = ssub.s32 %s9, %s16
    %p86 = scmp.eq.s32.totalorder %s85, 0
    %s88 = sadd.s32 %s87, 1
    %s89 = scalar_select %p86, %s87, %s88
    %p92 = pneg %p86
    %p93 = scmp.eq.s32.totalorder %s9, 1
    %p94 = por %p92, %p93
    %p95 = scmp.ne.s32.totalorder %s87, %s90
    %p96 = scmp.eq.s32.totalorder %s9, 0
    %p97 = por %p95, %p96
    %p98 = scmp.ne.s32.totalorder %s87, %s90
    %p99 = scmp.eq.s32.totalorder %s14, 1
    %p100 = por %p98, %p99
    %p101 = scmp.ne.s32.totalorder %s90, %s91
    %p102 = scmp.eq.s32.totalorder %s14, 0
    %p103 = por %p101, %p102
    %p104 = scmp.ne.s32.totalorder %s90, %s91
    %p105 = scmp.eq.s32.totalorder %s15, 1
    %p106 = por %p104, %p105
    %p108 = scmp.ne.s32.totalorder %s91, %s107
    %p109 = scmp.eq.s32.totalorder %s15, 0
    %p110 = por %p108, %p109
    %p111 = scmp.le.s32.totalorder 1, %s9
    %p112 = scmp.lt.s32.totalorder %s9, 3
    %p113 = pnand %p111, %p112
    %p114 = pneg %p113
    // Predicated region
    $region9: #{_lambda_.12} parent=5 // pred_check
      _
    $region10: #{_lambda_.12} parent=5 // pred_check_branch
      %116 = sbr.rel (%p113) target = $region12
    $region11: #{_lambda_.12} parent=5 // pred_region
      %s117 = ssub.s32 %s9, 1
      // Predicated region
      $region13: #{_lambda_.12} parent=11 // pred_check
        %p118 = pneg %p56
      $region14: #{_lambda_.12} parent=11 // pred_check_branch
        %120 = sbr.rel (%p118) target = $region16
      $region15: #{_lambda_.12} parent=11 // pred_region
        _
      $region16: #{_lambda_.12} parent=11 // pred_fallthru
        _
      // Predicated region
      $region17: #{_lambda_.12} parent=11 // pred_check
        %p121 = pneg %p77
      $region18: #{_lambda_.12} parent=11 // pred_check_branch
        %123 = sbr.rel (%p121) target = $region20
      $region19: #{_lambda_.12} parent=11 // pred_region
        _
      $region20: #{_lambda_.12} parent=11 // pred_fallthru
        _
    $region12: #{_lambda_.12} parent=5 // pred_fallthru
      _
    %p124 = scmp.lt.s32.totalorder %s9, 2
    // Predicated region
    $region21: #{_lambda_.12} parent=5 // pred_check
      %p125 = pneg %p124
    $region22: #{_lambda_.12} parent=5 // pred_check_branch
      %127 = sbr.rel (%p125) target = $region24
    $region23: #{_lambda_.12} parent=5 // pred_region
      // Predicated region
      $region25: #{_lambda_.12} parent=23 // pred_check
        %p128 = pneg %p29
      $region26: #{_lambda_.12} parent=23 // pred_check_branch
        %130 = sbr.rel (%p128) target = $region28
      $region27: #{_lambda_.12} parent=23 // pred_region
        %s131 = smul.u32 8, %s9
        %p132 = scmp.lt.s32.totalorder %s131, 15
        %s133 = scalar_select %p132, %s131, 15
        %s134 = smul.addr %s133, 4
        %s135 = scalar_lea.vmem %s0, %s134
        %s136 = smul.u32 8, %s9
      $region28: #{_lambda_.12} parent=23 // pred_fallthru
        _
    $region24: #{_lambda_.12} parent=5 // pred_fallthru
      _
    %p137 = scmp.le.s32.totalorder 1, %s9
    %p138 = scmp.lt.s32.totalorder %s9, 3
    %p139 = pnand %p137, %p138
    %p140 = pneg %p139
    // Predicated region
    $region29: #{_lambda_.12} parent=5 // pred_check
      _
    $region30: #{_lambda_.12} parent=5 // pred_check_branch
      %142 = sbr.rel (%p139) target = $region32
    $region31: #{_lambda_.12} parent=5 // pred_region
      %s143 = ssub.s32 %s9, 1
      %s144 = smul.u32 8, %s14
      %p145 = scmp.lt.s32.totalorder %s144, 15
      %s146 = scalar_select %p145, %s144, 15
      %s147 = smul.addr %s146, 4
      %s148 = scalar_lea.vmem %s0, %s147
      %p149 = pneg %p35
      %p150 = pneg %p32
      %p151 = pneg %p56
      %p152 = pneg %p53
      %p153 = pneg %p77
      %p154 = pneg %p74
      %p155 = pneg %p103
      %p156 = pneg %p100
      %s157 = smul.u32 8, %s14
      %p158 = scmp.lt.s32.totalorder %s157, 15
      %s159 = scalar_select %p158, %s157, 15
      %s160 = smul.addr %s159, 4
      %s161 = scalar_lea.vmem %s3, %s160
      %s162 = smul.u32 8, %s14
      %p163 = scmp.lt.s32.totalorder %s162, 15
      %s164 = scalar_select %p163, %s162, 15
      %s165 = smul.addr %s164, 4
      %s166 = scalar_lea.vmem %s0, %s165
      %s167 = smul.u32 8, %s14
      %s168 = smul.u32 8, %s14
      %p169 = scmp.lt.s32.totalorder %s168, 15
      %s170 = scalar_select %p169, %s168, 15
      %s171 = smul.addr %s170, 4
      %s172 = scalar_lea.vmem %s3, %s171
      %s173 = smul.u32 8, %s14
      %v175 = vld [vmem:[%s166] sm:$0xf]
      %v176 = vld [vmem:[%s166 + $0x4] sm:$0xf]
      %v177 = vld [vmem:[%s166 + $0x8] sm:$0xf]
      %v178 = vld [vmem:[%s166 + $0xc] sm:$0xf]
      %v179 = vld [vmem:[%s166 + $0x10] sm:$0xf]
      %v180 = vld [vmem:[%s166 + $0x14] sm:$0xf]
      %v181 = vld [vmem:[%s166 + $0x18] sm:$0xf]
      %v182 = vld [vmem:[%s166 + $0x1c] sm:$0xf]
      %v183 = vld [vmem:[%s1] sm:$0xf]
      %v184 = vld [vmem:[%s1 + $0x4] sm:$0xf]
      %v185 = vld [vmem:[%s1 + $0x8] sm:$0xf]
      %v186 = vld [vmem:[%s1 + $0xc] sm:$0xf]
      %v187 = vld [vmem:[%s2] sm:$0x1]
      %v189 = vperm.slane %v187, 0
      %v199 = vunpack.c.l.b16 %v175
      %v200 = vunpack.c.l.b16 %v176
      %v201 = vunpack.c.l.b16 %v177
      %v202 = vunpack.c.l.b16 %v178
      %v203 = vunpack.c.l.b16 %v179
      %v204 = vunpack.c.l.b16 %v180
      %v205 = vunpack.c.l.b16 %v181
      %v206 = vunpack.c.l.b16 %v182
      %v207 = vpack.c.b16 %v200, %v199
      %v208 = vpack.c.b16 %v202, %v201
      %v209 = vpack.c.b16 %v204, %v203
      %v210 = vpack.c.b16 %v206, %v205
      %v215 = vunpack.c.l.b16 %v183
      %v216 = vunpack.c.l.b16 %v184
      %v217 = vunpack.c.l.b16 %v185
      %v218 = vunpack.c.l.b16 %v186
      %v219 = vpack.c.b16 %v216, %v215
      %v220 = vpack.c.b16 %v218, %v217
      %vm223 = vcmask 261120
      %v225 = vsel %vm223, %v207, 0
      %v228 = vsel %vm223, %v208, 0
      %v231 = vsel %vm223, %v209, 0
      %v234 = vsel %vm223, %v210, 0
      %236 = vmatpush.bf16.msra.mxu0 0
      %237 = vmatpush.bf16.msra.mxu0 0
      %238 = vmatpush.bf16.msra.mxu0 0
      %239 = vmatpush.bf16.msra.mxu0 0
      %240 = vmatpush.bf16.msra.mxu0 0
      %241 = vmatpush.bf16.msra.mxu0 0
      %242 = vmatpush.bf16.msra.mxu0 %v220
      %243 = vmatpush.bf16.msra.mxu0 %v219
      %244 = vmatmul.bf16.gmra.mxu0 %v225
      %v245 = vpop.f32.mrf.mxu0
      %v246 = vadd.f32 %v189, %v245
      %v247 = vpop.f32.mrf.mxu0
      %v248 = vadd.f32 %v189, %v247
      %249 = vmatmul.bf16.gmra.mxu0 %v228
      %v250 = vpop.f32.mrf.mxu0
      %v251 = vadd.f32 %v189, %v250
      %v252 = vpop.f32.mrf.mxu0
      %v253 = vadd.f32 %v189, %v252
      %254 = vmatmul.bf16.gmra.mxu0 %v231
      %v255 = vpop.f32.mrf.mxu0
      %v256 = vadd.f32 %v189, %v255
      %v257 = vpop.f32.mrf.mxu0
      %v258 = vadd.f32 %v189, %v257
      %259 = vmatmul.bf16.gmra.mxu0 %v234
      %v260 = vpop.f32.mrf.mxu0
      %v261 = vadd.f32 %v189, %v260
      %v262 = vpop.f32.mrf.mxu0
      %v263 = vadd.f32 %v189, %v262
      %264 = vdwg.mxu0
      %v265 = vmax.f32 %v246, 0.0
      %v266 = vmax.f32 %v248, 0.0
      %v267 = vmax.f32 %v251, 0.0
      %v268 = vmax.f32 %v253, 0.0
      %v269 = vmax.f32 %v256, 0.0
      %v270 = vmax.f32 %v258, 0.0
      %v271 = vmax.f32 %v261, 0.0
      %v272 = vmax.f32 %v263, 0.0
      %v273 = vpack.c.bf16 %v265, %v265
      %v274 = vpack.c.bf16 %v266, %v266
      %v275 = vpack.c.bf16 %v267, %v267
      %v276 = vpack.c.bf16 %v268, %v268
      %v277 = vpack.c.bf16 %v269, %v269
      %v278 = vpack.c.bf16 %v270, %v270
      %v279 = vpack.c.bf16 %v271, %v271
      %v280 = vpack.c.bf16 %v272, %v272
      %vm281 = vcmask 27648
      %282 = vst.msk [vmem:[%s172] sm:$0xf] %vm281, %v273
      %283 = vst.msk [vmem:[%s172 + $0x4] sm:$0xf] %vm281, %v274
      %284 = vst.msk [vmem:[%s172 + $0x8] sm:$0xf] %vm281, %v275
      %285 = vst.msk [vmem:[%s172 + $0xc] sm:$0xf] %vm281, %v276
      %286 = vst.msk [vmem:[%s172 + $0x10] sm:$0xf] %vm281, %v277
      %287 = vst.msk [vmem:[%s172 + $0x14] sm:$0xf] %vm281, %v278
      %288 = vst.msk [vmem:[%s172 + $0x18] sm:$0xf] %vm281, %v279
      %289 = vst.msk [vmem:[%s172 + $0x1c] sm:$0xf] %vm281, %v280
      %s290 = smul.u32 8, %s14
      %p291 = scmp.lt.s32.totalorder %s290, 15
      %s292 = scalar_select %p291, %s290, 15
      %s293 = smul.addr %s292, 4
      %s294 = scalar_lea.vmem %s3, %s293
      // Predicated region
      $region33: #{_lambda_.12} parent=31 // pred_check
        %p295 = pneg %p100
      $region34: #{_lambda_.12} parent=31 // pred_check_branch
        %297 = sbr.rel (%p295) target = $region36
      $region35: #{_lambda_.12} parent=31 // pred_region
        %s298 = smul.u32 8, %s14
      $region36: #{_lambda_.12} parent=31 // pred_fallthru
        _
    $region32: #{_lambda_.12} parent=5 // pred_fallthru
      _
    %p299 = scmp.le.s32.totalorder 2, %s9
    // Predicated region
    $region37: #{_lambda_.12} parent=5 // pred_check
      %p300 = pneg %p299
    $region38: #{_lambda_.12} parent=5 // pred_check_branch
      %302 = sbr.rel (%p300) target = $region40
    $region39: #{_lambda_.12} parent=5 // pred_region
      %s303 = ssub.s32 %s9, 2
      // Predicated region
      $region41: #{_lambda_.12} parent=39 // pred_check
        %p304 = pneg %p106
      $region42: #{_lambda_.12} parent=39 // pred_check_branch
        %306 = sbr.rel (%p304) target = $region44
      $region43: #{_lambda_.12} parent=39 // pred_region
        %s307 = smul.u32 8, %s15
        %p308 = scmp.lt.s32.totalorder %s307, 15
        %s309 = scalar_select %p308, %s307, 15
        %s310 = smul.addr %s309, 4
        %s311 = scalar_lea.vmem %s3, %s310
      $region44: #{_lambda_.12} parent=39 // pred_fallthru
        _
    $region40: #{_lambda_.12} parent=5 // pred_fallthru
      _
  $region6: #{_lambda_.12} parent=0 // loop_footer
    %s13 = sadd.s32 1, %s9
  $region7: #{_lambda_.12} parent=0 // loop_footer_branch
    %8 = sbr.rel target = $region3
  $region8: #{_lambda_.12} parent=0 // loop_exit
    _

// kernel: reverse.11
$region0: #{reverse.11}
  %s0 = inlined_call_operand.vmem [shape: f32[2,4,8,3], index: 0, kind: input, shape index: {}]
  %s1 = inlined_call_operand.vmem [shape: f32[2,4,8,3], index: 1, kind: output, shape index: {}]
  $region1: #{reverse.11} parent=0
    #allocation0 [shape = 'u8[65536]{0}', space=vmem, size = 0x10000, scoped, tag = 'operand span for operand 0']
    #allocation1 [shape = 'u8[32768]{0}', space=vmem, size = 0x8000, scoped, tag = 'packed  for operand 0']
    #allocation2 [shape = 'u8[32768]{0}', space=vmem, size = 0x8000, scoped, tag = 'operand span for operand 1']
    #allocation3 [shape = 'u8[16384]{0}', space=vmem, size = 0x4000, scoped, tag = 'packed  for operand 1']
    %s2 = scalar_lea.vmem [#allocation1], 4
    // Predicated region
    $region2: #{reverse.11} parent=1 // pred_check
      _
    $region3: #{reverse.11} parent=1 // pred_check_branch
      %4 = sbr.rel (0) target = $region5
    $region4: #{reverse.11} parent=1 // pred_region
      // Predicated region
      $region6: #{reverse.11} parent=4 // pred_check
        _
      $region7: #{reverse.11} parent=4 // pred_check_branch
        %6 = sbr.rel target = $region9
      $region8: #{reverse.11} parent=4 // pred_region
        // Predicated region
        $region21: #{reverse.11} parent=8 // pred_check
          _
        $region22: #{reverse.11} parent=8 // pred_check_branch
          %36 = sbr.rel (0) target = $region24
        $region23: #{reverse.11} parent=8 // pred_region
          loop: start=0, step=1, limit=1
          $region25: #{reverse.11} parent=23 // loop_pre_header
            _
          $region26: #{reverse.11} parent=23 // loop_header
            %s38 = sphi 0, %s42
            %p39 = scmp.ge.s32.totalorder %s38, 1
            %s43 = sphi %s0, %s0
            %s44 = sphi %s2, %s2
          $region27: #{reverse.11} parent=23 // loop_header_branch
            %41 = sbr.rel (%p39) target = $region31
          $region28: #{reverse.11} parent=23 // loop_body
            _
          $region29: #{reverse.11} parent=23 // loop_footer
            %s42 = sadd.s32 1, %s38
          $region30: #{reverse.11} parent=23 // loop_footer_branch
            %37 = sbr.rel target = $region26
          $region31: #{reverse.11} parent=23 // loop_exit
            _
          %s46 = ssub.s32 16, 1
          loop: start=0, step=1, limit=1
          $region32: #{reverse.11} parent=23 // loop_pre_header
            _
          $region33: #{reverse.11} parent=23 // loop_header
            %s48 = sphi 0, %s52
            %p49 = scmp.ge.s32.totalorder %s48, 1
            %s53 = sphi %s0, %s0
            %s54 = sphi %s2, %s2
          $region34: #{reverse.11} parent=23 // loop_header_branch
            %51 = sbr.rel (%p49) target = $region38
          $region35: #{reverse.11} parent=23 // loop_body
            %v55 = vld [vmem:[%s53] sm:%s46]
            %56 = vst [vmem:[%s54] sm:%s46] %v55
            %v57 = vld [vmem:[%s53 + $0x4] sm:%s46]
            %58 = vst [vmem:[%s54 + $0x8] sm:%s46] %v57
            %v59 = vld [vmem:[%s53 + $0x8] sm:%s46]
            %60 = vst [vmem:[%s54 + $0x10] sm:%s46] %v59
            %v61 = vld [vmem:[%s53 + $0xc] sm:%s46]
            %62 = vst [vmem:[%s54 + $0x18] sm:%s46] %v61
            %v63 = vld [vmem:[%s53 + $0x10] sm:%s46]
            %64 = vst [vmem:[%s54 + $0x20] sm:%s46] %v63
            %v65 = vld [vmem:[%s53 + $0x14] sm:%s46]
            %66 = vst [vmem:[%s54 + $0x28] sm:%s46] %v65
            %v67 = vld [vmem:[%s53 + $0x18] sm:%s46]
            %68 = vst [vmem:[%s54 + $0x30] sm:%s46] %v67
            %v69 = vld [vmem:[%s53 + $0x1c] sm:%s46]
            %70 = vst [vmem:[%s54 + $0x38] sm:%s46] %v69
          $region36: #{reverse.11} parent=23 // loop_footer
            %s52 = sadd.s32 1, %s48
          $region37: #{reverse.11} parent=23 // loop_footer_branch
            %47 = sbr.rel target = $region33
          $region38: #{reverse.11} parent=23 // loop_exit
            _
        $region24: #{reverse.11} parent=8 // pred_fallthru
          _
      $region9: #{reverse.11} parent=4 // pred_fallthru
        _
      // Predicated region
      $region10: #{reverse.11} parent=4 // pred_check
        _
      $region11: #{reverse.11} parent=4 // pred_check_branch
        %8 = sbr.rel (0) target = $region13
      $region12: #{reverse.11} parent=4 // pred_region
        %s10 = ssub.s32 16, 1
        loop: start=0, step=1, limit=1
        $region14: #{reverse.11} parent=12 // loop_pre_header
          _
        $region15: #{reverse.11} parent=12 // loop_header
          %s12 = sphi 0, %s16
          %p13 = scmp.ge.s32.totalorder %s12, 1
          %s17 = sphi %s0, %s0
          %s18 = sphi %s2, %s2
        $region16: #{reverse.11} parent=12 // loop_header_branch
          %15 = sbr.rel (%p13) target = $region20
        $region17: #{reverse.11} parent=12 // loop_body
          %v19 = vld [vmem:[%s17] sm:%s10]
          %20 = vst [vmem:[%s18] sm:%s10] %v19
          %v21 = vld [vmem:[%s17 + $0x4] sm:%s10]
          %22 = vst [vmem:[%s18 + $0x8] sm:%s10] %v21
          %v23 = vld [vmem:[%s17 + $0x8] sm:%s10]
          %24 = vst [vmem:[%s18 + $0x10] sm:%s10] %v23
          %v25 = vld [vmem:[%s17 + $0xc] sm:%s10]
          %26 = vst [vmem:[%s18 + $0x18] sm:%s10] %v25
          %v27 = vld [vmem:[%s17 + $0x10] sm:%s10]
          %28 = vst [vmem:[%s18 + $0x20] sm:%s10] %v27
          %v29 = vld [vmem:[%s17 + $0x14] sm:%s10]
          %30 = vst [vmem:[%s18 + $0x28] sm:%s10] %v29
          %v31 = vld [vmem:[%s17 + $0x18] sm:%s10]
          %32 = vst [vmem:[%s18 + $0x30] sm:%s10] %v31
          %v33 = vld [vmem:[%s17 + $0x1c] sm:%s10]
          %34 = vst [vmem:[%s18 + $0x38] sm:%s10] %v33
        $region18: #{reverse.11} parent=12 // loop_footer
          %s16 = sadd.s32 1, %s12
        $region19: #{reverse.11} parent=12 // loop_footer_branch
          %11 = sbr.rel target = $region15
        $region20: #{reverse.11} parent=12 // loop_exit
          _
      $region13: #{reverse.11} parent=4 // pred_fallthru
        _
    $region5: #{reverse.11} parent=1 // pred_fallthru
      _
    %71 = vnop
    %s73 = ssub.s32 16, 1
    %s74 = scalar_lea.vmem [#allocation1], 60
    %v75 = vld [vmem:[%s74] sm:%s73]
    %s76 = scalar_lea.vmem [#allocation0], 120
    %77 = vst [vmem:[%s76] sm:%s73] %v75
    %s78 = scalar_lea.vmem [#allocation1], 56
    %v79 = vld [vmem:[%s78] sm:%s73]
    %s80 = scalar_lea.vmem [#allocation0], 112
    %81 = vst [vmem:[%s80] sm:%s73] %v79
    %s82 = scalar_lea.vmem [#allocation1], 52
    %v83 = vld [vmem:[%s82] sm:%s73]
    %s84 = scalar_lea.vmem [#allocation0], 104
    %85 = vst [vmem:[%s84] sm:%s73] %v83
    %s86 = scalar_lea.vmem [#allocation1], 48
    %v87 = vld [vmem:[%s86] sm:%s73]
    %s88 = scalar_lea.vmem [#allocation0], 96
    %89 = vst [vmem:[%s88] sm:%s73] %v87
    %s90 = scalar_lea.vmem [#allocation1], 44
    %v91 = vld [vmem:[%s90] sm:%s73]
    %s92 = scalar_lea.vmem [#allocation0], 88
    %93 = vst [vmem:[%s92] sm:%s73] %v91
    %s94 = scalar_lea.vmem [#allocation1], 40
    %v95 = vld [vmem:[%s94] sm:%s73]
    %s96 = scalar_lea.vmem [#allocation0], 80
    %97 = vst [vmem:[%s96] sm:%s73] %v95
    %s98 = scalar_lea.vmem [#allocation1], 36
    %v99 = vld [vmem:[%s98] sm:%s73]
    %s100 = scalar_lea.vmem [#allocation0], 72
    %101 = vst [vmem:[%s100] sm:%s73] %v99
    %s102 = scalar_lea.vmem [#allocation1], 32
    %v103 = vld [vmem:[%s102] sm:%s73]
    %s104 = scalar_lea.vmem [#allocation0], 64
    %105 = vst [vmem:[%s104] sm:%s73] %v103
    %s106 = scalar_lea.vmem [#allocation1], 28
    %v107 = vld [vmem:[%s106] sm:%s73]
    %s108 = scalar_lea.vmem [#allocation0], 56
    %109 = vst [vmem:[%s108] sm:%s73] %v107
    %s110 = scalar_lea.vmem [#allocation1], 24
    %v111 = vld [vmem:[%s110] sm:%s73]
    %s112 = scalar_lea.vmem [#allocation0], 48
    %113 = vst [vmem:[%s112] sm:%s73] %v111
    %s114 = scalar_lea.vmem [#allocation1], 20
    %v115 = vld [vmem:[%s114] sm:%s73]
    %s116 = scalar_lea.vmem [#allocation0], 40
    %117 = vst [vmem:[%s116] sm:%s73] %v115
    %s118 = scalar_lea.vmem [#allocation1], 16
    %v119 = vld [vmem:[%s118] sm:%s73]
    %s120 = scalar_lea.vmem [#allocation0], 32
    %121 = vst [vmem:[%s120] sm:%s73] %v119
    %s122 = scalar_lea.vmem [#allocation1], 12
    %v123 = vld [vmem:[%s122] sm:%s73]
    %s124 = scalar_lea.vmem [#allocation0], 24
    %125 = vst [vmem:[%s124] sm:%s73] %v123
    %s126 = scalar_lea.vmem [#allocation1], 8
    %v127 = vld [vmem:[%s126] sm:%s73]
    %s128 = scalar_lea.vmem [#allocation0], 16
    %129 = vst [vmem:[%s128] sm:%s73] %v127
    %s130 = scalar_lea.vmem [#allocation1], 4
    %v131 = vld [vmem:[%s130] sm:%s73]
    %s132 = scalar_lea.vmem [#allocation0], 8
    %133 = vst [vmem:[%s132] sm:%s73] %v131
    %v134 = vld [vmem:[#allocation1] sm:%s73]
    %135 = vst [vmem:[#allocation0] sm:%s73] %v134
    %s136 = scalar_lea.vmem [#allocation0], 7
    %v137 = vld [vmem:[%s136] ss:$-1 sm:$0xff]
    %v138 = vrot.slane %v137, 5
    %139 = vst [vmem:[#allocation2] sm:$0xff] %v138
    %s140 = scalar_lea.vmem [#allocation0], 8
    %s141 = scalar_lea.vmem %s140, 7 [#allocation0]
    %v142 = vld [vmem:[%s141] ss:$-1 sm:$0xff]
    %v143 = vrot.slane %v142, 5
    %v144 = vlaneseq
    %v145 = vshrl.u32 %v144, 7
    %vm146 = vcmp.lt.s32.totalorder %v145, 3
    %147 = vst.msk [vmem:[#allocation2] sm:$0xff] %vm146, %v143
    %s148 = scalar_lea.vmem [#allocation2], 8
    %s149 = scalar_lea.vmem [#allocation0], 16
    %s150 = scalar_lea.vmem %s149, 7 [#allocation0]
    %v151 = vld [vmem:[%s150] ss:$-1 sm:$0xff]
    %v152 = vrot.slane %v151, 5
    %153 = vst [vmem:[%s148] sm:$0xff] %v152
    %s154 = scalar_lea.vmem %s149, 8 [#allocation0]
    %s155 = scalar_lea.vmem %s154, 7 [#allocation0]
    %v156 = vld [vmem:[%s155] ss:$-1 sm:$0xff]
    %v157 = vrot.slane %v156, 5
    %v158 = vlaneseq
    %v159 = vshrl.u32 %v158, 7
    %vm160 = vcmp.lt.s32.totalorder %v159, 3
    %161 = vst.msk [vmem:[%s148] sm:$0xff] %vm160, %v157
    %s162 = scalar_lea.vmem [#allocation2], 16
    %s163 = scalar_lea.vmem [#allocation0], 32
    %s164 = scalar_lea.vmem %s163, 7 [#allocation0]
    %v165 = vld [vmem:[%s164] ss:$-1 sm:$0xff]
    %v166 = vrot.slane %v165, 5
    %167 = vst [vmem:[%s162] sm:$0xff] %v166
    %s168 = scalar_lea.vmem %s163, 8 [#allocation0]
    %s169 = scalar_lea.vmem %s168, 7 [#allocation0]
    %v170 = vld [vmem:[%s169] ss:$-1 sm:$0xff]
    %v171 = vrot.slane %v170, 5
    %v172 = vlaneseq
    %v173 = vshrl.u32 %v172, 7
    %vm174 = vcmp.lt.s32.totalorder %v173, 3
    %175 = vst.msk [vmem:[%s162] sm:$0xff] %vm174, %v171
    %s176 = scalar_lea.vmem [#allocation2], 24
    %s177 = scalar_lea.vmem [#allocation0], 48
    %s178 = scalar_lea.vmem %s177, 7 [#allocation0]
    %v179 = vld [vmem:[%s178] ss:$-1 sm:$0xff]
    %v180 = vrot.slane %v179, 5
    %181 = vst [vmem:[%s176] sm:$0xff] %v180
    %s182 = scalar_lea.vmem %s177, 8 [#allocation0]
    %s183 = scalar_lea.vmem %s182, 7 [#allocation0]
    %v184 = vld [vmem:[%s183] ss:$-1 sm:$0xff]
    %v185 = vrot.slane %v184, 5
    %v186 = vlaneseq
    %v187 = vshrl.u32 %v186, 7
    %vm188 = vcmp.lt.s32.totalorder %v187, 3
    %189 = vst.msk [vmem:[%s176] sm:$0xff] %vm188, %v185
    %s190 = scalar_lea.vmem [#allocation2], 32
    %s191 = scalar_lea.vmem [#allocation0], 64
    %s192 = scalar_lea.vmem %s191, 7 [#allocation0]
    %v193 = vld [vmem:[%s192] ss:$-1 sm:$0xff]
    %v194 = vrot.slane %v193, 5
    %195 = vst [vmem:[%s190] sm:$0xff] %v194
    %s196 = scalar_lea.vmem %s191, 8 [#allocation0]
    %s197 = scalar_lea.vmem %s196, 7 [#allocation0]
    %v198 = vld [vmem:[%s197] ss:$-1 sm:$0xff]
    %v199 = vrot.slane %v198, 5
    %v200 = vlaneseq
    %v201 = vshrl.u32 %v200, 7
    %vm202 = vcmp.lt.s32.totalorder %v201, 3
    %203 = vst.msk [vmem:[%s190] sm:$0xff] %vm202, %v199
    %s204 = scalar_lea.vmem [#allocation2], 40
    %s205 = scalar_lea.vmem [#allocation0], 80
    %s206 = scalar_lea.vmem %s205, 7 [#allocation0]
    %v207 = vld [vmem:[%s206] ss:$-1 sm:$0xff]
    %v208 = vrot.slane %v207, 5
    %209 = vst [vmem:[%s204] sm:$0xff] %v208
    %s210 = scalar_lea.vmem %s205, 8 [#allocation0]
    %s211 = scalar_lea.vmem %s210, 7 [#allocation0]
    %v212 = vld [vmem:[%s211] ss:$-1 sm:$0xff]
    %v213 = vrot.slane %v212, 5
    %v214 = vlaneseq
    %v215 = vshrl.u32 %v214, 7
    %vm216 = vcmp.lt.s32.totalorder %v215, 3
    %217 = vst.msk [vmem:[%s204] sm:$0xff] %vm216, %v213
    %s218 = scalar_lea.vmem [#allocation2], 48
    %s219 = scalar_lea.vmem [#allocation0], 96
    %s220 = scalar_lea.vmem %s219, 7 [#allocation0]
    %v221 = vld [vmem:[%s220] ss:$-1 sm:$0xff]
    %v222 = vrot.slane %v221, 5
    %223 = vst [vmem:[%s218] sm:$0xff] %v222
    %s224 = scalar_lea.vmem %s219, 8 [#allocation0]
    %s225 = scalar_lea.vmem %s224, 7 [#allocation0]
    %v226 = vld [vmem:[%s225] ss:$-1 sm:$0xff]
    %v227 = vrot.slane %v226, 5
    %v228 = vlaneseq
    %v229 = vshrl.u32 %v228, 7
    %vm230 = vcmp.lt.s32.totalorder %v229, 3
    %231 = vst.msk [vmem:[%s218] sm:$0xff] %vm230, %v227
    %s232 = scalar_lea.vmem [#allocation2], 56
    %s233 = scalar_lea.vmem [#allocation0], 112
    %s234 = scalar_lea.vmem %s233, 7 [#allocation0]
    %v235 = vld [vmem:[%s234] ss:$-1 sm:$0xff]
    %v236 = vrot.slane %v235, 5
    %237 = vst [vmem:[%s232] sm:$0xff] %v236
    %s238 = scalar_lea.vmem %s233, 8 [#allocation0]
    %s239 = scalar_lea.vmem %s238, 7 [#allocation0]
    %v240 = vld [vmem:[%s239] ss:$-1 sm:$0xff]
    %v241 = vrot.slane %v240, 5
    %v242 = vlaneseq
    %v243 = vshrl.u32 %v242, 7
    %vm244 = vcmp.lt.s32.totalorder %v243, 3
    %245 = vst.msk [vmem:[%s232] sm:$0xff] %vm244, %v241
    %s247 = ssub.s32 16, 1
    %v248 = vld [vmem:[#allocation2] sm:%s247]
    %s250 = ssub.s32 16, 1
    %251 = vst [vmem:[#allocation3] sm:%s250] %v248
    %s252 = scalar_lea.vmem [#allocation2], 8
    %v253 = vld [vmem:[%s252] sm:%s247]
    %s255 = ssub.s32 16, 1
    %s256 = scalar_lea.vmem [#allocation3], 4
    %257 = vst [vmem:[%s256] sm:%s255] %v253
    %s258 = scalar_lea.vmem [#allocation2], 16
    %v259 = vld [vmem:[%s258] sm:%s247]
    %s261 = ssub.s32 16, 1
    %s262 = scalar_lea.vmem [#allocation3], 8
    %263 = vst [vmem:[%s262] sm:%s261] %v259
    %s264 = scalar_lea.vmem [#allocation2], 24
    %v265 = vld [vmem:[%s264] sm:%s247]
    %s267 = ssub.s32 16, 1
    %s268 = scalar_lea.vmem [#allocation3], 12
    %269 = vst [vmem:[%s268] sm:%s267] %v265
    %s270 = scalar_lea.vmem [#allocation2], 32
    %v271 = vld [vmem:[%s270] sm:%s247]
    %s273 = ssub.s32 16, 1
    %s274 = scalar_lea.vmem [#allocation3], 16
    %275 = vst [vmem:[%s274] sm:%s273] %v271
    %s276 = scalar_lea.vmem [#allocation2], 40
    %v277 = vld [vmem:[%s276] sm:%s247]
    %s279 = ssub.s32 16, 1
    %s280 = scalar_lea.vmem [#allocation3], 20
    %281 = vst [vmem:[%s280] sm:%s279] %v277
    %s282 = scalar_lea.vmem [#allocation2], 48
    %v283 = vld [vmem:[%s282] sm:%s247]
    %s285 = ssub.s32 16, 1
    %s286 = scalar_lea.vmem [#allocation3], 24
    %287 = vst [vmem:[%s286] sm:%s285] %v283
    %s288 = scalar_lea.vmem [#allocation2], 56
    %v289 = vld [vmem:[%s288] sm:%s247]
    %s291 = ssub.s32 16, 1
    %s292 = scalar_lea.vmem [#allocation3], 28
    %293 = vst [vmem:[%s292] sm:%s291] %v289
    // Predicated region
    $region39: #{reverse.11} parent=1 // pred_check
      _
    $region40: #{reverse.11} parent=1 // pred_check_branch
      %295 = sbr.rel (0) target = $region42
    $region41: #{reverse.11} parent=1 // pred_region
      // Predicated region
      $region43: #{reverse.11} parent=41 // pred_check
        _
      $region44: #{reverse.11} parent=41 // pred_check_branch
        %297 = sbr.rel target = $region46
      $region45: #{reverse.11} parent=41 // pred_region
        // Predicated region
        $region58: #{reverse.11} parent=45 // pred_check
          _
        $region59: #{reverse.11} parent=45 // pred_check_branch
          %327 = sbr.rel (0) target = $region61
        $region60: #{reverse.11} parent=45 // pred_region
          loop: start=0, step=1, limit=1
          $region62: #{reverse.11} parent=60 // loop_pre_header
            _
          $region63: #{reverse.11} parent=60 // loop_header
            %s329 = sphi 0, %s333
            %p330 = scmp.ge.s32.totalorder %s329, 1
            %s334 = sphi [#allocation3], [#allocation3]
            %s335 = sphi %s1, %s1
          $region64: #{reverse.11} parent=60 // loop_header_branch
            %332 = sbr.rel (%p330) target = $region68
          $region65: #{reverse.11} parent=60 // loop_body
            _
          $region66: #{reverse.11} parent=60 // loop_footer
            %s333 = sadd.s32 1, %s329
          $region67: #{reverse.11} parent=60 // loop_footer_branch
            %328 = sbr.rel target = $region63
          $region68: #{reverse.11} parent=60 // loop_exit
            _
          %s337 = ssub.s32 16, 1
          loop: start=0, step=1, limit=1
          $region69: #{reverse.11} parent=60 // loop_pre_header
            _
          $region70: #{reverse.11} parent=60 // loop_header
            %s339 = sphi 0, %s343
            %p340 = scmp.ge.s32.totalorder %s339, 1
            %s344 = sphi [#allocation3], [#allocation3]
            %s345 = sphi %s1, %s1
          $region71: #{reverse.11} parent=60 // loop_header_branch
            %342 = sbr.rel (%p340) target = $region75
          $region72: #{reverse.11} parent=60 // loop_body
            %v346 = vld [vmem:[%s344] sm:%s337]
            %347 = vst [vmem:[%s345] sm:%s337] %v346
            %v348 = vld [vmem:[%s344 + $0x4] sm:%s337]
            %349 = vst [vmem:[%s345 + $0x4] sm:%s337] %v348
            %v350 = vld [vmem:[%s344 + $0x8] sm:%s337]
            %351 = vst [vmem:[%s345 + $0x8] sm:%s337] %v350
            %v352 = vld [vmem:[%s344 + $0xc] sm:%s337]
            %353 = vst [vmem:[%s345 + $0xc] sm:%s337] %v352
            %v354 = vld [vmem:[%s344 + $0x10] sm:%s337]
            %355 = vst [vmem:[%s345 + $0x10] sm:%s337] %v354
            %v356 = vld [vmem:[%s344 + $0x14] sm:%s337]
            %357 = vst [vmem:[%s345 + $0x14] sm:%s337] %v356
            %v358 = vld [vmem:[%s344 + $0x18] sm:%s337]
            %359 = vst [vmem:[%s345 + $0x18] sm:%s337] %v358
            %v360 = vld [vmem:[%s344 + $0x1c] sm:%s337]
            %361 = vst [vmem:[%s345 + $0x1c] sm:%s337] %v360
          $region73: #{reverse.11} parent=60 // loop_footer
            %s343 = sadd.s32 1, %s339
          $region74: #{reverse.11} parent=60 // loop_footer_branch
            %338 = sbr.rel target = $region70
          $region75: #{reverse.11} parent=60 // loop_exit
            _
        $region61: #{reverse.11} parent=45 // pred_fallthru
          _
      $region46: #{reverse.11} parent=41 // pred_fallthru
        _
      // Predicated region
      $region47: #{reverse.11} parent=41 // pred_check
        _
      $region48: #{reverse.11} parent=41 // pred_check_branch
        %299 = sbr.rel (0) target = $region50
      $region49: #{reverse.11} parent=41 // pred_region
        %s301 = ssub.s32 16, 1
        loop: start=0, step=1, limit=1
        $region51: #{reverse.11} parent=49 // loop_pre_header
          _
        $region52: #{reverse.11} parent=49 // loop_header
          %s303 = sphi 0, %s307
          %p304 = scmp.ge.s32.totalorder %s303, 1
          %s308 = sphi [#allocation3], [#allocation3]
          %s309 = sphi %s1, %s1
        $region53: #{reverse.11} parent=49 // loop_header_branch
          %306 = sbr.rel (%p304) target = $region57
        $region54: #{reverse.11} parent=49 // loop_body
          %v310 = vld [vmem:[%s308] sm:%s301]
          %311 = vst [vmem:[%s309] sm:%s301] %v310
          %v312 = vld [vmem:[%s308 + $0x4] sm:%s301]
          %313 = vst [vmem:[%s309 + $0x4] sm:%s301] %v312
          %v314 = vld [vmem:[%s308 + $0x8] sm:%s301]
          %315 = vst [vmem:[%s309 + $0x8] sm:%s301] %v314
          %v316 = vld [vmem:[%s308 + $0xc] sm:%s301]
          %317 = vst [vmem:[%s309 + $0xc] sm:%s301] %v316
          %v318 = vld [vmem:[%s308 + $0x10] sm:%s301]
          %319 = vst [vmem:[%s309 + $0x10] sm:%s301] %v318
          %v320 = vld [vmem:[%s308 + $0x14] sm:%s301]
          %321 = vst [vmem:[%s309 + $0x14] sm:%s301] %v320
          %v322 = vld [vmem:[%s308 + $0x18] sm:%s301]
          %323 = vst [vmem:[%s309 + $0x18] sm:%s301] %v322
          %v324 = vld [vmem:[%s308 + $0x1c] sm:%s301]
          %325 = vst [vmem:[%s309 + $0x1c] sm:%s301] %v324
        $region55: #{reverse.11} parent=49 // loop_footer
          %s307 = sadd.s32 1, %s303
        $region56: #{reverse.11} parent=49 // loop_footer_branch
          %302 = sbr.rel target = $region52
        $region57: #{reverse.11} parent=49 // loop_exit
          _
      $region50: #{reverse.11} parent=41 // pred_fallthru
        _
    $region42: #{reverse.11} parent=1 // pred_fallthru
      _
    %362 = vnop

// kernel: _lambda_.13
$region0: #{_lambda_.13}
  #allocation0 [shape = 'u32[]', space=smem, size = 0x4, offset = 0x4, fixed_abs, tag = 'smem constant byte address 0x4 - core index']
  #allocation1 [shape = 'u32[72,128]{1,0:T(1,128)}', space=vmem, size = 0x9000, scoped, tag = 'internal scratch']
  %s0 = inlined_call_operand.vmem [shape: bf16[80,4], index: 0, kind: input, shape index: {}]
  %s1 = inlined_call_operand.vmem [shape: bf16[80,4], index: 1, kind: input, shape index: {}]
  %s2 = inlined_call_operand.vmem [shape: bf16[4,8], index: 2, kind: input, shape index: {}]
  %s3 = inlined_call_operand.vmem [shape: bf16[4,8], index: 3, kind: input, shape index: {}]
  %s4 = inlined_call_operand.vmem [shape: f32[1,8], index: 4, kind: input, shape index: {}]
  %s5 = inlined_call_operand.vmem [shape: bf16[80,8], index: 5, kind: output, shape index: {}]
  %s6 = sld [smem:[#allocation0]]
  $region30: #{_lambda_.13} parent=0
    _
  %s8 = ssub.s32 1, %s6
  %s9 = scalar_select 0, %s8, %s6
  // Predicated region
  $region2: #{_lambda_.13} parent=0 // pred_check
    _
  $region3: #{_lambda_.13} parent=0 // pred_check_branch
    %11 = sbr.rel (0) target = $region5
  $region4: #{_lambda_.13} parent=0 // pred_region
    _
  $region5: #{_lambda_.13} parent=0 // pred_fallthru
    _
  // Predicated region
  $region6: #{_lambda_.13} parent=0 // pred_check
    _
  $region7: #{_lambda_.13} parent=0 // pred_check_branch
    %13 = sbr.rel (0) target = $region9
  $region8: #{_lambda_.13} parent=0 // pred_region
    _
  $region9: #{_lambda_.13} parent=0 // pred_fallthru
    _
  // Predicated region
  $region10: #{_lambda_.13} parent=0 // pred_check
    _
  $region11: #{_lambda_.13} parent=0 // pred_check_branch
    %15 = sbr.rel (0) target = $region13
  $region12: #{_lambda_.13} parent=0 // pred_region
    _
  $region13: #{_lambda_.13} parent=0 // pred_fallthru
    _
  // Predicated region
  $region14: #{_lambda_.13} parent=0 // pred_check
    _
  $region15: #{_lambda_.13} parent=0 // pred_check_branch
    %17 = sbr.rel (0) target = $region17
  $region16: #{_lambda_.13} parent=0 // pred_region
    _
  $region17: #{_lambda_.13} parent=0 // pred_fallthru
    _
  // Predicated region
  $region18: #{_lambda_.13} parent=0 // pred_check
    _
  $region19: #{_lambda_.13} parent=0 // pred_check_branch
    %19 = sbr.rel (0) target = $region21
  $region20: #{_lambda_.13} parent=0 // pred_region
    _
  $region21: #{_lambda_.13} parent=0 // pred_fallthru
    _
  %v21 = vld [vmem:[%s0] sm:$0xf]
  %v22 = vld [vmem:[%s0 + $0x4] sm:$0xf]
  %v23 = vld [vmem:[%s0 + $0x8] sm:$0xf]
  %v24 = vld [vmem:[%s0 + $0xc] sm:$0xf]
  %v25 = vld [vmem:[%s0 + $0x10] sm:$0xf]
  %v26 = vld [vmem:[%s0 + $0x14] sm:$0xf]
  %v27 = vld [vmem:[%s0 + $0x18] sm:$0xf]
  %v28 = vld [vmem:[%s0 + $0x1c] sm:$0xf]
  %v29 = vld [vmem:[%s0 + $0x20] sm:$0xf]
  %v30 = vld [vmem:[%s0 + $0x24] sm:$0xf]
  %v31 = vld [vmem:[%s2] sm:$0x3]
  %v32 = vld [vmem:[%s1] sm:$0xf]
  %v33 = vld [vmem:[%s1 + $0x4] sm:$0xf]
  %v34 = vld [vmem:[%s1 + $0x8] sm:$0xf]
  %v35 = vld [vmem:[%s1 + $0xc] sm:$0xf]
  %v36 = vld [vmem:[%s1 + $0x10] sm:$0xf]
  %v37 = vld [vmem:[%s1 + $0x14] sm:$0xf]
  %v38 = vld [vmem:[%s1 + $0x18] sm:$0xf]
  %v39 = vld [vmem:[%s1 + $0x1c] sm:$0xf]
  %v40 = vld [vmem:[%s1 + $0x20] sm:$0xf]
  %v41 = vld [vmem:[%s1 + $0x24] sm:$0xf]
  %v42 = vld [vmem:[%s3] sm:$0x3]
  %v53 = vunpack.c.l.b16 %v32
  %v54 = vunpack.c.l.b16 %v33
  %v55 = vunpack.c.l.b16 %v34
  %v56 = vunpack.c.l.b16 %v35
  %v57 = vunpack.c.l.b16 %v36
  %v58 = vunpack.c.l.b16 %v37
  %v59 = vunpack.c.l.b16 %v38
  %v60 = vunpack.c.l.b16 %v39
  %v61 = vunpack.c.l.b16 %v40
  %v62 = vunpack.c.l.b16 %v41
  %v63 = vpack.c.b16 %v54, %v53
  %v64 = vpack.c.b16 %v56, %v55
  %v65 = vpack.c.b16 %v58, %v57
  %v66 = vpack.c.b16 %v60, %v59
  %v67 = vpack.c.b16 %v62, %v61
  %vm68 = vcmask 31744
  %v70 = vsel %vm68, %v63, 0
  %v73 = vsel %vm68, %v64, 0
  %v76 = vsel %vm68, %v65, 0
  %v79 = vsel %vm68, %v66, 0
  %v82 = vsel %vm68, %v67, 0
  %vm84 = vcmask 1041408
  %v86 = vsel %vm84, %v42, 0
  %88 = vmatpush.bf16.msra.mxu0 0
  %89 = vmatpush.bf16.msra.mxu0 0
  %90 = vmatpush.bf16.msra.mxu0 0
  %91 = vmatpush.bf16.msra.mxu0 0
  %92 = vmatpush.bf16.msra.mxu0 0
  %93 = vmatpush.bf16.msra.mxu0 0
  %94 = vmatpush.bf16.msra.mxu0 0
  %95 = vmatpush.bf16.msra.mxu0 %v86
  %96 = vmatmul.bf16.gmra.mxu0 %v70
  %v97 = vpop.f32.mrf.mxu0
  %v98 = vadd.f32 0.0, %v97
  %v99 = vpop.f32.mrf.mxu0
  %v100 = vadd.f32 0.0, %v99
  %101 = vmatmul.bf16.gmra.mxu0 %v73
  %v102 = vpop.f32.mrf.mxu0
  %v103 = vadd.f32 0.0, %v102
  %v104 = vpop.f32.mrf.mxu0
  %v105 = vadd.f32 0.0, %v104
  %106 = vmatmul.bf16.gmra.mxu0 %v76
  %v107 = vpop.f32.mrf.mxu0
  %v108 = vadd.f32 0.0, %v107
  %v109 = vpop.f32.mrf.mxu0
  %v110 = vadd.f32 0.0, %v109
  %111 = vmatmul.bf16.gmra.mxu0 %v79
  %v112 = vpop.f32.mrf.mxu0
  %v113 = vadd.f32 0.0, %v112
  %v114 = vpop.f32.mrf.mxu0
  %v115 = vadd.f32 0.0, %v114
  %116 = vmatmul.bf16.gmra.mxu0 %v82
  %v117 = vpop.f32.mrf.mxu0
  %v118 = vadd.f32 0.0, %v117
  %v119 = vpop.f32.mrf.mxu0
  %v120 = vadd.f32 0.0, %v119
  %121 = vdwg.mxu0
  %v132 = vunpack.c.l.b16 %v21
  %v133 = vunpack.c.l.b16 %v22
  %v134 = vunpack.c.l.b16 %v23
  %v135 = vunpack.c.l.b16 %v24
  %v136 = vunpack.c.l.b16 %v25
  %v137 = vunpack.c.l.b16 %v26
  %v138 = vunpack.c.l.b16 %v27
  %v139 = vunpack.c.l.b16 %v28
  %v140 = vunpack.c.l.b16 %v29
  %v141 = vunpack.c.l.b16 %v30
  %v142 = vpack.c.b16 %v133, %v132
  %v143 = vpack.c.b16 %v135, %v134
  %v144 = vpack.c.b16 %v137, %v136
  %v145 = vpack.c.b16 %v139, %v138
  %v146 = vpack.c.b16 %v141, %v140
  %v148 = vsel %vm68, %v142, 0
  %v151 = vsel %vm68, %v143, 0
  %v154 = vsel %vm68, %v144, 0
  %v157 = vsel %vm68, %v145, 0
  %v160 = vsel %vm68, %v146, 0
  %v163 = vsel %vm84, %v31, 0
  %165 = vmatpush.bf16.msra.mxu0 0
  %166 = vmatpush.bf16.msra.mxu0 0
  %167 = vmatpush.bf16.msra.mxu0 0
  %168 = vmatpush.bf16.msra.mxu0 0
  %169 = vmatpush.bf16.msra.mxu0 0
  %170 = vmatpush.bf16.msra.mxu0 0
  %171 = vmatpush.bf16.msra.mxu0 0
  %172 = vmatpush.bf16.msra.mxu0 %v163
  %173 = vmatmul.bf16.gmra.mxu0 %v148
  %v174 = vpop.f32.mrf.mxu0
  %v175 = vadd.f32 %v98, %v174
  %v176 = vpop.f32.mrf.mxu0
  %v177 = vadd.f32 %v100, %v176
  %178 = vmatmul.bf16.gmra.mxu0 %v151
  %v179 = vpop.f32.mrf.mxu0
  %v180 = vadd.f32 %v103, %v179
  %v181 = vpop.f32.mrf.mxu0
  %v182 = vadd.f32 %v105, %v181
  %183 = vmatmul.bf16.gmra.mxu0 %v154
  %v184 = vpop.f32.mrf.mxu0
  %v185 = vadd.f32 %v108, %v184
  %v186 = vpop.f32.mrf.mxu0
  %v187 = vadd.f32 %v110, %v186
  %188 = vmatmul.bf16.gmra.mxu0 %v157
  %v189 = vpop.f32.mrf.mxu0
  %v190 = vadd.f32 %v113, %v189
  %v191 = vpop.f32.mrf.mxu0
  %v192 = vadd.f32 %v115, %v191
  %193 = vmatmul.bf16.gmra.mxu0 %v160
  %v194 = vpop.f32.mrf.mxu0
  %v195 = vadd.f32 %v118, %v194
  %v196 = vpop.f32.mrf.mxu0
  %v197 = vadd.f32 %v120, %v196
  %198 = vdwg.mxu0
  %v199 = vld [vmem:[%s4] sm:$0x1]
  %v201 = vperm.slane %v199, 0
  %v203 = vadd.f32 %v175, %v201
  %v204 = vadd.f32 %v177, %v201
  %v205 = vadd.f32 %v180, %v201
  %v206 = vadd.f32 %v182, %v201
  %v207 = vadd.f32 %v185, %v201
  %v208 = vadd.f32 %v187, %v201
  %v209 = vadd.f32 %v190, %v201
  %v210 = vadd.f32 %v192, %v201
  %v211 = vadd.f32 %v195, %v201
  %v212 = vadd.f32 %v197, %v201
  %v213 = vmax.f32 %v203, 0.0
  %v214 = vmax.f32 %v204, 0.0
  %v215 = vmax.f32 %v205, 0.0
  %v216 = vmax.f32 %v206, 0.0
  %v217 = vmax.f32 %v207, 0.0
  %v218 = vmax.f32 %v208, 0.0
  %v219 = vmax.f32 %v209, 0.0
  %v220 = vmax.f32 %v210, 0.0
  %v221 = vmax.f32 %v211, 0.0
  %v222 = vmax.f32 %v212, 0.0
  %v223 = vpack.c.bf16 %v213, %v213
  %v224 = vpack.c.bf16 %v214, %v214
  %v225 = vpack.c.bf16 %v215, %v215
  %v226 = vpack.c.bf16 %v216, %v216
  %v227 = vpack.c.bf16 %v217, %v217
  %v228 = vpack.c.bf16 %v218, %v218
  %v229 = vpack.c.bf16 %v219, %v219
  %v230 = vpack.c.bf16 %v220, %v220
  %v231 = vpack.c.bf16 %v221, %v221
  %v232 = vpack.c.bf16 %v222, %v222
  %vm233 = vcmask 60416
  %234 = vst.msk [vmem:[%s5] sm:$0xf] %vm233, %v223
  %235 = vst.msk [vmem:[%s5 + $0x4] sm:$0xf] %vm233, %v224
  %236 = vst.msk [vmem:[%s5 + $0x8] sm:$0xf] %vm233, %v225
  %237 = vst.msk [vmem:[%s5 + $0xc] sm:$0xf] %vm233, %v226
  %238 = vst.msk [vmem:[%s5 + $0x10] sm:$0xf] %vm233, %v227
  %239 = vst.msk [vmem:[%s5 + $0x14] sm:$0xf] %vm233, %v228
  %240 = vst.msk [vmem:[%s5 + $0x18] sm:$0xf] %vm233, %v229
  %241 = vst.msk [vmem:[%s5 + $0x1c] sm:$0xf] %vm233, %v230
  %242 = vst.msk [vmem:[%s5 + $0x20] sm:$0xf] %vm233, %v231
  %243 = vst.msk [vmem:[%s5 + $0x24] sm:$0xf] %vm233, %v232
  // Predicated region
  $region22: #{_lambda_.13} parent=0 // pred_check
    _
  $region23: #{_lambda_.13} parent=0 // pred_check_branch
    %245 = sbr.rel (0) target = $region25
  $region24: #{_lambda_.13} parent=0 // pred_region
    _
  $region25: #{_lambda_.13} parent=0 // pred_fallthru
    _
  // Predicated region
  $region26: #{_lambda_.13} parent=0 // pred_check
    _
  $region27: #{_lambda_.13} parent=0 // pred_check_branch
    %247 = sbr.rel (0) target = $region29
  $region28: #{_lambda_.13} parent=0 // pred_region
    _
  $region29: #{_lambda_.13} parent=0 // pred_fallthru
    _

// kernel: _lambda_.14
$region0: #{_lambda_.14}
  #allocation0 [shape = 'u32[]', space=smem, size = 0x4, offset = 0x4, fixed_abs, tag = 'smem constant byte address 0x4 - core index']
  #allocation1 [shape = 'u32[72,128]{1,0:T(1,128)}', space=vmem, size = 0x9000, scoped, tag = 'internal scratch']
  %s0 = inlined_call_operand.vmem [shape: bf16[24,4], index: 0, kind: input, shape index: {}]
  %s1 = inlined_call_operand.vmem [shape: bf16[24,4], index: 1, kind: input, shape index: {}]
  %s2 = inlined_call_operand.vmem [shape: bf16[4,8], index: 2, kind: input, shape index: {}]
  %s3 = inlined_call_operand.vmem [shape: bf16[4,8], index: 3, kind: input, shape index: {}]
  %s4 = inlined_call_operand.vmem [shape: f32[1,8], index: 4, kind: input, shape index: {}]
  %s5 = inlined_call_operand.vmem [shape: bf16[24,8], index: 5, kind: output, shape index: {}]
  %s6 = sld [smem:[#allocation0]]
  $region30: #{_lambda_.14} parent=0
    _
  %s8 = ssub.s32 1, %s6
  %s9 = scalar_select 0, %s8, %s6
  // Predicated region
  $region2: #{_lambda_.14} parent=0 // pred_check
    _
  $region3: #{_lambda_.14} parent=0 // pred_check_branch
    %11 = sbr.rel (0) target = $region5
  $region4: #{_lambda_.14} parent=0 // pred_region
    _
  $region5: #{_lambda_.14} parent=0 // pred_fallthru
    _
  // Predicated region
  $region6: #{_lambda_.14} parent=0 // pred_check
    _
  $region7: #{_lambda_.14} parent=0 // pred_check_branch
    %13 = sbr.rel (0) target = $region9
  $region8: #{_lambda_.14} parent=0 // pred_region
    _
  $region9: #{_lambda_.14} parent=0 // pred_fallthru
    _
  // Predicated region
  $region10: #{_lambda_.14} parent=0 // pred_check
    _
  $region11: #{_lambda_.14} parent=0 // pred_check_branch
    %15 = sbr.rel (0) target = $region13
  $region12: #{_lambda_.14} parent=0 // pred_region
    _
  $region13: #{_lambda_.14} parent=0 // pred_fallthru
    _
  // Predicated region
  $region14: #{_lambda_.14} parent=0 // pred_check
    _
  $region15: #{_lambda_.14} parent=0 // pred_check_branch
    %17 = sbr.rel (0) target = $region17
  $region16: #{_lambda_.14} parent=0 // pred_region
    _
  $region17: #{_lambda_.14} parent=0 // pred_fallthru
    _
  // Predicated region
  $region18: #{_lambda_.14} parent=0 // pred_check
    _
  $region19: #{_lambda_.14} parent=0 // pred_check_branch
    %19 = sbr.rel (0) target = $region21
  $region20: #{_lambda_.14} parent=0 // pred_region
    _
  $region21: #{_lambda_.14} parent=0 // pred_fallthru
    _
  %v21 = vld [vmem:[%s0] sm:$0xf]
  %v22 = vld [vmem:[%s0 + $0x4] sm:$0xf]
  %v23 = vld [vmem:[%s0 + $0x8] sm:$0xf]
  %v24 = vld [vmem:[%s2] sm:$0x3]
  %v25 = vld [vmem:[%s1] sm:$0xf]
  %v26 = vld [vmem:[%s1 + $0x4] sm:$0xf]
  %v27 = vld [vmem:[%s1 + $0x8] sm:$0xf]
  %v28 = vld [vmem:[%s3] sm:$0x3]
  %v32 = vunpack.c.l.b16 %v25
  %v33 = vunpack.c.l.b16 %v26
  %v34 = vunpack.c.l.b16 %v27
  %v35 = vpack.c.b16 %v33, %v32
  %v36 = vpack.c.b16 %v34, %v34
  %vm37 = vcmask 31744
  %v39 = vsel %vm37, %v35, 0
  %v42 = vsel %vm37, %v36, 0
  %vm44 = vcmask 1041408
  %v46 = vsel %vm44, %v28, 0
  %48 = vmatpush.bf16.msra.mxu0 0
  %49 = vmatpush.bf16.msra.mxu0 0
  %50 = vmatpush.bf16.msra.mxu0 0
  %51 = vmatpush.bf16.msra.mxu0 0
  %52 = vmatpush.bf16.msra.mxu0 0
  %53 = vmatpush.bf16.msra.mxu0 0
  %54 = vmatpush.bf16.msra.mxu0 0
  %55 = vmatpush.bf16.msra.mxu0 %v46
  %56 = vmatmul.bf16.gmra.mxu0 %v39
  %v57 = vpop.f32.mrf.mxu0
  %v58 = vadd.f32 0.0, %v57
  %v59 = vpop.f32.mrf.mxu0
  %v60 = vadd.f32 0.0, %v59
  %61 = vmatmul.bf16.gmra.mxu0 %v42
  %v62 = vpop.f32.mrf.mxu0
  %v63 = vadd.f32 0.0, %v62
  %v64 = vpop.f32.mrf.mxu0
  %65 = vdwg.mxu0
  %v69 = vunpack.c.l.b16 %v21
  %v70 = vunpack.c.l.b16 %v22
  %v71 = vunpack.c.l.b16 %v23
  %v72 = vpack.c.b16 %v70, %v69
  %v73 = vpack.c.b16 %v71, %v71
  %v75 = vsel %vm37, %v72, 0
  %v78 = vsel %vm37, %v73, 0
  %v81 = vsel %vm44, %v24, 0
  %83 = vmatpush.bf16.msra.mxu0 0
  %84 = vmatpush.bf16.msra.mxu0 0
  %85 = vmatpush.bf16.msra.mxu0 0
  %86 = vmatpush.bf16.msra.mxu0 0
  %87 = vmatpush.bf16.msra.mxu0 0
  %88 = vmatpush.bf16.msra.mxu0 0
  %89 = vmatpush.bf16.msra.mxu0 0
  %90 = vmatpush.bf16.msra.mxu0 %v81
  %91 = vmatmul.bf16.gmra.mxu0 %v75
  %v92 = vpop.f32.mrf.mxu0
  %v93 = vadd.f32 %v58, %v92
  %v94 = vpop.f32.mrf.mxu0
  %v95 = vadd.f32 %v60, %v94
  %96 = vmatmul.bf16.gmra.mxu0 %v78
  %v97 = vpop.f32.mrf.mxu0
  %v98 = vadd.f32 %v63, %v97
  %v99 = vpop.f32.mrf.mxu0
  %100 = vdwg.mxu0
  %v101 = vld [vmem:[%s4] sm:$0x1]
  %v103 = vperm.slane %v101, 0
  %v105 = vadd.f32 %v93, %v103
  %v106 = vadd.f32 %v95, %v103
  %v107 = vadd.f32 %v98, %v103
  %v108 = vmax.f32 %v105, 0.0
  %v109 = vmax.f32 %v106, 0.0
  %v110 = vmax.f32 %v107, 0.0
  %v111 = vpack.c.bf16 %v108, %v108
  %v112 = vpack.c.bf16 %v109, %v109
  %v113 = vpack.c.bf16 %v110, %v110
  %vm114 = vcmask 60416
  %115 = vst.msk [vmem:[%s5] sm:$0xf] %vm114, %v111
  %116 = vst.msk [vmem:[%s5 + $0x4] sm:$0xf] %vm114, %v112
  %117 = vst.msk [vmem:[%s5 + $0x8] sm:$0xf] %vm114, %v113
  // Predicated region
  $region22: #{_lambda_.14} parent=0 // pred_check
    _
  $region23: #{_lambda_.14} parent=0 // pred_check_branch
    %119 = sbr.rel (0) target = $region25
  $region24: #{_lambda_.14} parent=0 // pred_region
    _
  $region25: #{_lambda_.14} parent=0 // pred_fallthru
    _
  // Predicated region
  $region26: #{_lambda_.14} parent=0 // pred_check
    _
  $region27: #{_lambda_.14} parent=0 // pred_check_branch
    %121 = sbr.rel (0) target = $region29
  $region28: #{_lambda_.14} parent=0 // pred_region
    _
  $region29: #{_lambda_.14} parent=0 // pred_fallthru
    _

// kernel: _lambda_.15
$region0: #{_lambda_.15}
  #allocation0 [shape = 'u32[]', space=smem, size = 0x4, offset = 0x4, fixed_abs, tag = 'smem constant byte address 0x4 - core index']
  #allocation1 [shape = 'u32[72,128]{1,0:T(1,128)}', space=vmem, size = 0x9000, scoped, tag = 'internal scratch']
  %s0 = inlined_call_operand.vmem [shape: bf16[128,64], index: 0, kind: input, shape index: {}]
  %s1 = inlined_call_operand.vmem [shape: bf16[128,4], index: 1, kind: input, shape index: {}]
  %s2 = inlined_call_operand.vmem [shape: bf16[128,4], index: 2, kind: input, shape index: {}]
  %s3 = inlined_call_operand.vmem [shape: bf16[128,4], index: 3, kind: input, shape index: {}]
  %s4 = inlined_call_operand.vmem [shape: bf16[64,16], index: 4, kind: input, shape index: {}]
  %s5 = inlined_call_operand.vmem [shape: bf16[4,16], index: 5, kind: input, shape index: {}]
  %s6 = inlined_call_operand.vmem [shape: f32[1,16], index: 6, kind: input, shape index: {}]
  %s7 = inlined_call_operand.vmem [shape: bf16[128,16], index: 7, kind: output, shape index: {}]
  %s8 = sld [smem:[#allocation0]]
  $region61: #{_lambda_.15} parent=0
    _
  %s10 = ssub.s32 1, %s8
  %s11 = scalar_select 0, %s10, %s8
  loop: start=0, step=1, limit=4
  $region2: #{_lambda_.15} parent=0 // loop_pre_header
    _
  $region3: #{_lambda_.15} parent=0 // loop_header
    %s13 = sphi 0, %s17
    %p14 = scmp.ge.s32.totalorder %s13, 4
    %s23 = sphi 0, %s25
    %s26 = sphi 0, %s23
    %s27 = sphi 0, %s26
    %s43 = sphi 0, %s27
    %s49 = sphi 0, %s51
    %s52 = sphi 0, %s49
    %s53 = sphi 0, %s52
    %s69 = sphi 0, %s53
    %s75 = sphi 0, %s77
    %s78 = sphi 0, %s75
    %s79 = sphi 0, %s78
    %s95 = sphi 0, %s79
    %s101 = sphi 0, %s103
    %s104 = sphi 0, %s101
    %s105 = sphi 0, %s104
    %s121 = sphi 0, %s105
    %s125 = sphi 0, %s125
    %s127 = sphi 0, %s125
    %s128 = sphi 0, %s127
    %s142 = sphi 0, %s128
    %s146 = sphi 0, %s146
    %s148 = sphi 0, %s146
    %s149 = sphi 0, %s148
    %s163 = sphi 0, %s149
    %s167 = sphi 0, %s167
    %s169 = sphi 0, %s167
    %s170 = sphi 0, %s169
    %s184 = sphi 0, %s170
    %s190 = sphi 0, %s192
    %s193 = sphi 0, %s190
    %s194 = sphi 0, %s193
    %s210 = sphi 0, %s194
  $region4: #{_lambda_.15} parent=0 // loop_header_branch
    %16 = sbr.rel (%p14) target = $region8
  $region5: #{_lambda_.15} parent=0 // loop_body
    %s18 = ssub.s32 %s13, 1
    %s19 = ssub.s32 %s13, 2
    %s20 = sadd.s32 %s13, 1
    %s21 = ssub.s32 %s13, %s20
    %p22 = scmp.eq.s32.totalorder %s21, 0
    %s24 = sadd.s32 %s23, 1
    %s25 = scalar_select %p22, %s23, %s24
    %p28 = pneg %p22
    %p29 = scmp.eq.s32.totalorder %s13, 1
    %p30 = por %p28, %p29
    %p31 = scmp.ne.s32.totalorder %s23, %s26
    %p32 = scmp.eq.s32.totalorder %s13, 0
    %p33 = por %p31, %p32
    %p34 = scmp.ne.s32.totalorder %s23, %s26
    %p35 = scmp.eq.s32.totalorder %s18, 1
    %p36 = por %p34, %p35
    %p37 = scmp.ne.s32.totalorder %s26, %s27
    %p38 = scmp.eq.s32.totalorder %s18, 0
    %p39 = por %p37, %p38
    %p40 = scmp.ne.s32.totalorder %s26, %s27
    %p41 = scmp.eq.s32.totalorder %s19, 1
    %p42 = por %p40, %p41
    %p44 = scmp.ne.s32.totalorder %s27, %s43
    %p45 = scmp.eq.s32.totalorder %s19, 0
    %p46 = por %p44, %p45
    %s47 = ssub.s32 %s13, %s20
    %p48 = scmp.eq.s32.totalorder %s47, 0
    %s50 = sadd.s32 %s49, 1
    %s51 = scalar_select %p48, %s49, %s50
    %p54 = pneg %p48
    %p55 = scmp.eq.s32.totalorder %s13, 1
    %p56 = por %p54, %p55
    %p57 = scmp.ne.s32.totalorder %s49, %s52
    %p58 = scmp.eq.s32.totalorder %s13, 0
    %p59 = por %p57, %p58
    %p60 = scmp.ne.s32.totalorder %s49, %s52
    %p61 = scmp.eq.s32.totalorder %s18, 1
    %p62 = por %p60, %p61
    %p63 = scmp.ne.s32.totalorder %s52, %s53
    %p64 = scmp.eq.s32.totalorder %s18, 0
    %p65 = por %p63, %p64
    %p66 = scmp.ne.s32.totalorder %s52, %s53
    %p67 = scmp.eq.s32.totalorder %s19, 1
    %p68 = por %p66, %p67
    %p70 = scmp.ne.s32.totalorder %s53, %s69
    %p71 = scmp.eq.s32.totalorder %s19, 0
    %p72 = por %p70, %p71
    %s73 = ssub.s32 %s13, %s20
    %p74 = scmp.eq.s32.totalorder %s73, 0
    %s76 = sadd.s32 %s75, 1
    %s77 = scalar_select %p74, %s75, %s76
    %p80 = pneg %p74
    %p81 = scmp.eq.s32.totalorder %s13, 1
    %p82 = por %p80, %p81
    %p83 = scmp.ne.s32.totalorder %s75, %s78
    %p84 = scmp.eq.s32.totalorder %s13, 0
    %p85 = por %p83, %p84
    %p86 = scmp.ne.s32.totalorder %s75, %s78
    %p87 = scmp.eq.s32.totalorder %s18, 1
    %p88 = por %p86, %p87
    %p89 = scmp.ne.s32.totalorder %s78, %s79
    %p90 = scmp.eq.s32.totalorder %s18, 0
    %p91 = por %p89, %p90
    %p92 = scmp.ne.s32.totalorder %s78, %s79
    %p93 = scmp.eq.s32.totalorder %s19, 1
    %p94 = por %p92, %p93
    %p96 = scmp.ne.s32.totalorder %s79, %s95
    %p97 = scmp.eq.s32.totalorder %s19, 0
    %p98 = por %p96, %p97
    %s99 = ssub.s32 %s13, %s20
    %p100 = scmp.eq.s32.totalorder %s99, 0
    %s102 = sadd.s32 %s101, 1
    %s103 = scalar_select %p100, %s101, %s102
    %p106 = pneg %p100
    %p107 = scmp.eq.s32.totalorder %s13, 1
    %p108 = por %p106, %p107
    %p109 = scmp.ne.s32.totalorder %s101, %s104
    %p110 = scmp.eq.s32.totalorder %s13, 0
    %p111 = por %p109, %p110
    %p112 = scmp.ne.s32.totalorder %s101, %s104
    %p113 = scmp.eq.s32.totalorder %s18, 1
    %p114 = por %p112, %p113
    %p115 = scmp.ne.s32.totalorder %s104, %s105
    %p116 = scmp.eq.s32.totalorder %s18, 0
    %p117 = por %p115, %p116
    %p118 = scmp.ne.s32.totalorder %s104, %s105
    %p119 = scmp.eq.s32.totalorder %s19, 1
    %p120 = por %p118, %p119
    %p122 = scmp.ne.s32.totalorder %s105, %s121
    %p123 = scmp.eq.s32.totalorder %s19, 0
    %p124 = por %p122, %p123
    %s126 = sadd.s32 %s125, 1
    %p129 = scmp.eq.s32.totalorder %s13, 1
    %p130 = scmp.ne.s32.totalorder %s125, %s127
    %p131 = scmp.eq.s32.totalorder %s13, 0
    %p132 = por %p130, %p131
    %p133 = scmp.ne.s32.totalorder %s125, %s127
    %p134 = scmp.eq.s32.totalorder %s18, 1
    %p135 = por %p133, %p134
    %p136 = scmp.ne.s32.totalorder %s127, %s128
    %p137 = scmp.eq.s32.totalorder %s18, 0
    %p138 = por %p136, %p137
    %p139 = scmp.ne.s32.totalorder %s127, %s128
    %p140 = scmp.eq.s32.totalorder %s19, 1
    %p141 = por %p139, %p140
    %p143 = scmp.ne.s32.totalorder %s128, %s142
    %p144 = scmp.eq.s32.totalorder %s19, 0
    %p145 = por %p143, %p144
    %s147 = sadd.s32 %s146, 1
    %p150 = scmp.eq.s32.totalorder %s13, 1
    %p151 = scmp.ne.s32.totalorder %s146, %s148
    %p152 = scmp.eq.s32.totalorder %s13, 0
    %p153 = por %p151, %p152
    %p154 = scmp.ne.s32.totalorder %s146, %s148
    %p155 = scmp.eq.s32.totalorder %s18, 1
    %p156 = por %p154, %p155
    %p157 = scmp.ne.s32.totalorder %s148, %s149
    %p158 = scmp.eq.s32.totalorder %s18, 0
    %p159 = por %p157, %p158
    %p160 = scmp.ne.s32.totalorder %s148, %s149
    %p161 = scmp.eq.s32.totalorder %s19, 1
    %p162 = por %p160, %p161
    %p164 = scmp.ne.s32.totalorder %s149, %s163
    %p165 = scmp.eq.s32.totalorder %s19, 0
    %p166 = por %p164, %p165
    %s168 = sadd.s32 %s167, 1
    %p171 = scmp.eq.s32.totalorder %s13, 1
    %p172 = scmp.ne.s32.totalorder %s167, %s169
    %p173 = scmp.eq.s32.totalorder %s13, 0
    %p174 = por %p172, %p173
    %p175 = scmp.ne.s32.totalorder %s167, %s169
    %p176 = scmp.eq.s32.totalorder %s18, 1
    %p177 = por %p175, %p176
    %p178 = scmp.ne.s32.totalorder %s169, %s170
    %p179 = scmp.eq.s32.totalorder %s18, 0
    %p180 = por %p178, %p179
    %p181 = scmp.ne.s32.totalorder %s169, %s170
    %p182 = scmp.eq.s32.totalorder %s19, 1
    %p183 = por %p181, %p182
    %p185 = scmp.ne.s32.totalorder %s170, %s184
    %p186 = scmp.eq.s32.totalorder %s19, 0
    %p187 = por %p185, %p186
    %s188 = ssub.s32 %s13, %s20
    %p189 = scmp.eq.s32.totalorder %s188, 0
    %s191 = sadd.s32 %s190, 1
    %s192 = scalar_select %p189, %s190, %s191
    %p195 = pneg %p189
    %p196 = scmp.eq.s32.totalorder %s13, 1
    %p197 = por %p195, %p196
    %p198 = scmp.ne.s32.totalorder %s190, %s193
    %p199 = scmp.eq.s32.totalorder %s13, 0
    %p200 = por %p198, %p199
    %p201 = scmp.ne.s32.totalorder %s190, %s193
    %p202 = scmp.eq.s32.totalorder %s18, 1
    %p203 = por %p201, %p202
    %p204 = scmp.ne.s32.totalorder %s193, %s194
    %p205 = scmp.eq.s32.totalorder %s18, 0
    %p206 = por %p204, %p205
    %p207 = scmp.ne.s32.totalorder %s193, %s194
    %p208 = scmp.eq.s32.totalorder %s19, 1
    %p209 = por %p207, %p208
    %p211 = scmp.ne.s32.totalorder %s194, %s210
    %p212 = scmp.eq.s32.totalorder %s19, 0
    %p213 = por %p211, %p212
    %p214 = scmp.le.s32.totalorder 1, %s13
    %p215 = scmp.lt.s32.totalorder %s13, 3
    %p216 = pnand %p214, %p215
    %p217 = pneg %p216
    // Predicated region
    $region9: #{_lambda_.15} parent=5 // pred_check
      _
    $region10: #{_lambda_.15} parent=5 // pred_check_branch
      %219 = sbr.rel (%p216) target = $region12
    $region11: #{_lambda_.15} parent=5 // pred_region
      %s220 = ssub.s32 %s13, 1
      // Predicated region
      $region13: #{_lambda_.15} parent=11 // pred_check
        %p221 = pneg %p138
      $region14: #{_lambda_.15} parent=11 // pred_check_branch
        %223 = sbr.rel (%p221) target = $region16
      $region15: #{_lambda_.15} parent=11 // pred_region
        _
      $region16: #{_lambda_.15} parent=11 // pred_fallthru
        _
      // Predicated region
      $region17: #{_lambda_.15} parent=11 // pred_check
        %p224 = pneg %p159
      $region18: #{_lambda_.15} parent=11 // pred_check_branch
        %226 = sbr.rel (%p224) target = $region20
      $region19: #{_lambda_.15} parent=11 // pred_region
        _
      $region20: #{_lambda_.15} parent=11 // pred_fallthru
        _
      // Predicated region
      $region21: #{_lambda_.15} parent=11 // pred_check
        %p227 = pneg %p180
      $region22: #{_lambda_.15} parent=11 // pred_check_branch
        %229 = sbr.rel (%p227) target = $region24
      $region23: #{_lambda_.15} parent=11 // pred_region
        _
      $region24: #{_lambda_.15} parent=11 // pred_fallthru
        _
    $region12: #{_lambda_.15} parent=5 // pred_fallthru
      _
    %p230 = scmp.lt.s32.totalorder %s13, 2
    // Predicated region
    $region25: #{_lambda_.15} parent=5 // pred_check
      %p231 = pneg %p230
    $region26: #{_lambda_.15} parent=5 // pred_check_branch
      %233 = sbr.rel (%p231) target = $region28
    $region27: #{_lambda_.15} parent=5 // pred_region
      // Predicated region
      $region29: #{_lambda_.15} parent=27 // pred_check
        %p234 = pneg %p33
      $region30: #{_lambda_.15} parent=27 // pred_check_branch
        %236 = sbr.rel (%p234) target = $region32
      $region31: #{_lambda_.15} parent=27 // pred_region
        %s237 = smul.u32 8, %s13
        %p238 = scmp.lt.s32.totalorder %s237, 15
        %s239 = scalar_select %p238, %s237, 15
        %s240 = smul.addr %s239, 4
        %s241 = scalar_lea.vmem %s0, %s240
        %s242 = smul.u32 8, %s13
      $region32: #{_lambda_.15} parent=27 // pred_fallthru
        _
      // Predicated region
      $region33: #{_lambda_.15} parent=27 // pred_check
        %p243 = pneg %p59
      $region34: #{_lambda_.15} parent=27 // pred_check_branch
        %245 = sbr.rel (%p243) target = $region36
      $region35: #{_lambda_.15} parent=27 // pred_region
        %s246 = smul.u32 8, %s13
        %p247 = scmp.lt.s32.totalorder %s246, 15
        %s248 = scalar_select %p247, %s246, 15
        %s249 = smul.addr %s248, 4
        %s250 = scalar_lea.vmem %s1, %s249
        %s251 = smul.u32 8, %s13
      $region36: #{_lambda_.15} parent=27 // pred_fallthru
        _
      // Predicated region
      $region37: #{_lambda_.15} parent=27 // pred_check
        %p252 = pneg %p85
      $region38: #{_lambda_.15} parent=27 // pred_check_branch
        %254 = sbr.rel (%p252) target = $region40
      $region39: #{_lambda_.15} parent=27 // pred_region
        %s255 = smul.u32 8, %s13
        %p256 = scmp.lt.s32.totalorder %s255, 15
        %s257 = scalar_select %p256, %s255, 15
        %s258 = smul.addr %s257, 4
        %s259 = scalar_lea.vmem %s2, %s258
        %s260 = smul.u32 8, %s13
      $region40: #{_lambda_.15} parent=27 // pred_fallthru
        _
      // Predicated region
      $region41: #{_lambda_.15} parent=27 // pred_check
        %p261 = pneg %p111
      $region42: #{_lambda_.15} parent=27 // pred_check_branch
        %263 = sbr.rel (%p261) target = $region44
      $region43: #{_lambda_.15} parent=27 // pred_region
        %s264 = smul.u32 8, %s13
        %p265 = scmp.lt.s32.totalorder %s264, 15
        %s266 = scalar_select %p265, %s264, 15
        %s267 = smul.addr %s266, 4
        %s268 = scalar_lea.vmem %s3, %s267
        %s269 = smul.u32 8, %s13
      $region44: #{_lambda_.15} parent=27 // pred_fallthru
        _
    $region28: #{_lambda_.15} parent=5 // pred_fallthru
      _
    %p270 = scmp.le.s32.totalorder 1, %s13
    %p271 = scmp.lt.s32.totalorder %s13, 3
    %p272 = pnand %p270, %p271
    %p273 = pneg %p272
    // Predicated region
    $region45: #{_lambda_.15} parent=5 // pred_check
      _
    $region46: #{_lambda_.15} parent=5 // pred_check_branch
      %275 = sbr.rel (%p272) target = $region48
    $region47: #{_lambda_.15} parent=5 // pred_region
      %s276 = ssub.s32 %s13, 1
      %s277 = smul.u32 8, %s18
      %p278 = scmp.lt.s32.totalorder %s277, 15
      %s279 = scalar_select %p278, %s277, 15
      %s280 = smul.addr %s279, 4
      %s281 = scalar_lea.vmem %s0, %s280
      %p282 = pneg %p39
      %p283 = pneg %p36
      %s284 = smul.u32 8, %s18
      %p285 = scmp.lt.s32.totalorder %s284, 15
      %s286 = scalar_select %p285, %s284, 15
      %s287 = smul.addr %s286, 4
      %s288 = scalar_lea.vmem %s1, %s287
      %p289 = pneg %p65
      %p290 = pneg %p62
      %s291 = smul.u32 8, %s18
      %p292 = scmp.lt.s32.totalorder %s291, 15
      %s293 = scalar_select %p292, %s291, 15
      %s294 = smul.addr %s293, 4
      %s295 = scalar_lea.vmem %s2, %s294
      %p296 = pneg %p91
      %p297 = pneg %p88
      %s298 = smul.u32 8, %s18
      %p299 = scmp.lt.s32.totalorder %s298, 15
      %s300 = scalar_select %p299, %s298, 15
      %s301 = smul.addr %s300, 4
      %s302 = scalar_lea.vmem %s3, %s301
      %p303 = pneg %p117
      %p304 = pneg %p114
      %p305 = pneg %p138
      %p306 = pneg %p135
      %p307 = pneg %p159
      %p308 = pneg %p156
      %p309 = pneg %p180
      %p310 = pneg %p177
      %p311 = pneg %p206
      %p312 = pneg %p203
      %s313 = smul.u32 8, %s18
      %p314 = scmp.lt.s32.totalorder %s313, 15
      %s315 = scalar_select %p314, %s313, 15
      %s316 = smul.addr %s315, 4
      %s317 = scalar_lea.vmem %s7, %s316
      %s318 = smul.u32 8, %s18
      %p319 = scmp.lt.s32.totalorder %s318, 15
      %s320 = scalar_select %p319, %s318, 15
      %s321 = smul.addr %s320, 4
      %s322 = scalar_lea.vmem %s0, %s321
      %s323 = smul.u32 8, %s18
      %s324 = smul.u32 8, %s18
      %p325 = scmp.lt.s32.totalorder %s324, 15
      %s326 = scalar_select %p325, %s324, 15
      %s327 = smul.addr %s326, 4
      %s328 = scalar_lea.vmem %s1, %s327
      %s329 = smul.u32 8, %s18
      %s330 = smul.u32 8, %s18
      %p331 = scmp.lt.s32.totalorder %s330, 15
      %s332 = scalar_select %p331, %s330, 15
      %s333 = smul.addr %s332, 4
      %s334 = scalar_lea.vmem %s2, %s333
      %s335 = smul.u32 8, %s18
      %s336 = smul.u32 8, %s18
      %p337 = scmp.lt.s32.totalorder %s336, 15
      %s338 = scalar_select %p337, %s336, 15
      %s339 = smul.addr %s338, 4
      %s340 = scalar_lea.vmem %s3, %s339
      %s341 = smul.u32 8, %s18
      %s342 = smul.u32 8, %s18
      %p343 = scmp.lt.s32.totalorder %s342, 15
      %s344 = scalar_select %p343, %s342, 15
      %s345 = smul.addr %s344, 4
      %s346 = scalar_lea.vmem %s7, %s345
      %s347 = smul.u32 8, %s18
      %v349 = vld [vmem:[%s322] sm:$0xf]
      %v350 = vld [vmem:[%s322 + $0x4] sm:$0xf]
      %v351 = vld [vmem:[%s322 + $0x8] sm:$0xf]
      %v352 = vld [vmem:[%s322 + $0xc] sm:$0xf]
      %v353 = vld [vmem:[%s322 + $0x10] sm:$0xf]
      %v354 = vld [vmem:[%s322 + $0x14] sm:$0xf]
      %v355 = vld [vmem:[%s322 + $0x18] sm:$0xf]
      %v356 = vld [vmem:[%s322 + $0x1c] sm:$0xf]
      %v357 = vld [vmem:[%s4] sm:$0xf]
      %v358 = vld [vmem:[%s4 + $0x4] sm:$0xf]
      %v359 = vld [vmem:[%s4 + $0x8] sm:$0xf]
      %v360 = vld [vmem:[%s4 + $0xc] sm:$0xf]
      %v361 = vld [vmem:[%s4 + $0x10] sm:$0xf]
      %v362 = vld [vmem:[%s4 + $0x14] sm:$0xf]
      %v363 = vld [vmem:[%s4 + $0x18] sm:$0xf]
      %v364 = vld [vmem:[%s4 + $0x1c] sm:$0xf]
      %v365 = vld [vmem:[%s328] sm:$0xf]
      %v366 = vld [vmem:[%s328 + $0x4] sm:$0xf]
      %v367 = vld [vmem:[%s328 + $0x8] sm:$0xf]
      %v368 = vld [vmem:[%s328 + $0xc] sm:$0xf]
      %v369 = vld [vmem:[%s328 + $0x10] sm:$0xf]
      %v370 = vld [vmem:[%s328 + $0x14] sm:$0xf]
      %v371 = vld [vmem:[%s328 + $0x18] sm:$0xf]
      %v372 = vld [vmem:[%s328 + $0x1c] sm:$0xf]
      %v373 = vld [vmem:[%s334] sm:$0xf]
      %v374 = vld [vmem:[%s334 + $0x4] sm:$0xf]
      %v375 = vld [vmem:[%s334 + $0x8] sm:$0xf]
      %v376 = vld [vmem:[%s334 + $0xc] sm:$0xf]
      %v377 = vld [vmem:[%s334 + $0x10] sm:$0xf]
      %v378 = vld [vmem:[%s334 + $0x14] sm:$0xf]
      %v379 = vld [vmem:[%s334 + $0x18] sm:$0xf]
      %v380 = vld [vmem:[%s334 + $0x1c] sm:$0xf]
      %v381 = vunpack.c.l.bf16 %v365
      %v382 = vunpack.c.l.bf16 %v366
      %v383 = vunpack.c.l.bf16 %v367
      %v384 = vunpack.c.l.bf16 %v368
      %v385 = vunpack.c.l.bf16 %v369
      %v386 = vunpack.c.l.bf16 %v370
      %v387 = vunpack.c.l.bf16 %v371
      %v388 = vunpack.c.l.bf16 %v372
      %v389 = vunpack.c.l.bf16 %v373
      %v390 = vunpack.c.l.bf16 %v374
      %v391 = vunpack.c.l.bf16 %v375
      %v392 = vunpack.c.l.bf16 %v376
      %v393 = vunpack.c.l.bf16 %v377
      %v394 = vunpack.c.l.bf16 %v378
      %v395 = vunpack.c.l.bf16 %v379
      %v396 = vunpack.c.l.bf16 %v380
      %v397 = vadd.f32 %v381, %v389
      %v398 = vadd.f32 %v382, %v390
      %v399 = vadd.f32 %v383, %v391
      %v400 = vadd.f32 %v384, %v392
      %v401 = vadd.f32 %v385, %v393
      %v402 = vadd.f32 %v386, %v394
      %v403 = vadd.f32 %v387, %v395
      %v404 = vadd.f32 %v388, %v396
      %v405 = vpack.c.bf16 %v397, %v397
      %v406 = vpack.c.bf16 %v398, %v398
      %v407 = vpack.c.bf16 %v399, %v399
      %v408 = vpack.c.bf16 %v400, %v400
      %v409 = vpack.c.bf16 %v401, %v401
      %v410 = vpack.c.bf16 %v402, %v402
      %v411 = vpack.c.bf16 %v403, %v403
      %v412 = vpack.c.bf16 %v404, %v404
      %v413 = vld [vmem:[%s340] sm:$0xf]
      %v414 = vld [vmem:[%s340 + $0x4] sm:$0xf]
      %v415 = vld [vmem:[%s340 + $0x8] sm:$0xf]
      %v416 = vld [vmem:[%s340 + $0xc] sm:$0xf]
      %v417 = vld [vmem:[%s340 + $0x10] sm:$0xf]
      %v418 = vld [vmem:[%s340 + $0x14] sm:$0xf]
      %v419 = vld [vmem:[%s340 + $0x18] sm:$0xf]
      %v420 = vld [vmem:[%s340 + $0x1c] sm:$0xf]
      %v421 = vunpack.c.l.bf16 %v405
      %v422 = vunpack.c.l.bf16 %v406
      %v423 = vunpack.c.l.bf16 %v407
      %v424 = vunpack.c.l.bf16 %v408
      %v425 = vunpack.c.l.bf16 %v409
      %v426 = vunpack.c.l.bf16 %v410
      %v427 = vunpack.c.l.bf16 %v411
      %v428 = vunpack.c.l.bf16 %v412
      %v429 = vunpack.c.l.bf16 %v413
      %v430 = vunpack.c.l.bf16 %v414
      %v431 = vunpack.c.l.bf16 %v415
      %v432 = vunpack.c.l.bf16 %v416
      %v433 = vunpack.c.l.bf16 %v417
      %v434 = vunpack.c.l.bf16 %v418
      %v435 = vunpack.c.l.bf16 %v419
      %v436 = vunpack.c.l.bf16 %v420
      %v437 = vadd.f32 %v421, %v429
      %v438 = vadd.f32 %v422, %v430
      %v439 = vadd.f32 %v423, %v431
      %v440 = vadd.f32 %v424, %v432
      %v441 = vadd.f32 %v425, %v433
      %v442 = vadd.f32 %v426, %v434
      %v443 = vadd.f32 %v427, %v435
      %v444 = vadd.f32 %v428, %v436
      %v445 = vpack.c.bf16 %v438, %v437
      %v446 = vpack.c.bf16 %v440, %v439
      %v447 = vpack.c.bf16 %v442, %v441
      %v448 = vpack.c.bf16 %v444, %v443
      %v449 = vld [vmem:[%s5] sm:$0x3]
      %vm450 = vcmask 31744
      %v452 = vsel %vm450, %v445, 0
      %v455 = vsel %vm450, %v446, 0
      %v458 = vsel %vm450, %v447, 0
      %v461 = vsel %vm450, %v448, 0
      %vm463 = vcmask 1041408
      %v465 = vsel %vm463, %v449, 0
      %467 = vmatpush.bf16.msra.mxu0 0
      %468 = vmatpush.bf16.msra.mxu0 0
      %469 = vmatpush.bf16.msra.mxu0 0
      %470 = vmatpush.bf16.msra.mxu0 0
      %471 = vmatpush.bf16.msra.mxu0 0
      %472 = vmatpush.bf16.msra.mxu0 0
      %473 = vmatpush.bf16.msra.mxu0 0
      %474 = vmatpush.bf16.msra.mxu0 %v465
      %475 = vmatmul.bf16.gmra.mxu0 %v452
      %v476 = vpop.f32.mrf.mxu0
      %v477 = vadd.f32 0.0, %v476
      %v478 = vpop.f32.mrf.mxu0
      %v479 = vadd.f32 0.0, %v478
      %480 = vmatmul.bf16.gmra.mxu0 %v455
      %v481 = vpop.f32.mrf.mxu0
      %v482 = vadd.f32 0.0, %v481
      %v483 = vpop.f32.mrf.mxu0
      %v484 = vadd.f32 0.0, %v483
      %485 = vmatmul.bf16.gmra.mxu0 %v458
      %v486 = vpop.f32.mrf.mxu0
      %v487 = vadd.f32 0.0, %v486
      %v488 = vpop.f32.mrf.mxu0
      %v489 = vadd.f32 0.0, %v488
      %490 = vmatmul.bf16.gmra.mxu0 %v461
      %v491 = vpop.f32.mrf.mxu0
      %v492 = vadd.f32 0.0, %v491
      %v493 = vpop.f32.mrf.mxu0
      %v494 = vadd.f32 0.0, %v493
      %495 = vdwg.mxu0
      %v504 = vunpack.c.l.b16 %v349
      %v505 = vunpack.c.l.b16 %v350
      %v506 = vunpack.c.l.b16 %v351
      %v507 = vunpack.c.l.b16 %v352
      %v508 = vunpack.c.l.b16 %v353
      %v509 = vunpack.c.l.b16 %v354
      %v510 = vunpack.c.l.b16 %v355
      %v511 = vunpack.c.l.b16 %v356
      %v512 = vpack.c.b16 %v505, %v504
      %v513 = vpack.c.b16 %v507, %v506
      %v514 = vpack.c.b16 %v509, %v508
      %v515 = vpack.c.b16 %v511, %v510
      %v524 = vunpack.c.l.b16 %v357
      %v525 = vunpack.c.l.b16 %v358
      %v526 = vunpack.c.l.b16 %v359
      %v527 = vunpack.c.l.b16 %v360
      %v528 = vunpack.c.l.b16 %v361
      %v529 = vunpack.c.l.b16 %v362
      %v530 = vunpack.c.l.b16 %v363
      %v531 = vunpack.c.l.b16 %v364
      %v532 = vpack.c.b16 %v525, %v524
      %v533 = vpack.c.b16 %v527, %v526
      %v534 = vpack.c.b16 %v529, %v528
      %v535 = vpack.c.b16 %v531, %v530
      %vm540 = vcmask 523264
      %v542 = vsel %vm540, %v512, 0
      %v545 = vsel %vm540, %v513, 0
      %v548 = vsel %vm540, %v514, 0
      %v551 = vsel %vm540, %v515, 0
      %553 = vmatpush.bf16.msra.mxu0 0
      %554 = vmatpush.bf16.msra.mxu0 0
      %555 = vmatpush.bf16.msra.mxu0 0
      %556 = vmatpush.bf16.msra.mxu0 0
      %557 = vmatpush.bf16.msra.mxu0 %v535
      %558 = vmatpush.bf16.msra.mxu0 %v534
      %559 = vmatpush.bf16.msra.mxu0 %v533
      %560 = vmatpush.bf16.msra.mxu0 %v532
      %561 = vmatmul.bf16.gmra.mxu0 %v542
      %v562 = vpop.f32.mrf.mxu0
      %v563 = vadd.f32 %v477, %v562
      %v564 = vpop.f32.mrf.mxu0
      %v565 = vadd.f32 %v479, %v564
      %566 = vmatmul.bf16.gmra.mxu0 %v545
      %v567 = vpop.f32.mrf.mxu0
      %v568 = vadd.f32 %v482, %v567
      %v569 = vpop.f32.mrf.mxu0
      %v570 = vadd.f32 %v484, %v569
      %571 = vmatmul.bf16.gmra.mxu0 %v548
      %v572 = vpop.f32.mrf.mxu0
      %v573 = vadd.f32 %v487, %v572
      %v574 = vpop.f32.mrf.mxu0
      %v575 = vadd.f32 %v489, %v574
      %576 = vmatmul.bf16.gmra.mxu0 %v551
      %v577 = vpop.f32.mrf.mxu0
      %v578 = vadd.f32 %v492, %v577
      %v579 = vpop.f32.mrf.mxu0
      %v580 = vadd.f32 %v494, %v579
      %581 = vdwg.mxu0
      %v582 = vld [vmem:[%s6] sm:$0x1]
      %v584 = vperm.slane %v582, 0
      %v586 = vadd.f32 %v563, %v584
      %v587 = vadd.f32 %v565, %v584
      %v588 = vadd.f32 %v568, %v584
      %v589 = vadd.f32 %v570, %v584
      %v590 = vadd.f32 %v573, %v584
      %v591 = vadd.f32 %v575, %v584
      %v592 = vadd.f32 %v578, %v584
      %v593 = vadd.f32 %v580, %v584
      %v594 = vmax.f32 %v586, 0.0
      %v595 = vmax.f32 %v587, 0.0
      %v596 = vmax.f32 %v588, 0.0
      %v597 = vmax.f32 %v589, 0.0
      %v598 = vmax.f32 %v590, 0.0
      %v599 = vmax.f32 %v591, 0.0
      %v600 = vmax.f32 %v592, 0.0
      %v601 = vmax.f32 %v593, 0.0
      %v602 = vpack.c.bf16 %v594, %v594
      %v603 = vpack.c.bf16 %v595, %v595
      %v604 = vpack.c.bf16 %v596, %v596
      %v605 = vpack.c.bf16 %v597, %v597
      %v606 = vpack.c.bf16 %v598, %v598
      %v607 = vpack.c.bf16 %v599, %v599
      %v608 = vpack.c.bf16 %v600, %v600
      %v609 = vpack.c.bf16 %v601, %v601
      %vm610 = vcmask 125952
      %611 = vst.msk [vmem:[%s346] sm:$0xf] %vm610, %v602
      %612 = vst.msk [vmem:[%s346 + $0x4] sm:$0xf] %vm610, %v603
      %613 = vst.msk [vmem:[%s346 + $0x8] sm:$0xf] %vm610, %v604
      %614 = vst.msk [vmem:[%s346 + $0xc] sm:$0xf] %vm610, %v605
      %615 = vst.msk [vmem:[%s346 + $0x10] sm:$0xf] %vm610, %v606
      %616 = vst.msk [vmem:[%s346 + $0x14] sm:$0xf] %vm610, %v607
      %617 = vst.msk [vmem:[%s346 + $0x18] sm:$0xf] %vm610, %v608
      %618 = vst.msk [vmem:[%s346 + $0x1c] sm:$0xf] %vm610, %v609
      %s619 = smul.u32 8, %s18
      %p620 = scmp.lt.s32.totalorder %s619, 15
      %s621 = scalar_select %p620, %s619, 15
      %s622 = smul.addr %s621, 4
      %s623 = scalar_lea.vmem %s7, %s622
      // Predicated region
      $region49: #{_lambda_.15} parent=47 // pred_check
        %p624 = pneg %p203
      $region50: #{_lambda_.15} parent=47 // pred_check_branch
        %626 = sbr.rel (%p624) target = $region52
      $region51: #{_lambda_.15} parent=47 // pred_region
        %s627 = smul.u32 8, %s18
      $region52: #{_lambda_.15} parent=47 // pred_fallthru
        _
    $region48: #{_lambda_.15} parent=5 // pred_fallthru
      _
    %p628 = scmp.le.s32.totalorder 2, %s13
    // Predicated region
    $region53: #{_lambda_.15} parent=5 // pred_check
      %p629 = pneg %p628
    $region54: #{_lambda_.15} parent=5 // pred_check_branch
      %631 = sbr.rel (%p629) target = $region56
    $region55: #{_lambda_.15} parent=5 // pred_region
      %s632 = ssub.s32 %s13, 2
      // Predicated region
      $region57: #{_lambda_.15} parent=55 // pred_check
        %p633 = pneg %p209
      $region58: #{_lambda_.15} parent=55 // pred_check_branch
        %635 = sbr.rel (%p633) target = $region60
      $region59: #{_lambda_.15} parent=55 // pred_region
        %s636 = smul.u32 8, %s19
        %p637 = scmp.lt.s32.totalorder %s636, 15
        %s638 = scalar_select %p637, %s636, 15
        %s639 = smul.addr %s638, 4
        %s640 = scalar_lea.vmem %s7, %s639
      $region60: #{_lambda_.15} parent=55 // pred_fallthru
        _
    $region56: #{_lambda_.15} parent=5 // pred_fallthru
      _
  $region6: #{_lambda_.15} parent=0 // loop_footer
    %s17 = sadd.s32 1, %s13
  $region7: #{_lambda_.15} parent=0 // loop_footer_branch
    %12 = sbr.rel target = $region3
  $region8: #{_lambda_.15} parent=0 // loop_exit
    _

// kernel: _lambda_.16
$region0: #{_lambda_.16}
  #allocation0 [shape = 'u32[]', space=smem, size = 0x4, offset = 0x4, fixed_abs, tag = 'smem constant byte address 0x4 - core index']
  #allocation1 [shape = 'u32[72,128]{1,0:T(1,128)}', space=vmem, size = 0x9000, scoped, tag = 'internal scratch']
  %s0 = inlined_call_operand.vmem [shape: bf16[128,8], index: 0, kind: input, shape index: {}]
  %s1 = inlined_call_operand.vmem [shape: bf16[8,4], index: 1, kind: input, shape index: {}]
  %s2 = inlined_call_operand.vmem [shape: f32[1,4], index: 2, kind: input, shape index: {}]
  %s3 = inlined_call_operand.vmem [shape: bf16[128,4], index: 3, kind: output, shape index: {}]
  %s4 = sld [smem:[#allocation0]]
  $region45: #{_lambda_.16} parent=0
    _
  %s6 = ssub.s32 1, %s4
  %s7 = scalar_select 0, %s6, %s4
  loop: start=0, step=1, limit=4
  $region2: #{_lambda_.16} parent=0 // loop_pre_header
    _
  $region3: #{_lambda_.16} parent=0 // loop_header
    %s9 = sphi 0, %s13
    %p10 = scmp.ge.s32.totalorder %s9, 4
    %s19 = sphi 0, %s21
    %s22 = sphi 0, %s19
    %s23 = sphi 0, %s22
    %s39 = sphi 0, %s23
    %s43 = sphi 0, %s43
    %s45 = sphi 0, %s43
    %s46 = sphi 0, %s45
    %s60 = sphi 0, %s46
    %s64 = sphi 0, %s64
    %s66 = sphi 0, %s64
    %s67 = sphi 0, %s66
    %s81 = sphi 0, %s67
    %s87 = sphi 0, %s89
    %s90 = sphi 0, %s87
    %s91 = sphi 0, %s90
    %s107 = sphi 0, %s91
  $region4: #{_lambda_.16} parent=0 // loop_header_branch
    %12 = sbr.rel (%p10) target = $region8
  $region5: #{_lambda_.16} parent=0 // loop_body
    %s14 = ssub.s32 %s9, 1
    %s15 = ssub.s32 %s9, 2
    %s16 = sadd.s32 %s9, 1
    %s17 = ssub.s32 %s9, %s16
    %p18 = scmp.eq.s32.totalorder %s17, 0
    %s20 = sadd.s32 %s19, 1
    %s21 = scalar_select %p18, %s19, %s20
    %p24 = pneg %p18
    %p25 = scmp.eq.s32.totalorder %s9, 1
    %p26 = por %p24, %p25
    %p27 = scmp.ne.s32.totalorder %s19, %s22
    %p28 = scmp.eq.s32.totalorder %s9, 0
    %p29 = por %p27, %p28
    %p30 = scmp.ne.s32.totalorder %s19, %s22
    %p31 = scmp.eq.s32.totalorder %s14, 1
    %p32 = por %p30, %p31
    %p33 = scmp.ne.s32.totalorder %s22, %s23
    %p34 = scmp.eq.s32.totalorder %s14, 0
    %p35 = por %p33, %p34
    %p36 = scmp.ne.s32.totalorder %s22, %s23
    %p37 = scmp.eq.s32.totalorder %s15, 1
    %p38 = por %p36, %p37
    %p40 = scmp.ne.s32.totalorder %s23, %s39
    %p41 = scmp.eq.s32.totalorder %s15, 0
    %p42 = por %p40, %p41
    %s44 = sadd.s32 %s43, 1
    %p47 = scmp.eq.s32.totalorder %s9, 1
    %p48 = scmp.ne.s32.totalorder %s43, %s45
    %p49 = scmp.eq.s32.totalorder %s9, 0
    %p50 = por %p48, %p49
    %p51 = scmp.ne.s32.totalorder %s43, %s45
    %p52 = scmp.eq.s32.totalorder %s14, 1
    %p53 = por %p51, %p52
    %p54 = scmp.ne.s32.totalorder %s45, %s46
    %p55 = scmp.eq.s32.totalorder %s14, 0
    %p56 = por %p54, %p55
    %p57 = scmp.ne.s32.totalorder %s45, %s46
    %p58 = scmp.eq.s32.totalorder %s15, 1
    %p59 = por %p57, %p58
    %p61 = scmp.ne.s32.totalorder %s46, %s60
    %p62 = scmp.eq.s32.totalorder %s15, 0
    %p63 = por %p61, %p62
    %s65 = sadd.s32 %s64, 1
    %p68 = scmp.eq.s32.totalorder %s9, 1
    %p69 = scmp.ne.s32.totalorder %s64, %s66
    %p70 = scmp.eq.s32.totalorder %s9, 0
    %p71 = por %p69, %p70
    %p72 = scmp.ne.s32.totalorder %s64, %s66
    %p73 = scmp.eq.s32.totalorder %s14, 1
    %p74 = por %p72, %p73
    %p75 = scmp.ne.s32.totalorder %s66, %s67
    %p76 = scmp.eq.s32.totalorder %s14, 0
    %p77 = por %p75, %p76
    %p78 = scmp.ne.s32.totalorder %s66, %s67
    %p79 = scmp.eq.s32.totalorder %s15, 1
    %p80 = por %p78, %p79
    %p82 = scmp.ne.s32.totalorder %s67, %s81
    %p83 = scmp.eq.s32.totalorder %s15, 0
    %p84 = por %p82, %p83
    %s85 = ssub.s32 %s9, %s16
    %p86 = scmp.eq.s32.totalorder %s85, 0
    %s88 = sadd.s32 %s87, 1
    %s89 = scalar_select %p86, %s87, %s88
    %p92 = pneg %p86
    %p93 = scmp.eq.s32.totalorder %s9, 1
    %p94 = por %p92, %p93
    %p95 = scmp.ne.s32.totalorder %s87, %s90
    %p96 = scmp.eq.s32.totalorder %s9, 0
    %p97 = por %p95, %p96
    %p98 = scmp.ne.s32.totalorder %s87, %s90
    %p99 = scmp.eq.s32.totalorder %s14, 1
    %p100 = por %p98, %p99
    %p101 = scmp.ne.s32.totalorder %s90, %s91
    %p102 = scmp.eq.s32.totalorder %s14, 0
    %p103 = por %p101, %p102
    %p104 = scmp.ne.s32.totalorder %s90, %s91
    %p105 = scmp.eq.s32.totalorder %s15, 1
    %p106 = por %p104, %p105
    %p108 = scmp.ne.s32.totalorder %s91, %s107
    %p109 = scmp.eq.s32.totalorder %s15, 0
    %p110 = por %p108, %p109
    %p111 = scmp.le.s32.totalorder 1, %s9
    %p112 = scmp.lt.s32.totalorder %s9, 3
    %p113 = pnand %p111, %p112
    %p114 = pneg %p113
    // Predicated region
    $region9: #{_lambda_.16} parent=5 // pred_check
      _
    $region10: #{_lambda_.16} parent=5 // pred_check_branch
      %116 = sbr.rel (%p113) target = $region12
    $region11: #{_lambda_.16} parent=5 // pred_region
      %s117 = ssub.s32 %s9, 1
      // Predicated region
      $region13: #{_lambda_.16} parent=11 // pred_check
        %p118 = pneg %p56
      $region14: #{_lambda_.16} parent=11 // pred_check_branch
        %120 = sbr.rel (%p118) target = $region16
      $region15: #{_lambda_.16} parent=11 // pred_region
        _
      $region16: #{_lambda_.16} parent=11 // pred_fallthru
        _
      // Predicated region
      $region17: #{_lambda_.16} parent=11 // pred_check
        %p121 = pneg %p77
      $region18: #{_lambda_.16} parent=11 // pred_check_branch
        %123 = sbr.rel (%p121) target = $region20
      $region19: #{_lambda_.16} parent=11 // pred_region
        _
      $region20: #{_lambda_.16} parent=11 // pred_fallthru
        _
    $region12: #{_lambda_.16} parent=5 // pred_fallthru
      _
    %p124 = scmp.lt.s32.totalorder %s9, 2
    // Predicated region
    $region21: #{_lambda_.16} parent=5 // pred_check
      %p125 = pneg %p124
    $region22: #{_lambda_.16} parent=5 // pred_check_branch
      %127 = sbr.rel (%p125) target = $region24
    $region23: #{_lambda_.16} parent=5 // pred_region
      // Predicated region
      $region25: #{_lambda_.16} parent=23 // pred_check
        %p128 = pneg %p29
      $region26: #{_lambda_.16} parent=23 // pred_check_branch
        %130 = sbr.rel (%p128) target = $region28
      $region27: #{_lambda_.16} parent=23 // pred_region
        %s131 = smul.u32 8, %s9
        %p132 = scmp.lt.s32.totalorder %s131, 15
        %s133 = scalar_select %p132, %s131, 15
        %s134 = smul.addr %s133, 4
        %s135 = scalar_lea.vmem %s0, %s134
        %s136 = smul.u32 8, %s9
      $region28: #{_lambda_.16} parent=23 // pred_fallthru
        _
    $region24: #{_lambda_.16} parent=5 // pred_fallthru
      _
    %p137 = scmp.le.s32.totalorder 1, %s9
    %p138 = scmp.lt.s32.totalorder %s9, 3
    %p139 = pnand %p137, %p138
    %p140 = pneg %p139
    // Predicated region
    $region29: #{_lambda_.16} parent=5 // pred_check
      _
    $region30: #{_lambda_.16} parent=5 // pred_check_branch
      %142 = sbr.rel (%p139) target = $region32
    $region31: #{_lambda_.16} parent=5 // pred_region
      %s143 = ssub.s32 %s9, 1
      %s144 = smul.u32 8, %s14
      %p145 = scmp.lt.s32.totalorder %s144, 15
      %s146 = scalar_select %p145, %s144, 15
      %s147 = smul.addr %s146, 4
      %s148 = scalar_lea.vmem %s0, %s147
      %p149 = pneg %p35
      %p150 = pneg %p32
      %p151 = pneg %p56
      %p152 = pneg %p53
      %p153 = pneg %p77
      %p154 = pneg %p74
      %p155 = pneg %p103
      %p156 = pneg %p100
      %s157 = smul.u32 8, %s14
      %p158 = scmp.lt.s32.totalorder %s157, 15
      %s159 = scalar_select %p158, %s157, 15
      %s160 = smul.addr %s159, 4
      %s161 = scalar_lea.vmem %s3, %s160
      %s162 = smul.u32 8, %s14
      %p163 = scmp.lt.s32.totalorder %s162, 15
      %s164 = scalar_select %p163, %s162, 15
      %s165 = smul.addr %s164, 4
      %s166 = scalar_lea.vmem %s0, %s165
      %s167 = smul.u32 8, %s14
      %s168 = smul.u32 8, %s14
      %p169 = scmp.lt.s32.totalorder %s168, 15
      %s170 = scalar_select %p169, %s168, 15
      %s171 = smul.addr %s170, 4
      %s172 = scalar_lea.vmem %s3, %s171
      %s173 = smul.u32 8, %s14
      %v175 = vld [vmem:[%s166] sm:$0xf]
      %v176 = vld [vmem:[%s166 + $0x4] sm:$0xf]
      %v177 = vld [vmem:[%s166 + $0x8] sm:$0xf]
      %v178 = vld [vmem:[%s166 + $0xc] sm:$0xf]
      %v179 = vld [vmem:[%s166 + $0x10] sm:$0xf]
      %v180 = vld [vmem:[%s166 + $0x14] sm:$0xf]
      %v181 = vld [vmem:[%s166 + $0x18] sm:$0xf]
      %v182 = vld [vmem:[%s166 + $0x1c] sm:$0xf]
      %v183 = vld [vmem:[%s1] sm:$0xf]
      %v184 = vld [vmem:[%s2] sm:$0x1]
      %v186 = vperm.slane %v184, 0
      %v196 = vunpack.c.l.b16 %v175
      %v197 = vunpack.c.l.b16 %v176
      %v198 = vunpack.c.l.b16 %v177
      %v199 = vunpack.c.l.b16 %v178
      %v200 = vunpack.c.l.b16 %v179
      %v201 = vunpack.c.l.b16 %v180
      %v202 = vunpack.c.l.b16 %v181
      %v203 = vunpack.c.l.b16 %v182
      %v204 = vpack.c.b16 %v197, %v196
      %v205 = vpack.c.b16 %v199, %v198
      %v206 = vpack.c.b16 %v201, %v200
      %v207 = vpack.c.b16 %v203, %v202
      %vm208 = vcmask 64512
      %v210 = vsel %vm208, %v204, 0
      %v213 = vsel %vm208, %v205, 0
      %v216 = vsel %vm208, %v206, 0
      %v219 = vsel %vm208, %v207, 0
      %vm221 = vcmask 1043456
      %v223 = vsel %vm221, %v183, 0
      %225 = vmatpush.bf16.msra.mxu0 0
      %226 = vmatpush.bf16.msra.mxu0 0
      %227 = vmatpush.bf16.msra.mxu0 0
      %228 = vmatpush.bf16.msra.mxu0 0
      %229 = vmatpush.bf16.msra.mxu0 0
      %230 = vmatpush.bf16.msra.mxu0 0
      %231 = vmatpush.bf16.msra.mxu0 0
      %232 = vmatpush.bf16.msra.mxu0 %v223
      %233 = vmatmul.bf16.gmra.mxu0 %v210
      %v234 = vpop.f32.mrf.mxu0
      %v235 = vadd.f32 %v186, %v234
      %v236 = vpop.f32.mrf.mxu0
      %v237 = vadd.f32 %v186, %v236
      %238 = vmatmul.bf16.gmra.mxu0 %v213
      %v239 = vpop.f32.mrf.mxu0
      %v240 = vadd.f32 %v186, %v239
      %v241 = vpop.f32.mrf.mxu0
      %v242 = vadd.f32 %v186, %v241
      %243 = vmatmul.bf16.gmra.mxu0 %v216
      %v244 = vpop.f32.mrf.mxu0
      %v245 = vadd.f32 %v186, %v244
      %v246 = vpop.f32.mrf.mxu0
      %v247 = vadd.f32 %v186, %v246
      %248 = vmatmul.bf16.gmra.mxu0 %v219
      %v249 = vpop.f32.mrf.mxu0
      %v250 = vadd.f32 %v186, %v249
      %v251 = vpop.f32.mrf.mxu0
      %v252 = vadd.f32 %v186, %v251
      %253 = vdwg.mxu0
      %v254 = vmax.f32 %v235, 0.0
      %v255 = vmax.f32 %v237, 0.0
      %v256 = vmax.f32 %v240, 0.0
      %v257 = vmax.f32 %v242, 0.0
      %v258 = vmax.f32 %v245, 0.0
      %v259 = vmax.f32 %v247, 0.0
      %v260 = vmax.f32 %v250, 0.0
      %v261 = vmax.f32 %v252, 0.0
      %v262 = vpack.c.bf16 %v254, %v254
      %v263 = vpack.c.bf16 %v255, %v255
      %v264 = vpack.c.bf16 %v256, %v256
      %v265 = vpack.c.bf16 %v257, %v257
      %v266 = vpack.c.bf16 %v258, %v258
      %v267 = vpack.c.bf16 %v259, %v259
      %v268 = vpack.c.bf16 %v260, %v260
      %v269 = vpack.c.bf16 %v261, %v261
      %vm270 = vcmask 27648
      %271 = vst.msk [vmem:[%s172] sm:$0xf] %vm270, %v262
      %272 = vst.msk [vmem:[%s172 + $0x4] sm:$0xf] %vm270, %v263
      %273 = vst.msk [vmem:[%s172 + $0x8] sm:$0xf] %vm270, %v264
      %274 = vst.msk [vmem:[%s172 + $0xc] sm:$0xf] %vm270, %v265
      %275 = vst.msk [vmem:[%s172 + $0x10] sm:$0xf] %vm270, %v266
      %276 = vst.msk [vmem:[%s172 + $0x14] sm:$0xf] %vm270, %v267
      %277 = vst.msk [vmem:[%s172 + $0x18] sm:$0xf] %vm270, %v268
      %278 = vst.msk [vmem:[%s172 + $0x1c] sm:$0xf] %vm270, %v269
      %s279 = smul.u32 8, %s14
      %p280 = scmp.lt.s32.totalorder %s279, 15
      %s281 = scalar_select %p280, %s279, 15
      %s282 = smul.addr %s281, 4
      %s283 = scalar_lea.vmem %s3, %s282
      // Predicated region
      $region33: #{_lambda_.16} parent=31 // pred_check
        %p284 = pneg %p100
      $region34: #{_lambda_.16} parent=31 // pred_check_branch
        %286 = sbr.rel (%p284) target = $region36
      $region35: #{_lambda_.16} parent=31 // pred_region
        %s287 = smul.u32 8, %s14
      $region36: #{_lambda_.16} parent=31 // pred_fallthru
        _
    $region32: #{_lambda_.16} parent=5 // pred_fallthru
      _
    %p288 = scmp.le.s32.totalorder 2, %s9
    // Predicated region
    $region37: #{_lambda_.16} parent=5 // pred_check
      %p289 = pneg %p288
    $region38: #{_lambda_.16} parent=5 // pred_check_branch
      %291 = sbr.rel (%p289) target = $region40
    $region39: #{_lambda_.16} parent=5 // pred_region
      %s292 = ssub.s32 %s9, 2
      // Predicated region
      $region41: #{_lambda_.16} parent=39 // pred_check
        %p293 = pneg %p106
      $region42: #{_lambda_.16} parent=39 // pred_check_branch
        %295 = sbr.rel (%p293) target = $region44
      $region43: #{_lambda_.16} parent=39 // pred_region
        %s296 = smul.u32 8, %s15
        %p297 = scmp.lt.s32.totalorder %s296, 15
        %s298 = scalar_select %p297, %s296, 15
        %s299 = smul.addr %s298, 4
        %s300 = scalar_lea.vmem %s3, %s299
      $region44: #{_lambda_.16} parent=39 // pred_fallthru
        _
    $region40: #{_lambda_.16} parent=5 // pred_fallthru
      _
  $region6: #{_lambda_.16} parent=0 // loop_footer
    %s13 = sadd.s32 1, %s9
  $region7: #{_lambda_.16} parent=0 // loop_footer_branch
    %8 = sbr.rel target = $region3
  $region8: #{_lambda_.16} parent=0 // loop_exit
    _

// kernel: _lambda_.19
$region0: #{_lambda_.19}
  #allocation0 [shape = 'u32[]', space=smem, size = 0x4, offset = 0x4, fixed_abs, tag = 'smem constant byte address 0x4 - core index']
  #allocation1 [shape = 'u32[72,128]{1,0:T(1,128)}', space=vmem, size = 0x9000, scoped, tag = 'internal scratch']
  %s0 = inlined_call_operand.vmem [shape: bf16[128,144], index: 0, kind: input, shape index: {}]
  %s1 = inlined_call_operand.vmem [shape: bf16[128,4], index: 1, kind: input, shape index: {}]
  %s2 = inlined_call_operand.vmem [shape: bf16[128,4], index: 2, kind: input, shape index: {}]
  %s3 = inlined_call_operand.vmem [shape: bf16[128,4], index: 3, kind: input, shape index: {}]
  %s4 = inlined_call_operand.vmem [shape: bf16[144,16], index: 4, kind: input, shape index: {}]
  %s5 = inlined_call_operand.vmem [shape: bf16[4,16], index: 5, kind: input, shape index: {}]
  %s6 = inlined_call_operand.vmem [shape: f32[1,16], index: 6, kind: input, shape index: {}]
  %s7 = inlined_call_operand.vmem [shape: bf16[128,16], index: 7, kind: output, shape index: {}]
  %s8 = sld [smem:[#allocation0]]
  $region61: #{_lambda_.19} parent=0
    _
  %s10 = ssub.s32 1, %s8
  %s11 = scalar_select 0, %s10, %s8
  loop: start=0, step=1, limit=4
  $region2: #{_lambda_.19} parent=0 // loop_pre_header
    _
  $region3: #{_lambda_.19} parent=0 // loop_header
    %s13 = sphi 0, %s17
    %p14 = scmp.ge.s32.totalorder %s13, 4
    %s23 = sphi 0, %s25
    %s26 = sphi 0, %s23
    %s27 = sphi 0, %s26
    %s43 = sphi 0, %s27
    %s49 = sphi 0, %s51
    %s52 = sphi 0, %s49
    %s53 = sphi 0, %s52
    %s69 = sphi 0, %s53
    %s75 = sphi 0, %s77
    %s78 = sphi 0, %s75
    %s79 = sphi 0, %s78
    %s95 = sphi 0, %s79
    %s101 = sphi 0, %s103
    %s104 = sphi 0, %s101
    %s105 = sphi 0, %s104
    %s121 = sphi 0, %s105
    %s125 = sphi 0, %s125
    %s127 = sphi 0, %s125
    %s128 = sphi 0, %s127
    %s142 = sphi 0, %s128
    %s146 = sphi 0, %s146
    %s148 = sphi 0, %s146
    %s149 = sphi 0, %s148
    %s163 = sphi 0, %s149
    %s167 = sphi 0, %s167
    %s169 = sphi 0, %s167
    %s170 = sphi 0, %s169
    %s184 = sphi 0, %s170
    %s190 = sphi 0, %s192
    %s193 = sphi 0, %s190
    %s194 = sphi 0, %s193
    %s210 = sphi 0, %s194
  $region4: #{_lambda_.19} parent=0 // loop_header_branch
    %16 = sbr.rel (%p14) target = $region8
  $region5: #{_lambda_.19} parent=0 // loop_body
    %s18 = ssub.s32 %s13, 1
    %s19 = ssub.s32 %s13, 2
    %s20 = sadd.s32 %s13, 1
    %s21 = ssub.s32 %s13, %s20
    %p22 = scmp.eq.s32.totalorder %s21, 0
    %s24 = sadd.s32 %s23, 1
    %s25 = scalar_select %p22, %s23, %s24
    %p28 = pneg %p22
    %p29 = scmp.eq.s32.totalorder %s13, 1
    %p30 = por %p28, %p29
    %p31 = scmp.ne.s32.totalorder %s23, %s26
    %p32 = scmp.eq.s32.totalorder %s13, 0
    %p33 = por %p31, %p32
    %p34 = scmp.ne.s32.totalorder %s23, %s26
    %p35 = scmp.eq.s32.totalorder %s18, 1
    %p36 = por %p34, %p35
    %p37 = scmp.ne.s32.totalorder %s26, %s27
    %p38 = scmp.eq.s32.totalorder %s18, 0
    %p39 = por %p37, %p38
    %p40 = scmp.ne.s32.totalorder %s26, %s27
    %p41 = scmp.eq.s32.totalorder %s19, 1
    %p42 = por %p40, %p41
    %p44 = scmp.ne.s32.totalorder %s27, %s43
    %p45 = scmp.eq.s32.totalorder %s19, 0
    %p46 = por %p44, %p45
    %s47 = ssub.s32 %s13, %s20
    %p48 = scmp.eq.s32.totalorder %s47, 0
    %s50 = sadd.s32 %s49, 1
    %s51 = scalar_select %p48, %s49, %s50
    %p54 = pneg %p48
    %p55 = scmp.eq.s32.totalorder %s13, 1
    %p56 = por %p54, %p55
    %p57 = scmp.ne.s32.totalorder %s49, %s52
    %p58 = scmp.eq.s32.totalorder %s13, 0
    %p59 = por %p57, %p58
    %p60 = scmp.ne.s32.totalorder %s49, %s52
    %p61 = scmp.eq.s32.totalorder %s18, 1
    %p62 = por %p60, %p61
    %p63 = scmp.ne.s32.totalorder %s52, %s53
    %p64 = scmp.eq.s32.totalorder %s18, 0
    %p65 = por %p63, %p64
    %p66 = scmp.ne.s32.totalorder %s52, %s53
    %p67 = scmp.eq.s32.totalorder %s19, 1
    %p68 = por %p66, %p67
    %p70 = scmp.ne.s32.totalorder %s53, %s69
    %p71 = scmp.eq.s32.totalorder %s19, 0
    %p72 = por %p70, %p71
    %s73 = ssub.s32 %s13, %s20
    %p74 = scmp.eq.s32.totalorder %s73, 0
    %s76 = sadd.s32 %s75, 1
    %s77 = scalar_select %p74, %s75, %s76
    %p80 = pneg %p74
    %p81 = scmp.eq.s32.totalorder %s13, 1
    %p82 = por %p80, %p81
    %p83 = scmp.ne.s32.totalorder %s75, %s78
    %p84 = scmp.eq.s32.totalorder %s13, 0
    %p85 = por %p83, %p84
    %p86 = scmp.ne.s32.totalorder %s75, %s78
    %p87 = scmp.eq.s32.totalorder %s18, 1
    %p88 = por %p86, %p87
    %p89 = scmp.ne.s32.totalorder %s78, %s79
    %p90 = scmp.eq.s32.totalorder %s18, 0
    %p91 = por %p89, %p90
    %p92 = scmp.ne.s32.totalorder %s78, %s79
    %p93 = scmp.eq.s32.totalorder %s19, 1
    %p94 = por %p92, %p93
    %p96 = scmp.ne.s32.totalorder %s79, %s95
    %p97 = scmp.eq.s32.totalorder %s19, 0
    %p98 = por %p96, %p97
    %s99 = ssub.s32 %s13, %s20
    %p100 = scmp.eq.s32.totalorder %s99, 0
    %s102 = sadd.s32 %s101, 1
    %s103 = scalar_select %p100, %s101, %s102
    %p106 = pneg %p100
    %p107 = scmp.eq.s32.totalorder %s13, 1
    %p108 = por %p106, %p107
    %p109 = scmp.ne.s32.totalorder %s101, %s104
    %p110 = scmp.eq.s32.totalorder %s13, 0
    %p111 = por %p109, %p110
    %p112 = scmp.ne.s32.totalorder %s101, %s104
    %p113 = scmp.eq.s32.totalorder %s18, 1
    %p114 = por %p112, %p113
    %p115 = scmp.ne.s32.totalorder %s104, %s105
    %p116 = scmp.eq.s32.totalorder %s18, 0
    %p117 = por %p115, %p116
    %p118 = scmp.ne.s32.totalorder %s104, %s105
    %p119 = scmp.eq.s32.totalorder %s19, 1
    %p120 = por %p118, %p119
    %p122 = scmp.ne.s32.totalorder %s105, %s121
    %p123 = scmp.eq.s32.totalorder %s19, 0
    %p124 = por %p122, %p123
    %s126 = sadd.s32 %s125, 1
    %p129 = scmp.eq.s32.totalorder %s13, 1
    %p130 = scmp.ne.s32.totalorder %s125, %s127
    %p131 = scmp.eq.s32.totalorder %s13, 0
    %p132 = por %p130, %p131
    %p133 = scmp.ne.s32.totalorder %s125, %s127
    %p134 = scmp.eq.s32.totalorder %s18, 1
    %p135 = por %p133, %p134
    %p136 = scmp.ne.s32.totalorder %s127, %s128
    %p137 = scmp.eq.s32.totalorder %s18, 0
    %p138 = por %p136, %p137
    %p139 = scmp.ne.s32.totalorder %s127, %s128
    %p140 = scmp.eq.s32.totalorder %s19, 1
    %p141 = por %p139, %p140
    %p143 = scmp.ne.s32.totalorder %s128, %s142
    %p144 = scmp.eq.s32.totalorder %s19, 0
    %p145 = por %p143, %p144
    %s147 = sadd.s32 %s146, 1
    %p150 = scmp.eq.s32.totalorder %s13, 1
    %p151 = scmp.ne.s32.totalorder %s146, %s148
    %p152 = scmp.eq.s32.totalorder %s13, 0
    %p153 = por %p151, %p152
    %p154 = scmp.ne.s32.totalorder %s146, %s148
    %p155 = scmp.eq.s32.totalorder %s18, 1
    %p156 = por %p154, %p155
    %p157 = scmp.ne.s32.totalorder %s148, %s149
    %p158 = scmp.eq.s32.totalorder %s18, 0
    %p159 = por %p157, %p158
    %p160 = scmp.ne.s32.totalorder %s148, %s149
    %p161 = scmp.eq.s32.totalorder %s19, 1
    %p162 = por %p160, %p161
    %p164 = scmp.ne.s32.totalorder %s149, %s163
    %p165 = scmp.eq.s32.totalorder %s19, 0
    %p166 = por %p164, %p165
    %s168 = sadd.s32 %s167, 1
    %p171 = scmp.eq.s32.totalorder %s13, 1
    %p172 = scmp.ne.s32.totalorder %s167, %s169
    %p173 = scmp.eq.s32.totalorder %s13, 0
    %p174 = por %p172, %p173
    %p175 = scmp.ne.s32.totalorder %s167, %s169
    %p176 = scmp.eq.s32.totalorder %s18, 1
    %p177 = por %p175, %p176
    %p178 = scmp.ne.s32.totalorder %s169, %s170
    %p179 = scmp.eq.s32.totalorder %s18, 0
    %p180 = por %p178, %p179
    %p181 = scmp.ne.s32.totalorder %s169, %s170
    %p182 = scmp.eq.s32.totalorder %s19, 1
    %p183 = por %p181, %p182
    %p185 = scmp.ne.s32.totalorder %s170, %s184
    %p186 = scmp.eq.s32.totalorder %s19, 0
    %p187 = por %p185, %p186
    %s188 = ssub.s32 %s13, %s20
    %p189 = scmp.eq.s32.totalorder %s188, 0
    %s191 = sadd.s32 %s190, 1
    %s192 = scalar_select %p189, %s190, %s191
    %p195 = pneg %p189
    %p196 = scmp.eq.s32.totalorder %s13, 1
    %p197 = por %p195, %p196
    %p198 = scmp.ne.s32.totalorder %s190, %s193
    %p199 = scmp.eq.s32.totalorder %s13, 0
    %p200 = por %p198, %p199
    %p201 = scmp.ne.s32.totalorder %s190, %s193
    %p202 = scmp.eq.s32.totalorder %s18, 1
    %p203 = por %p201, %p202
    %p204 = scmp.ne.s32.totalorder %s193, %s194
    %p205 = scmp.eq.s32.totalorder %s18, 0
    %p206 = por %p204, %p205
    %p207 = scmp.ne.s32.totalorder %s193, %s194
    %p208 = scmp.eq.s32.totalorder %s19, 1
    %p209 = por %p207, %p208
    %p211 = scmp.ne.s32.totalorder %s194, %s210
    %p212 = scmp.eq.s32.totalorder %s19, 0
    %p213 = por %p211, %p212
    %p214 = scmp.le.s32.totalorder 1, %s13
    %p215 = scmp.lt.s32.totalorder %s13, 3
    %p216 = pnand %p214, %p215
    %p217 = pneg %p216
    // Predicated region
    $region9: #{_lambda_.19} parent=5 // pred_check
      _
    $region10: #{_lambda_.19} parent=5 // pred_check_branch
      %219 = sbr.rel (%p216) target = $region12
    $region11: #{_lambda_.19} parent=5 // pred_region
      %s220 = ssub.s32 %s13, 1
      // Predicated region
      $region13: #{_lambda_.19} parent=11 // pred_check
        %p221 = pneg %p138
      $region14: #{_lambda_.19} parent=11 // pred_check_branch
        %223 = sbr.rel (%p221) target = $region16
      $region15: #{_lambda_.19} parent=11 // pred_region
        _
      $region16: #{_lambda_.19} parent=11 // pred_fallthru
        _
      // Predicated region
      $region17: #{_lambda_.19} parent=11 // pred_check
        %p224 = pneg %p159
      $region18: #{_lambda_.19} parent=11 // pred_check_branch
        %226 = sbr.rel (%p224) target = $region20
      $region19: #{_lambda_.19} parent=11 // pred_region
        _
      $region20: #{_lambda_.19} parent=11 // pred_fallthru
        _
      // Predicated region
      $region21: #{_lambda_.19} parent=11 // pred_check
        %p227 = pneg %p180
      $region22: #{_lambda_.19} parent=11 // pred_check_branch
        %229 = sbr.rel (%p227) target = $region24
      $region23: #{_lambda_.19} parent=11 // pred_region
        _
      $region24: #{_lambda_.19} parent=11 // pred_fallthru
        _
    $region12: #{_lambda_.19} parent=5 // pred_fallthru
      _
    %p230 = scmp.lt.s32.totalorder %s13, 2
    // Predicated region
    $region25: #{_lambda_.19} parent=5 // pred_check
      %p231 = pneg %p230
    $region26: #{_lambda_.19} parent=5 // pred_check_branch
      %233 = sbr.rel (%p231) target = $region28
    $region27: #{_lambda_.19} parent=5 // pred_region
      // Predicated region
      $region29: #{_lambda_.19} parent=27 // pred_check
        %p234 = pneg %p33
      $region30: #{_lambda_.19} parent=27 // pred_check_branch
        %236 = sbr.rel (%p234) target = $region32
      $region31: #{_lambda_.19} parent=27 // pred_region
        %s237 = smul.u32 8, %s13
        %p238 = scmp.lt.s32.totalorder %s237, 15
        %s239 = scalar_select %p238, %s237, 15
        %s240 = smul.addr %s239, 2
        %s241 = smul.addr %s240, 4
        %s242 = scalar_lea.vmem %s0, %s241
        %s243 = smul.u32 8, %s13
      $region32: #{_lambda_.19} parent=27 // pred_fallthru
        _
      // Predicated region
      $region33: #{_lambda_.19} parent=27 // pred_check
        %p244 = pneg %p59
      $region34: #{_lambda_.19} parent=27 // pred_check_branch
        %246 = sbr.rel (%p244) target = $region36
      $region35: #{_lambda_.19} parent=27 // pred_region
        %s247 = smul.u32 8, %s13
        %p248 = scmp.lt.s32.totalorder %s247, 15
        %s249 = scalar_select %p248, %s247, 15
        %s250 = smul.addr %s249, 4
        %s251 = scalar_lea.vmem %s1, %s250
        %s252 = smul.u32 8, %s13
      $region36: #{_lambda_.19} parent=27 // pred_fallthru
        _
      // Predicated region
      $region37: #{_lambda_.19} parent=27 // pred_check
        %p253 = pneg %p85
      $region38: #{_lambda_.19} parent=27 // pred_check_branch
        %255 = sbr.rel (%p253) target = $region40
      $region39: #{_lambda_.19} parent=27 // pred_region
        %s256 = smul.u32 8, %s13
        %p257 = scmp.lt.s32.totalorder %s256, 15
        %s258 = scalar_select %p257, %s256, 15
        %s259 = smul.addr %s258, 4
        %s260 = scalar_lea.vmem %s2, %s259
        %s261 = smul.u32 8, %s13
      $region40: #{_lambda_.19} parent=27 // pred_fallthru
        _
      // Predicated region
      $region41: #{_lambda_.19} parent=27 // pred_check
        %p262 = pneg %p111
      $region42: #{_lambda_.19} parent=27 // pred_check_branch
        %264 = sbr.rel (%p262) target = $region44
      $region43: #{_lambda_.19} parent=27 // pred_region
        %s265 = smul.u32 8, %s13
        %p266 = scmp.lt.s32.totalorder %s265, 15
        %s267 = scalar_select %p266, %s265, 15
        %s268 = smul.addr %s267, 4
        %s269 = scalar_lea.vmem %s3, %s268
        %s270 = smul.u32 8, %s13
      $region44: #{_lambda_.19} parent=27 // pred_fallthru
        _
    $region28: #{_lambda_.19} parent=5 // pred_fallthru
      _
    %p271 = scmp.le.s32.totalorder 1, %s13
    %p272 = scmp.lt.s32.totalorder %s13, 3
    %p273 = pnand %p271, %p272
    %p274 = pneg %p273
    // Predicated region
    $region45: #{_lambda_.19} parent=5 // pred_check
      _
    $region46: #{_lambda_.19} parent=5 // pred_check_branch
      %276 = sbr.rel (%p273) target = $region48
    $region47: #{_lambda_.19} parent=5 // pred_region
      %s277 = ssub.s32 %s13, 1
      %s278 = smul.u32 8, %s18
      %p279 = scmp.lt.s32.totalorder %s278, 15
      %s280 = scalar_select %p279, %s278, 15
      %s281 = smul.addr %s280, 2
      %s282 = smul.addr %s281, 4
      %s283 = scalar_lea.vmem %s0, %s282
      %p284 = pneg %p39
      %p285 = pneg %p36
      %s286 = smul.u32 8, %s18
      %p287 = scmp.lt.s32.totalorder %s286, 15
      %s288 = scalar_select %p287, %s286, 15
      %s289 = smul.addr %s288, 4
      %s290 = scalar_lea.vmem %s1, %s289
      %p291 = pneg %p65
      %p292 = pneg %p62
      %s293 = smul.u32 8, %s18
      %p294 = scmp.lt.s32.totalorder %s293, 15
      %s295 = scalar_select %p294, %s293, 15
      %s296 = smul.addr %s295, 4
      %s297 = scalar_lea.vmem %s2, %s296
      %p298 = pneg %p91
      %p299 = pneg %p88
      %s300 = smul.u32 8, %s18
      %p301 = scmp.lt.s32.totalorder %s300, 15
      %s302 = scalar_select %p301, %s300, 15
      %s303 = smul.addr %s302, 4
      %s304 = scalar_lea.vmem %s3, %s303
      %p305 = pneg %p117
      %p306 = pneg %p114
      %p307 = pneg %p138
      %p308 = pneg %p135
      %p309 = pneg %p159
      %p310 = pneg %p156
      %p311 = pneg %p180
      %p312 = pneg %p177
      %p313 = pneg %p206
      %p314 = pneg %p203
      %s315 = smul.u32 8, %s18
      %p316 = scmp.lt.s32.totalorder %s315, 15
      %s317 = scalar_select %p316, %s315, 15
      %s318 = smul.addr %s317, 4
      %s319 = scalar_lea.vmem %s7, %s318
      %s320 = smul.u32 8, %s18
      %p321 = scmp.lt.s32.totalorder %s320, 15
      %s322 = scalar_select %p321, %s320, 15
      %s323 = smul.addr %s322, 2
      %s324 = smul.addr %s323, 4
      %s325 = scalar_lea.vmem %s0, %s324
      %s326 = smul.u32 8, %s18
      %s327 = smul.u32 8, %s18
      %p328 = scmp.lt.s32.totalorder %s327, 15
      %s329 = scalar_select %p328, %s327, 15
      %s330 = smul.addr %s329, 4
      %s331 = scalar_lea.vmem %s1, %s330
      %s332 = smul.u32 8, %s18
      %s333 = smul.u32 8, %s18
      %p334 = scmp.lt.s32.totalorder %s333, 15
      %s335 = scalar_select %p334, %s333, 15
      %s336 = smul.addr %s335, 4
      %s337 = scalar_lea.vmem %s2, %s336
      %s338 = smul.u32 8, %s18
      %s339 = smul.u32 8, %s18
      %p340 = scmp.lt.s32.totalorder %s339, 15
      %s341 = scalar_select %p340, %s339, 15
      %s342 = smul.addr %s341, 4
      %s343 = scalar_lea.vmem %s3, %s342
      %s344 = smul.u32 8, %s18
      %s345 = smul.u32 8, %s18
      %p346 = scmp.lt.s32.totalorder %s345, 15
      %s347 = scalar_select %p346, %s345, 15
      %s348 = smul.addr %s347, 4
      %s349 = scalar_lea.vmem %s7, %s348
      %s350 = smul.u32 8, %s18
      %v352 = vld [vmem:[%s325] sm:$0xff]
      %v353 = vld [vmem:[%s325 + $0x8] sm:$0xff]
      %v354 = vld [vmem:[%s325 + $0x10] sm:$0xff]
      %v355 = vld [vmem:[%s325 + $0x18] sm:$0xff]
      %v356 = vld [vmem:[%s325 + $0x20] sm:$0xff]
      %v357 = vld [vmem:[%s325 + $0x28] sm:$0xff]
      %v358 = vld [vmem:[%s325 + $0x30] sm:$0xff]
      %v359 = vld [vmem:[%s325 + $0x38] sm:$0xff]
      %v360 = vld [vmem:[%s4] sm:$0xf]
      %v361 = vld [vmem:[%s4 + $0x4] sm:$0xf]
      %v362 = vld [vmem:[%s4 + $0x8] sm:$0xf]
      %v363 = vld [vmem:[%s4 + $0xc] sm:$0xf]
      %v364 = vld [vmem:[%s4 + $0x10] sm:$0xf]
      %v365 = vld [vmem:[%s4 + $0x14] sm:$0xf]
      %v366 = vld [vmem:[%s4 + $0x18] sm:$0xf]
      %v367 = vld [vmem:[%s4 + $0x1c] sm:$0xf]
      %v368 = vld [vmem:[%s4 + $0x20] sm:$0xf]
      %v369 = vld [vmem:[%s4 + $0x24] sm:$0xf]
      %v370 = vld [vmem:[%s4 + $0x28] sm:$0xf]
      %v371 = vld [vmem:[%s4 + $0x2c] sm:$0xf]
      %v372 = vld [vmem:[%s4 + $0x30] sm:$0xf]
      %v373 = vld [vmem:[%s4 + $0x34] sm:$0xf]
      %v374 = vld [vmem:[%s4 + $0x38] sm:$0xf]
      %v375 = vld [vmem:[%s4 + $0x3c] sm:$0xf]
      %v376 = vld [vmem:[%s4 + $0x40] sm:$0xf]
      %v377 = vld [vmem:[%s4 + $0x44] sm:$0xf]
      %v378 = vld [vmem:[%s331] sm:$0xf]
      %v379 = vld [vmem:[%s331 + $0x4] sm:$0xf]
      %v380 = vld [vmem:[%s331 + $0x8] sm:$0xf]
      %v381 = vld [vmem:[%s331 + $0xc] sm:$0xf]
      %v382 = vld [vmem:[%s331 + $0x10] sm:$0xf]
      %v383 = vld [vmem:[%s331 + $0x14] sm:$0xf]
      %v384 = vld [vmem:[%s331 + $0x18] sm:$0xf]
      %v385 = vld [vmem:[%s331 + $0x1c] sm:$0xf]
      %v386 = vld [vmem:[%s337] sm:$0xf]
      %v387 = vld [vmem:[%s337 + $0x4] sm:$0xf]
      %v388 = vld [vmem:[%s337 + $0x8] sm:$0xf]
      %v389 = vld [vmem:[%s337 + $0xc] sm:$0xf]
      %v390 = vld [vmem:[%s337 + $0x10] sm:$0xf]
      %v391 = vld [vmem:[%s337 + $0x14] sm:$0xf]
      %v392 = vld [vmem:[%s337 + $0x18] sm:$0xf]
      %v393 = vld [vmem:[%s337 + $0x1c] sm:$0xf]
      %v394 = vunpack.c.l.bf16 %v378
      %v395 = vunpack.c.l.bf16 %v379
      %v396 = vunpack.c.l.bf16 %v380
      %v397 = vunpack.c.l.bf16 %v381
      %v398 = vunpack.c.l.bf16 %v382
      %v399 = vunpack.c.l.bf16 %v383
      %v400 = vunpack.c.l.bf16 %v384
      %v401 = vunpack.c.l.bf16 %v385
      %v402 = vunpack.c.l.bf16 %v386
      %v403 = vunpack.c.l.bf16 %v387
      %v404 = vunpack.c.l.bf16 %v388
      %v405 = vunpack.c.l.bf16 %v389
      %v406 = vunpack.c.l.bf16 %v390
      %v407 = vunpack.c.l.bf16 %v391
      %v408 = vunpack.c.l.bf16 %v392
      %v409 = vunpack.c.l.bf16 %v393
      %v410 = vadd.f32 %v394, %v402
      %v411 = vadd.f32 %v395, %v403
      %v412 = vadd.f32 %v396, %v404
      %v413 = vadd.f32 %v397, %v405
      %v414 = vadd.f32 %v398, %v406
      %v415 = vadd.f32 %v399, %v407
      %v416 = vadd.f32 %v400, %v408
      %v417 = vadd.f32 %v401, %v409
      %v418 = vpack.c.bf16 %v410, %v410
      %v419 = vpack.c.bf16 %v411, %v411
      %v420 = vpack.c.bf16 %v412, %v412
      %v421 = vpack.c.bf16 %v413, %v413
      %v422 = vpack.c.bf16 %v414, %v414
      %v423 = vpack.c.bf16 %v415, %v415
      %v424 = vpack.c.bf16 %v416, %v416
      %v425 = vpack.c.bf16 %v417, %v417
      %v426 = vld [vmem:[%s343] sm:$0xf]
      %v427 = vld [vmem:[%s343 + $0x4] sm:$0xf]
      %v428 = vld [vmem:[%s343 + $0x8] sm:$0xf]
      %v429 = vld [vmem:[%s343 + $0xc] sm:$0xf]
      %v430 = vld [vmem:[%s343 + $0x10] sm:$0xf]
      %v431 = vld [vmem:[%s343 + $0x14] sm:$0xf]
      %v432 = vld [vmem:[%s343 + $0x18] sm:$0xf]
      %v433 = vld [vmem:[%s343 + $0x1c] sm:$0xf]
      %v434 = vunpack.c.l.bf16 %v418
      %v435 = vunpack.c.l.bf16 %v419
      %v436 = vunpack.c.l.bf16 %v420
      %v437 = vunpack.c.l.bf16 %v421
      %v438 = vunpack.c.l.bf16 %v422
      %v439 = vunpack.c.l.bf16 %v423
      %v440 = vunpack.c.l.bf16 %v424
      %v441 = vunpack.c.l.bf16 %v425
      %v442 = vunpack.c.l.bf16 %v426
      %v443 = vunpack.c.l.bf16 %v427
      %v444 = vunpack.c.l.bf16 %v428
      %v445 = vunpack.c.l.bf16 %v429
      %v446 = vunpack.c.l.bf16 %v430
      %v447 = vunpack.c.l.bf16 %v431
      %v448 = vunpack.c.l.bf16 %v432
      %v449 = vunpack.c.l.bf16 %v433
      %v450 = vadd.f32 %v434, %v442
      %v451 = vadd.f32 %v435, %v443
      %v452 = vadd.f32 %v436, %v444
      %v453 = vadd.f32 %v437, %v445
      %v454 = vadd.f32 %v438, %v446
      %v455 = vadd.f32 %v439, %v447
      %v456 = vadd.f32 %v440, %v448
      %v457 = vadd.f32 %v441, %v449
      %v458 = vpack.c.bf16 %v451, %v450
      %v459 = vpack.c.bf16 %v453, %v452
      %v460 = vpack.c.bf16 %v455, %v454
      %v461 = vpack.c.bf16 %v457, %v456
      %v462 = vld [vmem:[%s5] sm:$0x3]
      %vm463 = vcmask 31744
      %v465 = vsel %vm463, %v458, 0
      %v468 = vsel %vm463, %v459, 0
      %v471 = vsel %vm463, %v460, 0
      %v474 = vsel %vm463, %v461, 0
      %vm476 = vcmask 1041408
      %v478 = vsel %vm476, %v462, 0
      %480 = vmatpush.bf16.msra.mxu0 0
      %481 = vmatpush.bf16.msra.mxu0 0
      %482 = vmatpush.bf16.msra.mxu0 0
      %483 = vmatpush.bf16.msra.mxu0 0
      %484 = vmatpush.bf16.msra.mxu0 0
      %485 = vmatpush.bf16.msra.mxu0 0
      %486 = vmatpush.bf16.msra.mxu0 0
      %487 = vmatpush.bf16.msra.mxu0 %v478
      %488 = vmatmul.bf16.gmra.mxu0 %v465
      %v489 = vpop.f32.mrf.mxu0
      %v490 = vadd.f32 0.0, %v489
      %v491 = vpop.f32.mrf.mxu0
      %v492 = vadd.f32 0.0, %v491
      %493 = vmatmul.bf16.gmra.mxu0 %v468
      %v494 = vpop.f32.mrf.mxu0
      %v495 = vadd.f32 0.0, %v494
      %v496 = vpop.f32.mrf.mxu0
      %v497 = vadd.f32 0.0, %v496
      %498 = vmatmul.bf16.gmra.mxu0 %v471
      %v499 = vpop.f32.mrf.mxu0
      %v500 = vadd.f32 0.0, %v499
      %v501 = vpop.f32.mrf.mxu0
      %v502 = vadd.f32 0.0, %v501
      %503 = vmatmul.bf16.gmra.mxu0 %v474
      %v504 = vpop.f32.mrf.mxu0
      %v505 = vadd.f32 0.0, %v504
      %v506 = vpop.f32.mrf.mxu0
      %v507 = vadd.f32 0.0, %v506
      %508 = vdwg.mxu0
      %v517 = vunpack.c.l.b16 %v352
      %v518 = vunpack.c.h.b16 %v352
      %v519 = vunpack.c.l.b16 %v353
      %v520 = vunpack.c.h.b16 %v353
      %v521 = vunpack.c.l.b16 %v354
      %v522 = vunpack.c.h.b16 %v354
      %v523 = vunpack.c.l.b16 %v355
      %v524 = vunpack.c.h.b16 %v355
      %v525 = vunpack.c.l.b16 %v356
      %v526 = vunpack.c.h.b16 %v356
      %v527 = vunpack.c.l.b16 %v357
      %v528 = vunpack.c.h.b16 %v357
      %v529 = vunpack.c.l.b16 %v358
      %v530 = vunpack.c.h.b16 %v358
      %v531 = vunpack.c.l.b16 %v359
      %v532 = vunpack.c.h.b16 %v359
      %v533 = vpack.c.b16 %v519, %v517
      %v534 = vpack.c.b16 %v520, %v518
      %v535 = vpack.c.b16 %v523, %v521
      %v536 = vpack.c.b16 %v524, %v522
      %v537 = vpack.c.b16 %v527, %v525
      %v538 = vpack.c.b16 %v528, %v526
      %v539 = vpack.c.b16 %v531, %v529
      %v540 = vpack.c.b16 %v532, %v530
      %v563 = vunpack.c.l.b16 %v360
      %v564 = vunpack.c.l.b16 %v361
      %v565 = vunpack.c.l.b16 %v362
      %v566 = vunpack.c.l.b16 %v363
      %v567 = vunpack.c.l.b16 %v364
      %v568 = vunpack.c.l.b16 %v365
      %v569 = vunpack.c.l.b16 %v366
      %v570 = vunpack.c.l.b16 %v367
      %v571 = vunpack.c.l.b16 %v368
      %v572 = vunpack.c.l.b16 %v369
      %v573 = vunpack.c.l.b16 %v370
      %v574 = vunpack.c.l.b16 %v371
      %v575 = vunpack.c.l.b16 %v372
      %v576 = vunpack.c.l.b16 %v373
      %v577 = vunpack.c.l.b16 %v374
      %v578 = vunpack.c.l.b16 %v375
      %v579 = vunpack.c.l.b16 %v376
      %v580 = vunpack.c.l.b16 %v377
      %v581 = vpack.c.b16 %v564, %v563
      %v582 = vpack.c.b16 %v566, %v565
      %v583 = vpack.c.b16 %v568, %v567
      %v584 = vpack.c.b16 %v570, %v569
      %v585 = vpack.c.b16 %v572, %v571
      %v586 = vpack.c.b16 %v574, %v573
      %v587 = vpack.c.b16 %v576, %v575
      %v588 = vpack.c.b16 %v578, %v577
      %v589 = vpack.c.b16 %v580, %v579
      %vm599 = vcmask 130048
      %v601 = vsel %vm599, %v534, 0
      %v604 = vsel %vm599, %v536, 0
      %v607 = vsel %vm599, %v538, 0
      %v610 = vsel %vm599, %v540, 0
      %612 = vmatpush.bf16.msra.mxu0 %v588
      %613 = vmatpush.bf16.msra.mxu0 %v587
      %614 = vmatpush.bf16.msra.mxu0 %v586
      %615 = vmatpush.bf16.msra.mxu0 %v585
      %616 = vmatpush.bf16.msra.mxu0 %v584
      %617 = vmatpush.bf16.msra.mxu0 %v583
      %618 = vmatpush.bf16.msra.mxu0 %v582
      %619 = vmatpush.bf16.msra.mxu0 %v581
      %620 = vmatmul.bf16.gmra.mxu0 %v533
      %v621 = vpop.f32.mrf.mxu0
      %v622 = vadd.f32 %v490, %v621
      %v623 = vpop.f32.mrf.mxu0
      %v624 = vadd.f32 %v492, %v623
      %625 = vmatmul.bf16.gmra.mxu0 %v535
      %v626 = vpop.f32.mrf.mxu0
      %v627 = vadd.f32 %v495, %v626
      %v628 = vpop.f32.mrf.mxu0
      %v629 = vadd.f32 %v497, %v628
      %630 = vmatmul.bf16.gmra.mxu0 %v537
      %v631 = vpop.f32.mrf.mxu0
      %v632 = vadd.f32 %v500, %v631
      %v633 = vpop.f32.mrf.mxu0
      %v634 = vadd.f32 %v502, %v633
      %635 = vmatmul.bf16.gmra.mxu0 %v539
      %v636 = vpop.f32.mrf.mxu0
      %v637 = vadd.f32 %v505, %v636
      %v638 = vpop.f32.mrf.mxu0
      %v639 = vadd.f32 %v507, %v638
      %640 = vdwg.mxu0
      %641 = vmatpush.bf16.msra.mxu0 0
      %642 = vmatpush.bf16.msra.mxu0 0
      %643 = vmatpush.bf16.msra.mxu0 0
      %644 = vmatpush.bf16.msra.mxu0 0
      %645 = vmatpush.bf16.msra.mxu0 0
      %646 = vmatpush.bf16.msra.mxu0 0
      %647 = vmatpush.bf16.msra.mxu0 0
      %648 = vmatpush.bf16.msra.mxu0 %v589
      %649 = vmatmul.bf16.gmra.mxu0 %v601
      %v650 = vpop.f32.mrf.mxu0
      %v651 = vadd.f32 %v622, %v650
      %v652 = vpop.f32.mrf.mxu0
      %v653 = vadd.f32 %v624, %v652
      %654 = vmatmul.bf16.gmra.mxu0 %v604
      %v655 = vpop.f32.mrf.mxu0
      %v656 = vadd.f32 %v627, %v655
      %v657 = vpop.f32.mrf.mxu0
      %v658 = vadd.f32 %v629, %v657
      %659 = vmatmul.bf16.gmra.mxu0 %v607
      %v660 = vpop.f32.mrf.mxu0
      %v661 = vadd.f32 %v632, %v660
      %v662 = vpop.f32.mrf.mxu0
      %v663 = vadd.f32 %v634, %v662
      %664 = vmatmul.bf16.gmra.mxu0 %v610
      %v665 = vpop.f32.mrf.mxu0
      %v666 = vadd.f32 %v637, %v665
      %v667 = vpop.f32.mrf.mxu0
      %v668 = vadd.f32 %v639, %v667
      %669 = vdwg.mxu0
      %v670 = vld [vmem:[%s6] sm:$0x1]
      %v672 = vperm.slane %v670, 0
      %v674 = vadd.f32 %v651, %v672
      %v675 = vadd.f32 %v653, %v672
      %v676 = vadd.f32 %v656, %v672
      %v677 = vadd.f32 %v658, %v672
      %v678 = vadd.f32 %v661, %v672
      %v679 = vadd.f32 %v663, %v672
      %v680 = vadd.f32 %v666, %v672
      %v681 = vadd.f32 %v668, %v672
      %v682 = vmax.f32 %v674, 0.0
      %v683 = vmax.f32 %v675, 0.0
      %v684 = vmax.f32 %v676, 0.0
      %v685 = vmax.f32 %v677, 0.0
      %v686 = vmax.f32 %v678, 0.0
      %v687 = vmax.f32 %v679, 0.0
      %v688 = vmax.f32 %v680, 0.0
      %v689 = vmax.f32 %v681, 0.0
      %v690 = vpack.c.bf16 %v682, %v682
      %v691 = vpack.c.bf16 %v683, %v683
      %v692 = vpack.c.bf16 %v684, %v684
      %v693 = vpack.c.bf16 %v685, %v685
      %v694 = vpack.c.bf16 %v686, %v686
      %v695 = vpack.c.bf16 %v687, %v687
      %v696 = vpack.c.bf16 %v688, %v688
      %v697 = vpack.c.bf16 %v689, %v689
      %vm698 = vcmask 125952
      %699 = vst.msk [vmem:[%s349] sm:$0xf] %vm698, %v690
      %700 = vst.msk [vmem:[%s349 + $0x4] sm:$0xf] %vm698, %v691
      %701 = vst.msk [vmem:[%s349 + $0x8] sm:$0xf] %vm698, %v692
      %702 = vst.msk [vmem:[%s349 + $0xc] sm:$0xf] %vm698, %v693
      %703 = vst.msk [vmem:[%s349 + $0x10] sm:$0xf] %vm698, %v694
      %704 = vst.msk [vmem:[%s349 + $0x14] sm:$0xf] %vm698, %v695
      %705 = vst.msk [vmem:[%s349 + $0x18] sm:$0xf] %vm698, %v696
      %706 = vst.msk [vmem:[%s349 + $0x1c] sm:$0xf] %vm698, %v697
      %s707 = smul.u32 8, %s18
      %p708 = scmp.lt.s32.totalorder %s707, 15
      %s709 = scalar_select %p708, %s707, 15
      %s710 = smul.addr %s709, 4
      %s711 = scalar_lea.vmem %s7, %s710
      // Predicated region
      $region49: #{_lambda_.19} parent=47 // pred_check
        %p712 = pneg %p203
      $region50: #{_lambda_.19} parent=47 // pred_check_branch
        %714 = sbr.rel (%p712) target = $region52
      $region51: #{_lambda_.19} parent=47 // pred_region
        %s715 = smul.u32 8, %s18
      $region52: #{_lambda_.19} parent=47 // pred_fallthru
        _
    $region48: #{_lambda_.19} parent=5 // pred_fallthru
      _
    %p716 = scmp.le.s32.totalorder 2, %s13
    // Predicated region
    $region53: #{_lambda_.19} parent=5 // pred_check
      %p717 = pneg %p716
    $region54: #{_lambda_.19} parent=5 // pred_check_branch
      %719 = sbr.rel (%p717) target = $region56
    $region55: #{_lambda_.19} parent=5 // pred_region
      %s720 = ssub.s32 %s13, 2
      // Predicated region
      $region57: #{_lambda_.19} parent=55 // pred_check
        %p721 = pneg %p209
      $region58: #{_lambda_.19} parent=55 // pred_check_branch
        %723 = sbr.rel (%p721) target = $region60
      $region59: #{_lambda_.19} parent=55 // pred_region
        %s724 = smul.u32 8, %s19
        %p725 = scmp.lt.s32.totalorder %s724, 15
        %s726 = scalar_select %p725, %s724, 15
        %s727 = smul.addr %s726, 4
        %s728 = scalar_lea.vmem %s7, %s727
      $region60: #{_lambda_.19} parent=55 // pred_fallthru
        _
    $region56: #{_lambda_.19} parent=5 // pred_fallthru
      _
  $region6: #{_lambda_.19} parent=0 // loop_footer
    %s17 = sadd.s32 1, %s13
  $region7: #{_lambda_.19} parent=0 // loop_footer_branch
    %12 = sbr.rel target = $region3
  $region8: #{_lambda_.19} parent=0 // loop_exit
    _

// kernel: _lambda_.20
$region0: #{_lambda_.20}
  #allocation0 [shape = 'u32[]', space=smem, size = 0x4, offset = 0x4, fixed_abs, tag = 'smem constant byte address 0x4 - core index']
  #allocation1 [shape = 'u32[72,128]{1,0:T(1,128)}', space=vmem, size = 0x9000, scoped, tag = 'internal scratch']
  %s0 = inlined_call_operand.vmem [shape: bf16[128,8], index: 0, kind: input, shape index: {}]
  %s1 = inlined_call_operand.vmem [shape: bf16[8,16], index: 1, kind: input, shape index: {}]
  %s2 = inlined_call_operand.vmem [shape: f32[1,16], index: 2, kind: input, shape index: {}]
  %s3 = inlined_call_operand.vmem [shape: bf16[128,16], index: 3, kind: output, shape index: {}]
  %s4 = sld [smem:[#allocation0]]
  $region45: #{_lambda_.20} parent=0
    _
  %s6 = ssub.s32 1, %s4
  %s7 = scalar_select 0, %s6, %s4
  loop: start=0, step=1, limit=4
  $region2: #{_lambda_.20} parent=0 // loop_pre_header
    _
  $region3: #{_lambda_.20} parent=0 // loop_header
    %s9 = sphi 0, %s13
    %p10 = scmp.ge.s32.totalorder %s9, 4
    %s19 = sphi 0, %s21
    %s22 = sphi 0, %s19
    %s23 = sphi 0, %s22
    %s39 = sphi 0, %s23
    %s43 = sphi 0, %s43
    %s45 = sphi 0, %s43
    %s46 = sphi 0, %s45
    %s60 = sphi 0, %s46
    %s64 = sphi 0, %s64
    %s66 = sphi 0, %s64
    %s67 = sphi 0, %s66
    %s81 = sphi 0, %s67
    %s87 = sphi 0, %s89
    %s90 = sphi 0, %s87
    %s91 = sphi 0, %s90
    %s107 = sphi 0, %s91
  $region4: #{_lambda_.20} parent=0 // loop_header_branch
    %12 = sbr.rel (%p10) target = $region8
  $region5: #{_lambda_.20} parent=0 // loop_body
    %s14 = ssub.s32 %s9, 1
    %s15 = ssub.s32 %s9, 2
    %s16 = sadd.s32 %s9, 1
    %s17 = ssub.s32 %s9, %s16
    %p18 = scmp.eq.s32.totalorder %s17, 0
    %s20 = sadd.s32 %s19, 1
    %s21 = scalar_select %p18, %s19, %s20
    %p24 = pneg %p18
    %p25 = scmp.eq.s32.totalorder %s9, 1
    %p26 = por %p24, %p25
    %p27 = scmp.ne.s32.totalorder %s19, %s22
    %p28 = scmp.eq.s32.totalorder %s9, 0
    %p29 = por %p27, %p28
    %p30 = scmp.ne.s32.totalorder %s19, %s22
    %p31 = scmp.eq.s32.totalorder %s14, 1
    %p32 = por %p30, %p31
    %p33 = scmp.ne.s32.totalorder %s22, %s23
    %p34 = scmp.eq.s32.totalorder %s14, 0
    %p35 = por %p33, %p34
    %p36 = scmp.ne.s32.totalorder %s22, %s23
    %p37 = scmp.eq.s32.totalorder %s15, 1
    %p38 = por %p36, %p37
    %p40 = scmp.ne.s32.totalorder %s23, %s39
    %p41 = scmp.eq.s32.totalorder %s15, 0
    %p42 = por %p40, %p41
    %s44 = sadd.s32 %s43, 1
    %p47 = scmp.eq.s32.totalorder %s9, 1
    %p48 = scmp.ne.s32.totalorder %s43, %s45
    %p49 = scmp.eq.s32.totalorder %s9, 0
    %p50 = por %p48, %p49
    %p51 = scmp.ne.s32.totalorder %s43, %s45
    %p52 = scmp.eq.s32.totalorder %s14, 1
    %p53 = por %p51, %p52
    %p54 = scmp.ne.s32.totalorder %s45, %s46
    %p55 = scmp.eq.s32.totalorder %s14, 0
    %p56 = por %p54, %p55
    %p57 = scmp.ne.s32.totalorder %s45, %s46
    %p58 = scmp.eq.s32.totalorder %s15, 1
    %p59 = por %p57, %p58
    %p61 = scmp.ne.s32.totalorder %s46, %s60
    %p62 = scmp.eq.s32.totalorder %s15, 0
    %p63 = por %p61, %p62
    %s65 = sadd.s32 %s64, 1
    %p68 = scmp.eq.s32.totalorder %s9, 1
    %p69 = scmp.ne.s32.totalorder %s64, %s66
    %p70 = scmp.eq.s32.totalorder %s9, 0
    %p71 = por %p69, %p70
    %p72 = scmp.ne.s32.totalorder %s64, %s66
    %p73 = scmp.eq.s32.totalorder %s14, 1
    %p74 = por %p72, %p73
    %p75 = scmp.ne.s32.totalorder %s66, %s67
    %p76 = scmp.eq.s32.totalorder %s14, 0
    %p77 = por %p75, %p76
    %p78 = scmp.ne.s32.totalorder %s66, %s67
    %p79 = scmp.eq.s32.totalorder %s15, 1
    %p80 = por %p78, %p79
    %p82 = scmp.ne.s32.totalorder %s67, %s81
    %p83 = scmp.eq.s32.totalorder %s15, 0
    %p84 = por %p82, %p83
    %s85 = ssub.s32 %s9, %s16
    %p86 = scmp.eq.s32.totalorder %s85, 0
    %s88 = sadd.s32 %s87, 1
    %s89 = scalar_select %p86, %s87, %s88
    %p92 = pneg %p86
    %p93 = scmp.eq.s32.totalorder %s9, 1
    %p94 = por %p92, %p93
    %p95 = scmp.ne.s32.totalorder %s87, %s90
    %p96 = scmp.eq.s32.totalorder %s9, 0
    %p97 = por %p95, %p96
    %p98 = scmp.ne.s32.totalorder %s87, %s90
    %p99 = scmp.eq.s32.totalorder %s14, 1
    %p100 = por %p98, %p99
    %p101 = scmp.ne.s32.totalorder %s90, %s91
    %p102 = scmp.eq.s32.totalorder %s14, 0
    %p103 = por %p101, %p102
    %p104 = scmp.ne.s32.totalorder %s90, %s91
    %p105 = scmp.eq.s32.totalorder %s15, 1
    %p106 = por %p104, %p105
    %p108 = scmp.ne.s32.totalorder %s91, %s107
    %p109 = scmp.eq.s32.totalorder %s15, 0
    %p110 = por %p108, %p109
    %p111 = scmp.le.s32.totalorder 1, %s9
    %p112 = scmp.lt.s32.totalorder %s9, 3
    %p113 = pnand %p111, %p112
    %p114 = pneg %p113
    // Predicated region
    $region9: #{_lambda_.20} parent=5 // pred_check
      _
    $region10: #{_lambda_.20} parent=5 // pred_check_branch
      %116 = sbr.rel (%p113) target = $region12
    $region11: #{_lambda_.20} parent=5 // pred_region
      %s117 = ssub.s32 %s9, 1
      // Predicated region
      $region13: #{_lambda_.20} parent=11 // pred_check
        %p118 = pneg %p56
      $region14: #{_lambda_.20} parent=11 // pred_check_branch
        %120 = sbr.rel (%p118) target = $region16
      $region15: #{_lambda_.20} parent=11 // pred_region
        _
      $region16: #{_lambda_.20} parent=11 // pred_fallthru
        _
      // Predicated region
      $region17: #{_lambda_.20} parent=11 // pred_check
        %p121 = pneg %p77
      $region18: #{_lambda_.20} parent=11 // pred_check_branch
        %123 = sbr.rel (%p121) target = $region20
      $region19: #{_lambda_.20} parent=11 // pred_region
        _
      $region20: #{_lambda_.20} parent=11 // pred_fallthru
        _
    $region12: #{_lambda_.20} parent=5 // pred_fallthru
      _
    %p124 = scmp.lt.s32.totalorder %s9, 2
    // Predicated region
    $region21: #{_lambda_.20} parent=5 // pred_check
      %p125 = pneg %p124
    $region22: #{_lambda_.20} parent=5 // pred_check_branch
      %127 = sbr.rel (%p125) target = $region24
    $region23: #{_lambda_.20} parent=5 // pred_region
      // Predicated region
      $region25: #{_lambda_.20} parent=23 // pred_check
        %p128 = pneg %p29
      $region26: #{_lambda_.20} parent=23 // pred_check_branch
        %130 = sbr.rel (%p128) target = $region28
      $region27: #{_lambda_.20} parent=23 // pred_region
        %s131 = smul.u32 8, %s9
        %p132 = scmp.lt.s32.totalorder %s131, 15
        %s133 = scalar_select %p132, %s131, 15
        %s134 = smul.addr %s133, 4
        %s135 = scalar_lea.vmem %s0, %s134
        %s136 = smul.u32 8, %s9
      $region28: #{_lambda_.20} parent=23 // pred_fallthru
        _
    $region24: #{_lambda_.20} parent=5 // pred_fallthru
      _
    %p137 = scmp.le.s32.totalorder 1, %s9
    %p138 = scmp.lt.s32.totalorder %s9, 3
    %p139 = pnand %p137, %p138
    %p140 = pneg %p139
    // Predicated region
    $region29: #{_lambda_.20} parent=5 // pred_check
      _
    $region30: #{_lambda_.20} parent=5 // pred_check_branch
      %142 = sbr.rel (%p139) target = $region32
    $region31: #{_lambda_.20} parent=5 // pred_region
      %s143 = ssub.s32 %s9, 1
      %s144 = smul.u32 8, %s14
      %p145 = scmp.lt.s32.totalorder %s144, 15
      %s146 = scalar_select %p145, %s144, 15
      %s147 = smul.addr %s146, 4
      %s148 = scalar_lea.vmem %s0, %s147
      %p149 = pneg %p35
      %p150 = pneg %p32
      %p151 = pneg %p56
      %p152 = pneg %p53
      %p153 = pneg %p77
      %p154 = pneg %p74
      %p155 = pneg %p103
      %p156 = pneg %p100
      %s157 = smul.u32 8, %s14
      %p158 = scmp.lt.s32.totalorder %s157, 15
      %s159 = scalar_select %p158, %s157, 15
      %s160 = smul.addr %s159, 4
      %s161 = scalar_lea.vmem %s3, %s160
      %s162 = smul.u32 8, %s14
      %p163 = scmp.lt.s32.totalorder %s162, 15
      %s164 = scalar_select %p163, %s162, 15
      %s165 = smul.addr %s164, 4
      %s166 = scalar_lea.vmem %s0, %s165
      %s167 = smul.u32 8, %s14
      %s168 = smul.u32 8, %s14
      %p169 = scmp.lt.s32.totalorder %s168, 15
      %s170 = scalar_select %p169, %s168, 15
      %s171 = smul.addr %s170, 4
      %s172 = scalar_lea.vmem %s3, %s171
      %s173 = smul.u32 8, %s14
      %v175 = vld [vmem:[%s166] sm:$0xf]
      %v176 = vld [vmem:[%s166 + $0x4] sm:$0xf]
      %v177 = vld [vmem:[%s166 + $0x8] sm:$0xf]
      %v178 = vld [vmem:[%s166 + $0xc] sm:$0xf]
      %v179 = vld [vmem:[%s166 + $0x10] sm:$0xf]
      %v180 = vld [vmem:[%s166 + $0x14] sm:$0xf]
      %v181 = vld [vmem:[%s166 + $0x18] sm:$0xf]
      %v182 = vld [vmem:[%s166 + $0x1c] sm:$0xf]
      %v183 = vld [vmem:[%s1] sm:$0xf]
      %v184 = vld [vmem:[%s2] sm:$0x1]
      %v186 = vperm.slane %v184, 0
      %v196 = vunpack.c.l.b16 %v175
      %v197 = vunpack.c.l.b16 %v176
      %v198 = vunpack.c.l.b16 %v177
      %v199 = vunpack.c.l.b16 %v178
      %v200 = vunpack.c.l.b16 %v179
      %v201 = vunpack.c.l.b16 %v180
      %v202 = vunpack.c.l.b16 %v181
      %v203 = vunpack.c.l.b16 %v182
      %v204 = vpack.c.b16 %v197, %v196
      %v205 = vpack.c.b16 %v199, %v198
      %v206 = vpack.c.b16 %v201, %v200
      %v207 = vpack.c.b16 %v203, %v202
      %vm208 = vcmask 64512
      %v210 = vsel %vm208, %v204, 0
      %v213 = vsel %vm208, %v205, 0
      %v216 = vsel %vm208, %v206, 0
      %v219 = vsel %vm208, %v207, 0
      %vm221 = vcmask 1043456
      %v223 = vsel %vm221, %v183, 0
      %225 = vmatpush.bf16.msra.mxu0 0
      %226 = vmatpush.bf16.msra.mxu0 0
      %227 = vmatpush.bf16.msra.mxu0 0
      %228 = vmatpush.bf16.msra.mxu0 0
      %229 = vmatpush.bf16.msra.mxu0 0
      %230 = vmatpush.bf16.msra.mxu0 0
      %231 = vmatpush.bf16.msra.mxu0 0
      %232 = vmatpush.bf16.msra.mxu0 %v223
      %233 = vmatmul.bf16.gmra.mxu0 %v210
      %v234 = vpop.f32.mrf.mxu0
      %v235 = vadd.f32 %v186, %v234
      %v236 = vpop.f32.mrf.mxu0
      %v237 = vadd.f32 %v186, %v236
      %238 = vmatmul.bf16.gmra.mxu0 %v213
      %v239 = vpop.f32.mrf.mxu0
      %v240 = vadd.f32 %v186, %v239
      %v241 = vpop.f32.mrf.mxu0
      %v242 = vadd.f32 %v186, %v241
      %243 = vmatmul.bf16.gmra.mxu0 %v216
      %v244 = vpop.f32.mrf.mxu0
      %v245 = vadd.f32 %v186, %v244
      %v246 = vpop.f32.mrf.mxu0
      %v247 = vadd.f32 %v186, %v246
      %248 = vmatmul.bf16.gmra.mxu0 %v219
      %v249 = vpop.f32.mrf.mxu0
      %v250 = vadd.f32 %v186, %v249
      %v251 = vpop.f32.mrf.mxu0
      %v252 = vadd.f32 %v186, %v251
      %253 = vdwg.mxu0
      %v254 = vmax.f32 %v235, 0.0
      %v255 = vmax.f32 %v237, 0.0
      %v256 = vmax.f32 %v240, 0.0
      %v257 = vmax.f32 %v242, 0.0
      %v258 = vmax.f32 %v245, 0.0
      %v259 = vmax.f32 %v247, 0.0
      %v260 = vmax.f32 %v250, 0.0
      %v261 = vmax.f32 %v252, 0.0
      %v262 = vpack.c.bf16 %v254, %v254
      %v263 = vpack.c.bf16 %v255, %v255
      %v264 = vpack.c.bf16 %v256, %v256
      %v265 = vpack.c.bf16 %v257, %v257
      %v266 = vpack.c.bf16 %v258, %v258
      %v267 = vpack.c.bf16 %v259, %v259
      %v268 = vpack.c.bf16 %v260, %v260
      %v269 = vpack.c.bf16 %v261, %v261
      %vm270 = vcmask 125952
      %271 = vst.msk [vmem:[%s172] sm:$0xf] %vm270, %v262
      %272 = vst.msk [vmem:[%s172 + $0x4] sm:$0xf] %vm270, %v263
      %273 = vst.msk [vmem:[%s172 + $0x8] sm:$0xf] %vm270, %v264
      %274 = vst.msk [vmem:[%s172 + $0xc] sm:$0xf] %vm270, %v265
      %275 = vst.msk [vmem:[%s172 + $0x10] sm:$0xf] %vm270, %v266
      %276 = vst.msk [vmem:[%s172 + $0x14] sm:$0xf] %vm270, %v267
      %277 = vst.msk [vmem:[%s172 + $0x18] sm:$0xf] %vm270, %v268
      %278 = vst.msk [vmem:[%s172 + $0x1c] sm:$0xf] %vm270, %v269
      %s279 = smul.u32 8, %s14
      %p280 = scmp.lt.s32.totalorder %s279, 15
      %s281 = scalar_select %p280, %s279, 15
      %s282 = smul.addr %s281, 4
      %s283 = scalar_lea.vmem %s3, %s282
      // Predicated region
      $region33: #{_lambda_.20} parent=31 // pred_check
        %p284 = pneg %p100
      $region34: #{_lambda_.20} parent=31 // pred_check_branch
        %286 = sbr.rel (%p284) target = $region36
      $region35: #{_lambda_.20} parent=31 // pred_region
        %s287 = smul.u32 8, %s14
      $region36: #{_lambda_.20} parent=31 // pred_fallthru
        _
    $region32: #{_lambda_.20} parent=5 // pred_fallthru
      _
    %p288 = scmp.le.s32.totalorder 2, %s9
    // Predicated region
    $region37: #{_lambda_.20} parent=5 // pred_check
      %p289 = pneg %p288
    $region38: #{_lambda_.20} parent=5 // pred_check_branch
      %291 = sbr.rel (%p289) target = $region40
    $region39: #{_lambda_.20} parent=5 // pred_region
      %s292 = ssub.s32 %s9, 2
      // Predicated region
      $region41: #{_lambda_.20} parent=39 // pred_check
        %p293 = pneg %p106
      $region42: #{_lambda_.20} parent=39 // pred_check_branch
        %295 = sbr.rel (%p293) target = $region44
      $region43: #{_lambda_.20} parent=39 // pred_region
        %s296 = smul.u32 8, %s15
        %p297 = scmp.lt.s32.totalorder %s296, 15
        %s298 = scalar_select %p297, %s296, 15
        %s299 = smul.addr %s298, 4
        %s300 = scalar_lea.vmem %s3, %s299
      $region44: #{_lambda_.20} parent=39 // pred_fallthru
        _
    $region40: #{_lambda_.20} parent=5 // pred_fallthru
      _
  $region6: #{_lambda_.20} parent=0 // loop_footer
    %s13 = sadd.s32 1, %s9
  $region7: #{_lambda_.20} parent=0 // loop_footer_branch
    %8 = sbr.rel target = $region3
  $region8: #{_lambda_.20} parent=0 // loop_exit
    _

// kernel: _lambda_.21
$region0: #{_lambda_.21}
  #allocation0 [shape = 'u32[]', space=smem, size = 0x4, offset = 0x4, fixed_abs, tag = 'smem constant byte address 0x4 - core index']
  #allocation1 [shape = 'u32[72,128]{1,0:T(1,128)}', space=vmem, size = 0x9000, scoped, tag = 'internal scratch']
  %s0 = inlined_call_operand.vmem [shape: bf16[80,16], index: 0, kind: input, shape index: {}]
  %s1 = inlined_call_operand.vmem [shape: bf16[80,16], index: 1, kind: input, shape index: {}]
  %s2 = inlined_call_operand.vmem [shape: bf16[16,32], index: 2, kind: input, shape index: {}]
  %s3 = inlined_call_operand.vmem [shape: bf16[16,32], index: 3, kind: input, shape index: {}]
  %s4 = inlined_call_operand.vmem [shape: f32[1,32], index: 4, kind: input, shape index: {}]
  %s5 = inlined_call_operand.vmem [shape: bf16[80,32], index: 5, kind: output, shape index: {}]
  %s6 = sld [smem:[#allocation0]]
  $region30: #{_lambda_.21} parent=0
    _
  %s8 = ssub.s32 1, %s6
  %s9 = scalar_select 0, %s8, %s6
  // Predicated region
  $region2: #{_lambda_.21} parent=0 // pred_check
    _
  $region3: #{_lambda_.21} parent=0 // pred_check_branch
    %11 = sbr.rel (0) target = $region5
  $region4: #{_lambda_.21} parent=0 // pred_region
    _
  $region5: #{_lambda_.21} parent=0 // pred_fallthru
    _
  // Predicated region
  $region6: #{_lambda_.21} parent=0 // pred_check
    _
  $region7: #{_lambda_.21} parent=0 // pred_check_branch
    %13 = sbr.rel (0) target = $region9
  $region8: #{_lambda_.21} parent=0 // pred_region
    _
  $region9: #{_lambda_.21} parent=0 // pred_fallthru
    _
  // Predicated region
  $region10: #{_lambda_.21} parent=0 // pred_check
    _
  $region11: #{_lambda_.21} parent=0 // pred_check_branch
    %15 = sbr.rel (0) target = $region13
  $region12: #{_lambda_.21} parent=0 // pred_region
    _
  $region13: #{_lambda_.21} parent=0 // pred_fallthru
    _
  // Predicated region
  $region14: #{_lambda_.21} parent=0 // pred_check
    _
  $region15: #{_lambda_.21} parent=0 // pred_check_branch
    %17 = sbr.rel (0) target = $region17
  $region16: #{_lambda_.21} parent=0 // pred_region
    _
  $region17: #{_lambda_.21} parent=0 // pred_fallthru
    _
  // Predicated region
  $region18: #{_lambda_.21} parent=0 // pred_check
    _
  $region19: #{_lambda_.21} parent=0 // pred_check_branch
    %19 = sbr.rel (0) target = $region21
  $region20: #{_lambda_.21} parent=0 // pred_region
    _
  $region21: #{_lambda_.21} parent=0 // pred_fallthru
    _
  %v21 = vld [vmem:[%s0] sm:$0xf]
  %v22 = vld [vmem:[%s0 + $0x4] sm:$0xf]
  %v23 = vld [vmem:[%s0 + $0x8] sm:$0xf]
  %v24 = vld [vmem:[%s0 + $0xc] sm:$0xf]
  %v25 = vld [vmem:[%s0 + $0x10] sm:$0xf]
  %v26 = vld [vmem:[%s0 + $0x14] sm:$0xf]
  %v27 = vld [vmem:[%s0 + $0x18] sm:$0xf]
  %v28 = vld [vmem:[%s0 + $0x1c] sm:$0xf]
  %v29 = vld [vmem:[%s0 + $0x20] sm:$0xf]
  %v30 = vld [vmem:[%s0 + $0x24] sm:$0xf]
  %v31 = vld [vmem:[%s2] sm:$0xf]
  %v32 = vld [vmem:[%s2 + $0x4] sm:$0xf]
  %v33 = vld [vmem:[%s1] sm:$0xf]
  %v34 = vld [vmem:[%s1 + $0x4] sm:$0xf]
  %v35 = vld [vmem:[%s1 + $0x8] sm:$0xf]
  %v36 = vld [vmem:[%s1 + $0xc] sm:$0xf]
  %v37 = vld [vmem:[%s1 + $0x10] sm:$0xf]
  %v38 = vld [vmem:[%s1 + $0x14] sm:$0xf]
  %v39 = vld [vmem:[%s1 + $0x18] sm:$0xf]
  %v40 = vld [vmem:[%s1 + $0x1c] sm:$0xf]
  %v41 = vld [vmem:[%s1 + $0x20] sm:$0xf]
  %v42 = vld [vmem:[%s1 + $0x24] sm:$0xf]
  %v43 = vld [vmem:[%s3] sm:$0xf]
  %v44 = vld [vmem:[%s3 + $0x4] sm:$0xf]
  %v55 = vunpack.c.l.b16 %v33
  %v56 = vunpack.c.l.b16 %v34
  %v57 = vunpack.c.l.b16 %v35
  %v58 = vunpack.c.l.b16 %v36
  %v59 = vunpack.c.l.b16 %v37
  %v60 = vunpack.c.l.b16 %v38
  %v61 = vunpack.c.l.b16 %v39
  %v62 = vunpack.c.l.b16 %v40
  %v63 = vunpack.c.l.b16 %v41
  %v64 = vunpack.c.l.b16 %v42
  %v65 = vpack.c.b16 %v56, %v55
  %v66 = vpack.c.b16 %v58, %v57
  %v67 = vpack.c.b16 %v60, %v59
  %v68 = vpack.c.b16 %v62, %v61
  %v69 = vpack.c.b16 %v64, %v63
  %v72 = vunpack.c.l.b16 %v43
  %v73 = vunpack.c.l.b16 %v44
  %v74 = vpack.c.b16 %v73, %v72
  %vm76 = vcmask 130048
  %v78 = vsel %vm76, %v65, 0
  %v81 = vsel %vm76, %v66, 0
  %v84 = vsel %vm76, %v67, 0
  %v87 = vsel %vm76, %v68, 0
  %v90 = vsel %vm76, %v69, 0
  %92 = vmatpush.bf16.msra.mxu0 0
  %93 = vmatpush.bf16.msra.mxu0 0
  %94 = vmatpush.bf16.msra.mxu0 0
  %95 = vmatpush.bf16.msra.mxu0 0
  %96 = vmatpush.bf16.msra.mxu0 0
  %97 = vmatpush.bf16.msra.mxu0 0
  %98 = vmatpush.bf16.msra.mxu0 0
  %99 = vmatpush.bf16.msra.mxu0 %v74
  %100 = vmatmul.bf16.gmra.mxu0 %v78
  %v101 = vpop.f32.mrf.mxu0
  %v102 = vadd.f32 0.0, %v101
  %v103 = vpop.f32.mrf.mxu0
  %v104 = vadd.f32 0.0, %v103
  %105 = vmatmul.bf16.gmra.mxu0 %v81
  %v106 = vpop.f32.mrf.mxu0
  %v107 = vadd.f32 0.0, %v106
  %v108 = vpop.f32.mrf.mxu0
  %v109 = vadd.f32 0.0, %v108
  %110 = vmatmul.bf16.gmra.mxu0 %v84
  %v111 = vpop.f32.mrf.mxu0
  %v112 = vadd.f32 0.0, %v111
  %v113 = vpop.f32.mrf.mxu0
  %v114 = vadd.f32 0.0, %v113
  %115 = vmatmul.bf16.gmra.mxu0 %v87
  %v116 = vpop.f32.mrf.mxu0
  %v117 = vadd.f32 0.0, %v116
  %v118 = vpop.f32.mrf.mxu0
  %v119 = vadd.f32 0.0, %v118
  %120 = vmatmul.bf16.gmra.mxu0 %v90
  %v121 = vpop.f32.mrf.mxu0
  %v122 = vadd.f32 0.0, %v121
  %v123 = vpop.f32.mrf.mxu0
  %v124 = vadd.f32 0.0, %v123
  %125 = vdwg.mxu0
  %v136 = vunpack.c.l.b16 %v21
  %v137 = vunpack.c.l.b16 %v22
  %v138 = vunpack.c.l.b16 %v23
  %v139 = vunpack.c.l.b16 %v24
  %v140 = vunpack.c.l.b16 %v25
  %v141 = vunpack.c.l.b16 %v26
  %v142 = vunpack.c.l.b16 %v27
  %v143 = vunpack.c.l.b16 %v28
  %v144 = vunpack.c.l.b16 %v29
  %v145 = vunpack.c.l.b16 %v30
  %v146 = vpack.c.b16 %v137, %v136
  %v147 = vpack.c.b16 %v139, %v138
  %v148 = vpack.c.b16 %v141, %v140
  %v149 = vpack.c.b16 %v143, %v142
  %v150 = vpack.c.b16 %v145, %v144
  %v153 = vunpack.c.l.b16 %v31
  %v154 = vunpack.c.l.b16 %v32
  %v155 = vpack.c.b16 %v154, %v153
  %v158 = vsel %vm76, %v146, 0
  %v161 = vsel %vm76, %v147, 0
  %v164 = vsel %vm76, %v148, 0
  %v167 = vsel %vm76, %v149, 0
  %v170 = vsel %vm76, %v150, 0
  %172 = vmatpush.bf16.msra.mxu0 0
  %173 = vmatpush.bf16.msra.mxu0 0
  %174 = vmatpush.bf16.msra.mxu0 0
  %175 = vmatpush.bf16.msra.mxu0 0
  %176 = vmatpush.bf16.msra.mxu0 0
  %177 = vmatpush.bf16.msra.mxu0 0
  %178 = vmatpush.bf16.msra.mxu0 0
  %179 = vmatpush.bf16.msra.mxu0 %v155
  %180 = vmatmul.bf16.gmra.mxu0 %v158
  %v181 = vpop.f32.mrf.mxu0
  %v182 = vadd.f32 %v102, %v181
  %v183 = vpop.f32.mrf.mxu0
  %v184 = vadd.f32 %v104, %v183
  %185 = vmatmul.bf16.gmra.mxu0 %v161
  %v186 = vpop.f32.mrf.mxu0
  %v187 = vadd.f32 %v107, %v186
  %v188 = vpop.f32.mrf.mxu0
  %v189 = vadd.f32 %v109, %v188
  %190 = vmatmul.bf16.gmra.mxu0 %v164
  %v191 = vpop.f32.mrf.mxu0
  %v192 = vadd.f32 %v112, %v191
  %v193 = vpop.f32.mrf.mxu0
  %v194 = vadd.f32 %v114, %v193
  %195 = vmatmul.bf16.gmra.mxu0 %v167
  %v196 = vpop.f32.mrf.mxu0
  %v197 = vadd.f32 %v117, %v196
  %v198 = vpop.f32.mrf.mxu0
  %v199 = vadd.f32 %v119, %v198
  %200 = vmatmul.bf16.gmra.mxu0 %v170
  %v201 = vpop.f32.mrf.mxu0
  %v202 = vadd.f32 %v122, %v201
  %v203 = vpop.f32.mrf.mxu0
  %v204 = vadd.f32 %v124, %v203
  %205 = vdwg.mxu0
  %v206 = vld [vmem:[%s4] sm:$0x1]
  %v208 = vperm.slane %v206, 0
  %v210 = vadd.f32 %v182, %v208
  %v211 = vadd.f32 %v184, %v208
  %v212 = vadd.f32 %v187, %v208
  %v213 = vadd.f32 %v189, %v208
  %v214 = vadd.f32 %v192, %v208
  %v215 = vadd.f32 %v194, %v208
  %v216 = vadd.f32 %v197, %v208
  %v217 = vadd.f32 %v199, %v208
  %v218 = vadd.f32 %v202, %v208
  %v219 = vadd.f32 %v204, %v208
  %v220 = vmax.f32 %v210, 0.0
  %v221 = vmax.f32 %v211, 0.0
  %v222 = vmax.f32 %v212, 0.0
  %v223 = vmax.f32 %v213, 0.0
  %v224 = vmax.f32 %v214, 0.0
  %v225 = vmax.f32 %v215, 0.0
  %v226 = vmax.f32 %v216, 0.0
  %v227 = vmax.f32 %v217, 0.0
  %v228 = vmax.f32 %v218, 0.0
  %v229 = vmax.f32 %v219, 0.0
  %v230 = vpack.c.bf16 %v220, %v220
  %v231 = vpack.c.bf16 %v221, %v221
  %v232 = vpack.c.bf16 %v222, %v222
  %v233 = vpack.c.bf16 %v223, %v223
  %v234 = vpack.c.bf16 %v224, %v224
  %v235 = vpack.c.bf16 %v225, %v225
  %v236 = vpack.c.bf16 %v226, %v226
  %v237 = vpack.c.bf16 %v227, %v227
  %v238 = vpack.c.bf16 %v228, %v228
  %v239 = vpack.c.bf16 %v229, %v229
  %vm240 = vcmask 257024
  %241 = vst.msk [vmem:[%s5] sm:$0xf] %vm240, %v230
  %242 = vst.msk [vmem:[%s5 + $0x4] sm:$0xf] %vm240, %v231
  %243 = vst.msk [vmem:[%s5 + $0x8] sm:$0xf] %vm240, %v232
  %244 = vst.msk [vmem:[%s5 + $0xc] sm:$0xf] %vm240, %v233
  %245 = vst.msk [vmem:[%s5 + $0x10] sm:$0xf] %vm240, %v234
  %246 = vst.msk [vmem:[%s5 + $0x14] sm:$0xf] %vm240, %v235
  %247 = vst.msk [vmem:[%s5 + $0x18] sm:$0xf] %vm240, %v236
  %248 = vst.msk [vmem:[%s5 + $0x1c] sm:$0xf] %vm240, %v237
  %249 = vst.msk [vmem:[%s5 + $0x20] sm:$0xf] %vm240, %v238
  %250 = vst.msk [vmem:[%s5 + $0x24] sm:$0xf] %vm240, %v239
  // Predicated region
  $region22: #{_lambda_.21} parent=0 // pred_check
    _
  $region23: #{_lambda_.21} parent=0 // pred_check_branch
    %252 = sbr.rel (0) target = $region25
  $region24: #{_lambda_.21} parent=0 // pred_region
    _
  $region25: #{_lambda_.21} parent=0 // pred_fallthru
    _
  // Predicated region
  $region26: #{_lambda_.21} parent=0 // pred_check
    _
  $region27: #{_lambda_.21} parent=0 // pred_check_branch
    %254 = sbr.rel (0) target = $region29
  $region28: #{_lambda_.21} parent=0 // pred_region
    _
  $region29: #{_lambda_.21} parent=0 // pred_fallthru
    _

// kernel: reverse.4
$region0: #{reverse.4}
  #allocation0 [shape = 's32[1]{0}', space=sflag, size = 0x4, scoped, tag = 'scoped memory for reverse.4']
  %s0 = inlined_call_operand.vmem [shape: f32[2,16,8,3], index: 0, kind: input, shape index: {}]
  %s1 = inlined_call_operand.vmem [shape: f32[2,16,8,3], index: 1, kind: output, shape index: {}]
  %s2 = scalar_lea.vmem %s0, 16
  %v3 = vld [vmem:[%s2] sm:$0xff]
  %4 = vst [vmem:[%s1] sm:$0xff] %v3
  %s5 = scalar_lea.vmem %s0, 40
  %v6 = vld [vmem:[%s5] sm:$0xff]
  %s7 = scalar_lea.vmem %s1, 24
  %8 = vst [vmem:[%s7] sm:$0xff] %v6
  %s9 = scalar_lea.vmem %s0, 8
  %v10 = vld [vmem:[%s9] sm:$0xff]
  %s11 = scalar_lea.vmem %s1, 8
  %12 = vst [vmem:[%s11] sm:$0xff] %v10
  %s13 = scalar_lea.vmem %s0, 32
  %v14 = vld [vmem:[%s13] sm:$0xff]
  %s15 = scalar_lea.vmem %s1, 32
  %16 = vst [vmem:[%s15] sm:$0xff] %v14
  %v17 = vld [vmem:[%s0] sm:$0xff]
  %s18 = scalar_lea.vmem %s1, 16
  %19 = vst [vmem:[%s18] sm:$0xff] %v17
  %s20 = scalar_lea.vmem %s0, 24
  %v21 = vld [vmem:[%s20] sm:$0xff]
  %s22 = scalar_lea.vmem %s1, 40
  %23 = vst [vmem:[%s22] sm:$0xff] %v21

// kernel: _lambda_.22
$region0: #{_lambda_.22}
  #allocation0 [shape = 'u32[]', space=smem, size = 0x4, offset = 0x4, fixed_abs, tag = 'smem constant byte address 0x4 - core index']
  #allocation1 [shape = 'u32[72,128]{1,0:T(1,128)}', space=vmem, size = 0x9000, scoped, tag = 'internal scratch']
  %s0 = inlined_call_operand.vmem [shape: bf16[24,16], index: 0, kind: input, shape index: {}]
  %s1 = inlined_call_operand.vmem [shape: bf16[24,16], index: 1, kind: input, shape index: {}]
  %s2 = inlined_call_operand.vmem [shape: bf16[16,32], index: 2, kind: input, shape index: {}]
  %s3 = inlined_call_operand.vmem [shape: bf16[16,32], index: 3, kind: input, shape index: {}]
  %s4 = inlined_call_operand.vmem [shape: f32[1,32], index: 4, kind: input, shape index: {}]
  %s5 = inlined_call_operand.vmem [shape: bf16[24,32], index: 5, kind: output, shape index: {}]
  %s6 = sld [smem:[#allocation0]]
  $region30: #{_lambda_.22} parent=0
    _
  %s8 = ssub.s32 1, %s6
  %s9 = scalar_select 0, %s8, %s6
  // Predicated region
  $region2: #{_lambda_.22} parent=0 // pred_check
    _
  $region3: #{_lambda_.22} parent=0 // pred_check_branch
    %11 = sbr.rel (0) target = $region5
  $region4: #{_lambda_.22} parent=0 // pred_region
    _
  $region5: #{_lambda_.22} parent=0 // pred_fallthru
    _
  // Predicated region
  $region6: #{_lambda_.22} parent=0 // pred_check
    _
  $region7: #{_lambda_.22} parent=0 // pred_check_branch
    %13 = sbr.rel (0) target = $region9
  $region8: #{_lambda_.22} parent=0 // pred_region
    _
  $region9: #{_lambda_.22} parent=0 // pred_fallthru
    _
  // Predicated region
  $region10: #{_lambda_.22} parent=0 // pred_check
    _
  $region11: #{_lambda_.22} parent=0 // pred_check_branch
    %15 = sbr.rel (0) target = $region13
  $region12: #{_lambda_.22} parent=0 // pred_region
    _
  $region13: #{_lambda_.22} parent=0 // pred_fallthru
    _
  // Predicated region
  $region14: #{_lambda_.22} parent=0 // pred_check
    _
  $region15: #{_lambda_.22} parent=0 // pred_check_branch
    %17 = sbr.rel (0) target = $region17
  $region16: #{_lambda_.22} parent=0 // pred_region
    _
  $region17: #{_lambda_.22} parent=0 // pred_fallthru
    _
  // Predicated region
  $region18: #{_lambda_.22} parent=0 // pred_check
    _
  $region19: #{_lambda_.22} parent=0 // pred_check_branch
    %19 = sbr.rel (0) target = $region21
  $region20: #{_lambda_.22} parent=0 // pred_region
    _
  $region21: #{_lambda_.22} parent=0 // pred_fallthru
    _
  %v21 = vld [vmem:[%s0] sm:$0xf]
  %v22 = vld [vmem:[%s0 + $0x4] sm:$0xf]
  %v23 = vld [vmem:[%s0 + $0x8] sm:$0xf]
  %v24 = vld [vmem:[%s2] sm:$0xf]
  %v25 = vld [vmem:[%s2 + $0x4] sm:$0xf]
  %v26 = vld [vmem:[%s1] sm:$0xf]
  %v27 = vld [vmem:[%s1 + $0x4] sm:$0xf]
  %v28 = vld [vmem:[%s1 + $0x8] sm:$0xf]
  %v29 = vld [vmem:[%s3] sm:$0xf]
  %v30 = vld [vmem:[%s3 + $0x4] sm:$0xf]
  %v34 = vunpack.c.l.b16 %v26
  %v35 = vunpack.c.l.b16 %v27
  %v36 = vunpack.c.l.b16 %v28
  %v37 = vpack.c.b16 %v35, %v34
  %v38 = vpack.c.b16 %v36, %v36
  %v41 = vunpack.c.l.b16 %v29
  %v42 = vunpack.c.l.b16 %v30
  %v43 = vpack.c.b16 %v42, %v41
  %vm45 = vcmask 130048
  %v47 = vsel %vm45, %v37, 0
  %v50 = vsel %vm45, %v38, 0
  %52 = vmatpush.bf16.msra.mxu0 0
  %53 = vmatpush.bf16.msra.mxu0 0
  %54 = vmatpush.bf16.msra.mxu0 0
  %55 = vmatpush.bf16.msra.mxu0 0
  %56 = vmatpush.bf16.msra.mxu0 0
  %57 = vmatpush.bf16.msra.mxu0 0
  %58 = vmatpush.bf16.msra.mxu0 0
  %59 = vmatpush.bf16.msra.mxu0 %v43
  %60 = vmatmul.bf16.gmra.mxu0 %v47
  %v61 = vpop.f32.mrf.mxu0
  %v62 = vadd.f32 0.0, %v61
  %v63 = vpop.f32.mrf.mxu0
  %v64 = vadd.f32 0.0, %v63
  %65 = vmatmul.bf16.gmra.mxu0 %v50
  %v66 = vpop.f32.mrf.mxu0
  %v67 = vadd.f32 0.0, %v66
  %v68 = vpop.f32.mrf.mxu0
  %69 = vdwg.mxu0
  %v73 = vunpack.c.l.b16 %v21
  %v74 = vunpack.c.l.b16 %v22
  %v75 = vunpack.c.l.b16 %v23
  %v76 = vpack.c.b16 %v74, %v73
  %v77 = vpack.c.b16 %v75, %v75
  %v80 = vunpack.c.l.b16 %v24
  %v81 = vunpack.c.l.b16 %v25
  %v82 = vpack.c.b16 %v81, %v80
  %v85 = vsel %vm45, %v76, 0
  %v88 = vsel %vm45, %v77, 0
  %90 = vmatpush.bf16.msra.mxu0 0
  %91 = vmatpush.bf16.msra.mxu0 0
  %92 = vmatpush.bf16.msra.mxu0 0
  %93 = vmatpush.bf16.msra.mxu0 0
  %94 = vmatpush.bf16.msra.mxu0 0
  %95 = vmatpush.bf16.msra.mxu0 0
  %96 = vmatpush.bf16.msra.mxu0 0
  %97 = vmatpush.bf16.msra.mxu0 %v82
  %98 = vmatmul.bf16.gmra.mxu0 %v85
  %v99 = vpop.f32.mrf.mxu0
  %v100 = vadd.f32 %v62, %v99
  %v101 = vpop.f32.mrf.mxu0
  %v102 = vadd.f32 %v64, %v101
  %103 = vmatmul.bf16.gmra.mxu0 %v88
  %v104 = vpop.f32.mrf.mxu0
  %v105 = vadd.f32 %v67, %v104
  %v106 = vpop.f32.mrf.mxu0
  %107 = vdwg.mxu0
  %v108 = vld [vmem:[%s4] sm:$0x1]
  %v110 = vperm.slane %v108, 0
  %v112 = vadd.f32 %v100, %v110
  %v113 = vadd.f32 %v102, %v110
  %v114 = vadd.f32 %v105, %v110
  %v115 = vmax.f32 %v112, 0.0
  %v116 = vmax.f32 %v113, 0.0
  %v117 = vmax.f32 %v114, 0.0
  %v118 = vpack.c.bf16 %v115, %v115
  %v119 = vpack.c.bf16 %v116, %v116
  %v120 = vpack.c.bf16 %v117, %v117
  %vm121 = vcmask 257024
  %122 = vst.msk [vmem:[%s5] sm:$0xf] %vm121, %v118
  %123 = vst.msk [vmem:[%s5 + $0x4] sm:$0xf] %vm121, %v119
  %124 = vst.msk [vmem:[%s5 + $0x8] sm:$0xf] %vm121, %v120
  // Predicated region
  $region22: #{_lambda_.22} parent=0 // pred_check
    _
  $region23: #{_lambda_.22} parent=0 // pred_check_branch
    %126 = sbr.rel (0) target = $region25
  $region24: #{_lambda_.22} parent=0 // pred_region
    _
  $region25: #{_lambda_.22} parent=0 // pred_fallthru
    _
  // Predicated region
  $region26: #{_lambda_.22} parent=0 // pred_check
    _
  $region27: #{_lambda_.22} parent=0 // pred_check_branch
    %128 = sbr.rel (0) target = $region29
  $region28: #{_lambda_.22} parent=0 // pred_region
    _
  $region29: #{_lambda_.22} parent=0 // pred_fallthru
    _

// kernel: _lambda_.23
$region0: #{_lambda_.23}
  #allocation0 [shape = 'u32[]', space=smem, size = 0x4, offset = 0x4, fixed_abs, tag = 'smem constant byte address 0x4 - core index']
  #allocation1 [shape = 'u32[72,128]{1,0:T(1,128)}', space=vmem, size = 0x9000, scoped, tag = 'internal scratch']
  %s0 = inlined_call_operand.vmem [shape: bf16[128,16], index: 0, kind: input, shape index: {}]
  %s1 = inlined_call_operand.vmem [shape: bf16[128,16], index: 1, kind: input, shape index: {}]
  %s2 = inlined_call_operand.vmem [shape: bf16[128,16], index: 2, kind: input, shape index: {}]
  %s3 = inlined_call_operand.vmem [shape: bf16[128,16], index: 3, kind: input, shape index: {}]
  %s4 = inlined_call_operand.vmem [shape: bf16[16,64], index: 4, kind: input, shape index: {}]
  %s5 = inlined_call_operand.vmem [shape: bf16[16,64], index: 5, kind: input, shape index: {}]
  %s6 = inlined_call_operand.vmem [shape: f32[1,64], index: 6, kind: input, shape index: {}]
  %s7 = inlined_call_operand.vmem [shape: bf16[128,64], index: 7, kind: input, shape index: {}]
  %s8 = inlined_call_operand.vmem [shape: bf16[128,64], index: 8, kind: output, shape index: {}]
  %s9 = sld [smem:[#allocation0]]
  $region65: #{_lambda_.23} parent=0
    _
  %s11 = ssub.s32 1, %s9
  %s12 = scalar_select 0, %s11, %s9
  loop: start=0, step=1, limit=4
  $region2: #{_lambda_.23} parent=0 // loop_pre_header
    _
  $region3: #{_lambda_.23} parent=0 // loop_header
    %s14 = sphi 0, %s18
    %p15 = scmp.ge.s32.totalorder %s14, 4
    %s24 = sphi 0, %s26
    %s27 = sphi 0, %s24
    %s28 = sphi 0, %s27
    %s44 = sphi 0, %s28
    %s50 = sphi 0, %s52
    %s53 = sphi 0, %s50
    %s54 = sphi 0, %s53
    %s70 = sphi 0, %s54
    %s76 = sphi 0, %s78
    %s79 = sphi 0, %s76
    %s80 = sphi 0, %s79
    %s96 = sphi 0, %s80
    %s102 = sphi 0, %s104
    %s105 = sphi 0, %s102
    %s106 = sphi 0, %s105
    %s122 = sphi 0, %s106
    %s126 = sphi 0, %s126
    %s128 = sphi 0, %s126
    %s129 = sphi 0, %s128
    %s143 = sphi 0, %s129
    %s147 = sphi 0, %s147
    %s149 = sphi 0, %s147
    %s150 = sphi 0, %s149
    %s164 = sphi 0, %s150
    %s168 = sphi 0, %s168
    %s170 = sphi 0, %s168
    %s171 = sphi 0, %s170
    %s185 = sphi 0, %s171
    %s191 = sphi 0, %s193
    %s194 = sphi 0, %s191
    %s195 = sphi 0, %s194
    %s211 = sphi 0, %s195
    %s217 = sphi 0, %s219
    %s220 = sphi 0, %s217
    %s221 = sphi 0, %s220
    %s237 = sphi 0, %s221
  $region4: #{_lambda_.23} parent=0 // loop_header_branch
    %17 = sbr.rel (%p15) target = $region8
  $region5: #{_lambda_.23} parent=0 // loop_body
    %s19 = ssub.s32 %s14, 1
    %s20 = ssub.s32 %s14, 2
    %s21 = sadd.s32 %s14, 1
    %s22 = ssub.s32 %s14, %s21
    %p23 = scmp.eq.s32.totalorder %s22, 0
    %s25 = sadd.s32 %s24, 1
    %s26 = scalar_select %p23, %s24, %s25
    %p29 = pneg %p23
    %p30 = scmp.eq.s32.totalorder %s14, 1
    %p31 = por %p29, %p30
    %p32 = scmp.ne.s32.totalorder %s24, %s27
    %p33 = scmp.eq.s32.totalorder %s14, 0
    %p34 = por %p32, %p33
    %p35 = scmp.ne.s32.totalorder %s24, %s27
    %p36 = scmp.eq.s32.totalorder %s19, 1
    %p37 = por %p35, %p36
    %p38 = scmp.ne.s32.totalorder %s27, %s28
    %p39 = scmp.eq.s32.totalorder %s19, 0
    %p40 = por %p38, %p39
    %p41 = scmp.ne.s32.totalorder %s27, %s28
    %p42 = scmp.eq.s32.totalorder %s20, 1
    %p43 = por %p41, %p42
    %p45 = scmp.ne.s32.totalorder %s28, %s44
    %p46 = scmp.eq.s32.totalorder %s20, 0
    %p47 = por %p45, %p46
    %s48 = ssub.s32 %s14, %s21
    %p49 = scmp.eq.s32.totalorder %s48, 0
    %s51 = sadd.s32 %s50, 1
    %s52 = scalar_select %p49, %s50, %s51
    %p55 = pneg %p49
    %p56 = scmp.eq.s32.totalorder %s14, 1
    %p57 = por %p55, %p56
    %p58 = scmp.ne.s32.totalorder %s50, %s53
    %p59 = scmp.eq.s32.totalorder %s14, 0
    %p60 = por %p58, %p59
    %p61 = scmp.ne.s32.totalorder %s50, %s53
    %p62 = scmp.eq.s32.totalorder %s19, 1
    %p63 = por %p61, %p62
    %p64 = scmp.ne.s32.totalorder %s53, %s54
    %p65 = scmp.eq.s32.totalorder %s19, 0
    %p66 = por %p64, %p65
    %p67 = scmp.ne.s32.totalorder %s53, %s54
    %p68 = scmp.eq.s32.totalorder %s20, 1
    %p69 = por %p67, %p68
    %p71 = scmp.ne.s32.totalorder %s54, %s70
    %p72 = scmp.eq.s32.totalorder %s20, 0
    %p73 = por %p71, %p72
    %s74 = ssub.s32 %s14, %s21
    %p75 = scmp.eq.s32.totalorder %s74, 0
    %s77 = sadd.s32 %s76, 1
    %s78 = scalar_select %p75, %s76, %s77
    %p81 = pneg %p75
    %p82 = scmp.eq.s32.totalorder %s14, 1
    %p83 = por %p81, %p82
    %p84 = scmp.ne.s32.totalorder %s76, %s79
    %p85 = scmp.eq.s32.totalorder %s14, 0
    %p86 = por %p84, %p85
    %p87 = scmp.ne.s32.totalorder %s76, %s79
    %p88 = scmp.eq.s32.totalorder %s19, 1
    %p89 = por %p87, %p88
    %p90 = scmp.ne.s32.totalorder %s79, %s80
    %p91 = scmp.eq.s32.totalorder %s19, 0
    %p92 = por %p90, %p91
    %p93 = scmp.ne.s32.totalorder %s79, %s80
    %p94 = scmp.eq.s32.totalorder %s20, 1
    %p95 = por %p93, %p94
    %p97 = scmp.ne.s32.totalorder %s80, %s96
    %p98 = scmp.eq.s32.totalorder %s20, 0
    %p99 = por %p97, %p98
    %s100 = ssub.s32 %s14, %s21
    %p101 = scmp.eq.s32.totalorder %s100, 0
    %s103 = sadd.s32 %s102, 1
    %s104 = scalar_select %p101, %s102, %s103
    %p107 = pneg %p101
    %p108 = scmp.eq.s32.totalorder %s14, 1
    %p109 = por %p107, %p108
    %p110 = scmp.ne.s32.totalorder %s102, %s105
    %p111 = scmp.eq.s32.totalorder %s14, 0
    %p112 = por %p110, %p111
    %p113 = scmp.ne.s32.totalorder %s102, %s105
    %p114 = scmp.eq.s32.totalorder %s19, 1
    %p115 = por %p113, %p114
    %p116 = scmp.ne.s32.totalorder %s105, %s106
    %p117 = scmp.eq.s32.totalorder %s19, 0
    %p118 = por %p116, %p117
    %p119 = scmp.ne.s32.totalorder %s105, %s106
    %p120 = scmp.eq.s32.totalorder %s20, 1
    %p121 = por %p119, %p120
    %p123 = scmp.ne.s32.totalorder %s106, %s122
    %p124 = scmp.eq.s32.totalorder %s20, 0
    %p125 = por %p123, %p124
    %s127 = sadd.s32 %s126, 1
    %p130 = scmp.eq.s32.totalorder %s14, 1
    %p131 = scmp.ne.s32.totalorder %s126, %s128
    %p132 = scmp.eq.s32.totalorder %s14, 0
    %p133 = por %p131, %p132
    %p134 = scmp.ne.s32.totalorder %s126, %s128
    %p135 = scmp.eq.s32.totalorder %s19, 1
    %p136 = por %p134, %p135
    %p137 = scmp.ne.s32.totalorder %s128, %s129
    %p138 = scmp.eq.s32.totalorder %s19, 0
    %p139 = por %p137, %p138
    %p140 = scmp.ne.s32.totalorder %s128, %s129
    %p141 = scmp.eq.s32.totalorder %s20, 1
    %p142 = por %p140, %p141
    %p144 = scmp.ne.s32.totalorder %s129, %s143
    %p145 = scmp.eq.s32.totalorder %s20, 0
    %p146 = por %p144, %p145
    %s148 = sadd.s32 %s147, 1
    %p151 = scmp.eq.s32.totalorder %s14, 1
    %p152 = scmp.ne.s32.totalorder %s147, %s149
    %p153 = scmp.eq.s32.totalorder %s14, 0
    %p154 = por %p152, %p153
    %p155 = scmp.ne.s32.totalorder %s147, %s149
    %p156 = scmp.eq.s32.totalorder %s19, 1
    %p157 = por %p155, %p156
    %p158 = scmp.ne.s32.totalorder %s149, %s150
    %p159 = scmp.eq.s32.totalorder %s19, 0
    %p160 = por %p158, %p159
    %p161 = scmp.ne.s32.totalorder %s149, %s150
    %p162 = scmp.eq.s32.totalorder %s20, 1
    %p163 = por %p161, %p162
    %p165 = scmp.ne.s32.totalorder %s150, %s164
    %p166 = scmp.eq.s32.totalorder %s20, 0
    %p167 = por %p165, %p166
    %s169 = sadd.s32 %s168, 1
    %p172 = scmp.eq.s32.totalorder %s14, 1
    %p173 = scmp.ne.s32.totalorder %s168, %s170
    %p174 = scmp.eq.s32.totalorder %s14, 0
    %p175 = por %p173, %p174
    %p176 = scmp.ne.s32.totalorder %s168, %s170
    %p177 = scmp.eq.s32.totalorder %s19, 1
    %p178 = por %p176, %p177
    %p179 = scmp.ne.s32.totalorder %s170, %s171
    %p180 = scmp.eq.s32.totalorder %s19, 0
    %p181 = por %p179, %p180
    %p182 = scmp.ne.s32.totalorder %s170, %s171
    %p183 = scmp.eq.s32.totalorder %s20, 1
    %p184 = por %p182, %p183
    %p186 = scmp.ne.s32.totalorder %s171, %s185
    %p187 = scmp.eq.s32.totalorder %s20, 0
    %p188 = por %p186, %p187
    %s189 = ssub.s32 %s14, %s21
    %p190 = scmp.eq.s32.totalorder %s189, 0
    %s192 = sadd.s32 %s191, 1
    %s193 = scalar_select %p190, %s191, %s192
    %p196 = pneg %p190
    %p197 = scmp.eq.s32.totalorder %s14, 1
    %p198 = por %p196, %p197
    %p199 = scmp.ne.s32.totalorder %s191, %s194
    %p200 = scmp.eq.s32.totalorder %s14, 0
    %p201 = por %p199, %p200
    %p202 = scmp.ne.s32.totalorder %s191, %s194
    %p203 = scmp.eq.s32.totalorder %s19, 1
    %p204 = por %p202, %p203
    %p205 = scmp.ne.s32.totalorder %s194, %s195
    %p206 = scmp.eq.s32.totalorder %s19, 0
    %p207 = por %p205, %p206
    %p208 = scmp.ne.s32.totalorder %s194, %s195
    %p209 = scmp.eq.s32.totalorder %s20, 1
    %p210 = por %p208, %p209
    %p212 = scmp.ne.s32.totalorder %s195, %s211
    %p213 = scmp.eq.s32.totalorder %s20, 0
    %p214 = por %p212, %p213
    %s215 = ssub.s32 %s14, %s21
    %p216 = scmp.eq.s32.totalorder %s215, 0
    %s218 = sadd.s32 %s217, 1
    %s219 = scalar_select %p216, %s217, %s218
    %p222 = pneg %p216
    %p223 = scmp.eq.s32.totalorder %s14, 1
    %p224 = por %p222, %p223
    %p225 = scmp.ne.s32.totalorder %s217, %s220
    %p226 = scmp.eq.s32.totalorder %s14, 0
    %p227 = por %p225, %p226
    %p228 = scmp.ne.s32.totalorder %s217, %s220
    %p229 = scmp.eq.s32.totalorder %s19, 1
    %p230 = por %p228, %p229
    %p231 = scmp.ne.s32.totalorder %s220, %s221
    %p232 = scmp.eq.s32.totalorder %s19, 0
    %p233 = por %p231, %p232
    %p234 = scmp.ne.s32.totalorder %s220, %s221
    %p235 = scmp.eq.s32.totalorder %s20, 1
    %p236 = por %p234, %p235
    %p238 = scmp.ne.s32.totalorder %s221, %s237
    %p239 = scmp.eq.s32.totalorder %s20, 0
    %p240 = por %p238, %p239
    %p241 = scmp.le.s32.totalorder 1, %s14
    %p242 = scmp.lt.s32.totalorder %s14, 3
    %p243 = pnand %p241, %p242
    %p244 = pneg %p243
    // Predicated region
    $region9: #{_lambda_.23} parent=5 // pred_check
      _
    $region10: #{_lambda_.23} parent=5 // pred_check_branch
      %246 = sbr.rel (%p243) target = $region12
    $region11: #{_lambda_.23} parent=5 // pred_region
      %s247 = ssub.s32 %s14, 1
      // Predicated region
      $region13: #{_lambda_.23} parent=11 // pred_check
        %p248 = pneg %p139
      $region14: #{_lambda_.23} parent=11 // pred_check_branch
        %250 = sbr.rel (%p248) target = $region16
      $region15: #{_lambda_.23} parent=11 // pred_region
        _
      $region16: #{_lambda_.23} parent=11 // pred_fallthru
        _
      // Predicated region
      $region17: #{_lambda_.23} parent=11 // pred_check
        %p251 = pneg %p160
      $region18: #{_lambda_.23} parent=11 // pred_check_branch
        %253 = sbr.rel (%p251) target = $region20
      $region19: #{_lambda_.23} parent=11 // pred_region
        _
      $region20: #{_lambda_.23} parent=11 // pred_fallthru
        _
      // Predicated region
      $region21: #{_lambda_.23} parent=11 // pred_check
        %p254 = pneg %p181
      $region22: #{_lambda_.23} parent=11 // pred_check_branch
        %256 = sbr.rel (%p254) target = $region24
      $region23: #{_lambda_.23} parent=11 // pred_region
        _
      $region24: #{_lambda_.23} parent=11 // pred_fallthru
        _
    $region12: #{_lambda_.23} parent=5 // pred_fallthru
      _
    %p257 = scmp.lt.s32.totalorder %s14, 2
    // Predicated region
    $region25: #{_lambda_.23} parent=5 // pred_check
      %p258 = pneg %p257
    $region26: #{_lambda_.23} parent=5 // pred_check_branch
      %260 = sbr.rel (%p258) target = $region28
    $region27: #{_lambda_.23} parent=5 // pred_region
      // Predicated region
      $region29: #{_lambda_.23} parent=27 // pred_check
        %p261 = pneg %p34
      $region30: #{_lambda_.23} parent=27 // pred_check_branch
        %263 = sbr.rel (%p261) target = $region32
      $region31: #{_lambda_.23} parent=27 // pred_region
        %s264 = smul.u32 8, %s14
        %p265 = scmp.lt.s32.totalorder %s264, 15
        %s266 = scalar_select %p265, %s264, 15
        %s267 = smul.addr %s266, 4
        %s268 = scalar_lea.vmem %s0, %s267
        %s269 = smul.u32 8, %s14
      $region32: #{_lambda_.23} parent=27 // pred_fallthru
        _
      // Predicated region
      $region33: #{_lambda_.23} parent=27 // pred_check
        %p270 = pneg %p60
      $region34: #{_lambda_.23} parent=27 // pred_check_branch
        %272 = sbr.rel (%p270) target = $region36
      $region35: #{_lambda_.23} parent=27 // pred_region
        %s273 = smul.u32 8, %s14
        %p274 = scmp.lt.s32.totalorder %s273, 15
        %s275 = scalar_select %p274, %s273, 15
        %s276 = smul.addr %s275, 4
        %s277 = scalar_lea.vmem %s1, %s276
        %s278 = smul.u32 8, %s14
      $region36: #{_lambda_.23} parent=27 // pred_fallthru
        _
      // Predicated region
      $region37: #{_lambda_.23} parent=27 // pred_check
        %p279 = pneg %p86
      $region38: #{_lambda_.23} parent=27 // pred_check_branch
        %281 = sbr.rel (%p279) target = $region40
      $region39: #{_lambda_.23} parent=27 // pred_region
        %s282 = smul.u32 8, %s14
        %p283 = scmp.lt.s32.totalorder %s282, 15
        %s284 = scalar_select %p283, %s282, 15
        %s285 = smul.addr %s284, 4
        %s286 = scalar_lea.vmem %s2, %s285
        %s287 = smul.u32 8, %s14
      $region40: #{_lambda_.23} parent=27 // pred_fallthru
        _
      // Predicated region
      $region41: #{_lambda_.23} parent=27 // pred_check
        %p288 = pneg %p112
      $region42: #{_lambda_.23} parent=27 // pred_check_branch
        %290 = sbr.rel (%p288) target = $region44
      $region43: #{_lambda_.23} parent=27 // pred_region
        %s291 = smul.u32 8, %s14
        %p292 = scmp.lt.s32.totalorder %s291, 15
        %s293 = scalar_select %p292, %s291, 15
        %s294 = smul.addr %s293, 4
        %s295 = scalar_lea.vmem %s3, %s294
        %s296 = smul.u32 8, %s14
      $region44: #{_lambda_.23} parent=27 // pred_fallthru
        _
      // Predicated region
      $region45: #{_lambda_.23} parent=27 // pred_check
        %p297 = pneg %p201
      $region46: #{_lambda_.23} parent=27 // pred_check_branch
        %299 = sbr.rel (%p297) target = $region48
      $region47: #{_lambda_.23} parent=27 // pred_region
        %s300 = smul.u32 8, %s14
        %p301 = scmp.lt.s32.totalorder %s300, 15
        %s302 = scalar_select %p301, %s300, 15
        %s303 = smul.addr %s302, 4
        %s304 = scalar_lea.vmem %s7, %s303
        %s305 = smul.u32 8, %s14
      $region48: #{_lambda_.23} parent=27 // pred_fallthru
        _
    $region28: #{_lambda_.23} parent=5 // pred_fallthru
      _
    %p306 = scmp.le.s32.totalorder 1, %s14
    %p307 = scmp.lt.s32.totalorder %s14, 3
    %p308 = pnand %p306, %p307
    %p309 = pneg %p308
    // Predicated region
    $region49: #{_lambda_.23} parent=5 // pred_check
      _
    $region50: #{_lambda_.23} parent=5 // pred_check_branch
      %311 = sbr.rel (%p308) target = $region52
    $region51: #{_lambda_.23} parent=5 // pred_region
      %s312 = ssub.s32 %s14, 1
      %s313 = smul.u32 8, %s19
      %p314 = scmp.lt.s32.totalorder %s313, 15
      %s315 = scalar_select %p314, %s313, 15
      %s316 = smul.addr %s315, 4
      %s317 = scalar_lea.vmem %s0, %s316
      %p318 = pneg %p40
      %p319 = pneg %p37
      %s320 = smul.u32 8, %s19
      %p321 = scmp.lt.s32.totalorder %s320, 15
      %s322 = scalar_select %p321, %s320, 15
      %s323 = smul.addr %s322, 4
      %s324 = scalar_lea.vmem %s1, %s323
      %p325 = pneg %p66
      %p326 = pneg %p63
      %s327 = smul.u32 8, %s19
      %p328 = scmp.lt.s32.totalorder %s327, 15
      %s329 = scalar_select %p328, %s327, 15
      %s330 = smul.addr %s329, 4
      %s331 = scalar_lea.vmem %s2, %s330
      %p332 = pneg %p92
      %p333 = pneg %p89
      %s334 = smul.u32 8, %s19
      %p335 = scmp.lt.s32.totalorder %s334, 15
      %s336 = scalar_select %p335, %s334, 15
      %s337 = smul.addr %s336, 4
      %s338 = scalar_lea.vmem %s3, %s337
      %p339 = pneg %p118
      %p340 = pneg %p115
      %p341 = pneg %p139
      %p342 = pneg %p136
      %p343 = pneg %p160
      %p344 = pneg %p157
      %p345 = pneg %p181
      %p346 = pneg %p178
      %s347 = smul.u32 8, %s19
      %p348 = scmp.lt.s32.totalorder %s347, 15
      %s349 = scalar_select %p348, %s347, 15
      %s350 = smul.addr %s349, 4
      %s351 = scalar_lea.vmem %s7, %s350
      %p352 = pneg %p207
      %p353 = pneg %p204
      %p354 = pneg %p233
      %p355 = pneg %p230
      %s356 = smul.u32 8, %s19
      %p357 = scmp.lt.s32.totalorder %s356, 15
      %s358 = scalar_select %p357, %s356, 15
      %s359 = smul.addr %s358, 4
      %s360 = scalar_lea.vmem %s8, %s359
      %s361 = smul.u32 8, %s19
      %p362 = scmp.lt.s32.totalorder %s361, 15
      %s363 = scalar_select %p362, %s361, 15
      %s364 = smul.addr %s363, 4
      %s365 = scalar_lea.vmem %s0, %s364
      %s366 = smul.u32 8, %s19
      %s367 = smul.u32 8, %s19
      %p368 = scmp.lt.s32.totalorder %s367, 15
      %s369 = scalar_select %p368, %s367, 15
      %s370 = smul.addr %s369, 4
      %s371 = scalar_lea.vmem %s1, %s370
      %s372 = smul.u32 8, %s19
      %s373 = smul.u32 8, %s19
      %p374 = scmp.lt.s32.totalorder %s373, 15
      %s375 = scalar_select %p374, %s373, 15
      %s376 = smul.addr %s375, 4
      %s377 = scalar_lea.vmem %s2, %s376
      %s378 = smul.u32 8, %s19
      %s379 = smul.u32 8, %s19
      %p380 = scmp.lt.s32.totalorder %s379, 15
      %s381 = scalar_select %p380, %s379, 15
      %s382 = smul.addr %s381, 4
      %s383 = scalar_lea.vmem %s3, %s382
      %s384 = smul.u32 8, %s19
      %s385 = smul.u32 8, %s19
      %p386 = scmp.lt.s32.totalorder %s385, 15
      %s387 = scalar_select %p386, %s385, 15
      %s388 = smul.addr %s387, 4
      %s389 = scalar_lea.vmem %s7, %s388
      %s390 = smul.u32 8, %s19
      %s391 = smul.u32 8, %s19
      %p392 = scmp.lt.s32.totalorder %s391, 15
      %s393 = scalar_select %p392, %s391, 15
      %s394 = smul.addr %s393, 4
      %s395 = scalar_lea.vmem %s8, %s394
      %s396 = smul.u32 8, %s19
      %v398 = vld [vmem:[%s365] sm:$0xf]
      %v399 = vld [vmem:[%s365 + $0x4] sm:$0xf]
      %v400 = vld [vmem:[%s365 + $0x8] sm:$0xf]
      %v401 = vld [vmem:[%s365 + $0xc] sm:$0xf]
      %v402 = vld [vmem:[%s365 + $0x10] sm:$0xf]
      %v403 = vld [vmem:[%s365 + $0x14] sm:$0xf]
      %v404 = vld [vmem:[%s365 + $0x18] sm:$0xf]
      %v405 = vld [vmem:[%s365 + $0x1c] sm:$0xf]
      %v406 = vld [vmem:[%s4] sm:$0xf]
      %v407 = vld [vmem:[%s4 + $0x4] sm:$0xf]
      %v408 = vld [vmem:[%s371] sm:$0xf]
      %v409 = vld [vmem:[%s371 + $0x4] sm:$0xf]
      %v410 = vld [vmem:[%s371 + $0x8] sm:$0xf]
      %v411 = vld [vmem:[%s371 + $0xc] sm:$0xf]
      %v412 = vld [vmem:[%s371 + $0x10] sm:$0xf]
      %v413 = vld [vmem:[%s371 + $0x14] sm:$0xf]
      %v414 = vld [vmem:[%s371 + $0x18] sm:$0xf]
      %v415 = vld [vmem:[%s371 + $0x1c] sm:$0xf]
      %v416 = vld [vmem:[%s377] sm:$0xf]
      %v417 = vld [vmem:[%s377 + $0x4] sm:$0xf]
      %v418 = vld [vmem:[%s377 + $0x8] sm:$0xf]
      %v419 = vld [vmem:[%s377 + $0xc] sm:$0xf]
      %v420 = vld [vmem:[%s377 + $0x10] sm:$0xf]
      %v421 = vld [vmem:[%s377 + $0x14] sm:$0xf]
      %v422 = vld [vmem:[%s377 + $0x18] sm:$0xf]
      %v423 = vld [vmem:[%s377 + $0x1c] sm:$0xf]
      %v424 = vunpack.c.l.bf16 %v408
      %v425 = vunpack.c.l.bf16 %v409
      %v426 = vunpack.c.l.bf16 %v410
      %v427 = vunpack.c.l.bf16 %v411
      %v428 = vunpack.c.l.bf16 %v412
      %v429 = vunpack.c.l.bf16 %v413
      %v430 = vunpack.c.l.bf16 %v414
      %v431 = vunpack.c.l.bf16 %v415
      %v432 = vunpack.c.l.bf16 %v416
      %v433 = vunpack.c.l.bf16 %v417
      %v434 = vunpack.c.l.bf16 %v418
      %v435 = vunpack.c.l.bf16 %v419
      %v436 = vunpack.c.l.bf16 %v420
      %v437 = vunpack.c.l.bf16 %v421
      %v438 = vunpack.c.l.bf16 %v422
      %v439 = vunpack.c.l.bf16 %v423
      %v440 = vadd.f32 %v424, %v432
      %v441 = vadd.f32 %v425, %v433
      %v442 = vadd.f32 %v426, %v434
      %v443 = vadd.f32 %v427, %v435
      %v444 = vadd.f32 %v428, %v436
      %v445 = vadd.f32 %v429, %v437
      %v446 = vadd.f32 %v430, %v438
      %v447 = vadd.f32 %v431, %v439
      %v448 = vpack.c.bf16 %v440, %v440
      %v449 = vpack.c.bf16 %v441, %v441
      %v450 = vpack.c.bf16 %v442, %v442
      %v451 = vpack.c.bf16 %v443, %v443
      %v452 = vpack.c.bf16 %v444, %v444
      %v453 = vpack.c.bf16 %v445, %v445
      %v454 = vpack.c.bf16 %v446, %v446
      %v455 = vpack.c.bf16 %v447, %v447
      %v456 = vld [vmem:[%s383] sm:$0xf]
      %v457 = vld [vmem:[%s383 + $0x4] sm:$0xf]
      %v458 = vld [vmem:[%s383 + $0x8] sm:$0xf]
      %v459 = vld [vmem:[%s383 + $0xc] sm:$0xf]
      %v460 = vld [vmem:[%s383 + $0x10] sm:$0xf]
      %v461 = vld [vmem:[%s383 + $0x14] sm:$0xf]
      %v462 = vld [vmem:[%s383 + $0x18] sm:$0xf]
      %v463 = vld [vmem:[%s383 + $0x1c] sm:$0xf]
      %v464 = vunpack.c.l.bf16 %v448
      %v465 = vunpack.c.l.bf16 %v449
      %v466 = vunpack.c.l.bf16 %v450
      %v467 = vunpack.c.l.bf16 %v451
      %v468 = vunpack.c.l.bf16 %v452
      %v469 = vunpack.c.l.bf16 %v453
      %v470 = vunpack.c.l.bf16 %v454
      %v471 = vunpack.c.l.bf16 %v455
      %v472 = vunpack.c.l.bf16 %v456
      %v473 = vunpack.c.l.bf16 %v457
      %v474 = vunpack.c.l.bf16 %v458
      %v475 = vunpack.c.l.bf16 %v459
      %v476 = vunpack.c.l.bf16 %v460
      %v477 = vunpack.c.l.bf16 %v461
      %v478 = vunpack.c.l.bf16 %v462
      %v479 = vunpack.c.l.bf16 %v463
      %v480 = vadd.f32 %v464, %v472
      %v481 = vadd.f32 %v465, %v473
      %v482 = vadd.f32 %v466, %v474
      %v483 = vadd.f32 %v467, %v475
      %v484 = vadd.f32 %v468, %v476
      %v485 = vadd.f32 %v469, %v477
      %v486 = vadd.f32 %v470, %v478
      %v487 = vadd.f32 %v471, %v479
      %v488 = vpack.c.bf16 %v481, %v480
      %v489 = vpack.c.bf16 %v483, %v482
      %v490 = vpack.c.bf16 %v485, %v484
      %v491 = vpack.c.bf16 %v487, %v486
      %v492 = vld [vmem:[%s5] sm:$0xf]
      %v493 = vld [vmem:[%s5 + $0x4] sm:$0xf]
      %v496 = vunpack.c.l.b16 %v492
      %v497 = vunpack.c.l.b16 %v493
      %v498 = vpack.c.b16 %v497, %v496
      %vm500 = vcmask 130048
      %v502 = vsel %vm500, %v488, 0
      %v505 = vsel %vm500, %v489, 0
      %v508 = vsel %vm500, %v490, 0
      %v511 = vsel %vm500, %v491, 0
      %513 = vmatpush.bf16.msra.mxu0 0
      %514 = vmatpush.bf16.msra.mxu0 0
      %515 = vmatpush.bf16.msra.mxu0 0
      %516 = vmatpush.bf16.msra.mxu0 0
      %517 = vmatpush.bf16.msra.mxu0 0
      %518 = vmatpush.bf16.msra.mxu0 0
      %519 = vmatpush.bf16.msra.mxu0 0
      %520 = vmatpush.bf16.msra.mxu0 %v498
      %521 = vmatmul.bf16.gmra.mxu0 %v502
      %v522 = vpop.f32.mrf.mxu0
      %v523 = vadd.f32 0.0, %v522
      %v524 = vpop.f32.mrf.mxu0
      %v525 = vadd.f32 0.0, %v524
      %526 = vmatmul.bf16.gmra.mxu0 %v505
      %v527 = vpop.f32.mrf.mxu0
      %v528 = vadd.f32 0.0, %v527
      %v529 = vpop.f32.mrf.mxu0
      %v530 = vadd.f32 0.0, %v529
      %531 = vmatmul.bf16.gmra.mxu0 %v508
      %v532 = vpop.f32.mrf.mxu0
      %v533 = vadd.f32 0.0, %v532
      %v534 = vpop.f32.mrf.mxu0
      %v535 = vadd.f32 0.0, %v534
      %536 = vmatmul.bf16.gmra.mxu0 %v511
      %v537 = vpop.f32.mrf.mxu0
      %v538 = vadd.f32 0.0, %v537
      %v539 = vpop.f32.mrf.mxu0
      %v540 = vadd.f32 0.0, %v539
      %541 = vdwg.mxu0
      %v550 = vunpack.c.l.b16 %v398
      %v551 = vunpack.c.l.b16 %v399
      %v552 = vunpack.c.l.b16 %v400
      %v553 = vunpack.c.l.b16 %v401
      %v554 = vunpack.c.l.b16 %v402
      %v555 = vunpack.c.l.b16 %v403
      %v556 = vunpack.c.l.b16 %v404
      %v557 = vunpack.c.l.b16 %v405
      %v558 = vpack.c.b16 %v551, %v550
      %v559 = vpack.c.b16 %v553, %v552
      %v560 = vpack.c.b16 %v555, %v554
      %v561 = vpack.c.b16 %v557, %v556
      %v564 = vunpack.c.l.b16 %v406
      %v565 = vunpack.c.l.b16 %v407
      %v566 = vpack.c.b16 %v565, %v564
      %v569 = vsel %vm500, %v558, 0
      %v572 = vsel %vm500, %v559, 0
      %v575 = vsel %vm500, %v560, 0
      %v578 = vsel %vm500, %v561, 0
      %580 = vmatpush.bf16.msra.mxu0 0
      %581 = vmatpush.bf16.msra.mxu0 0
      %582 = vmatpush.bf16.msra.mxu0 0
      %583 = vmatpush.bf16.msra.mxu0 0
      %584 = vmatpush.bf16.msra.mxu0 0
      %585 = vmatpush.bf16.msra.mxu0 0
      %586 = vmatpush.bf16.msra.mxu0 0
      %587 = vmatpush.bf16.msra.mxu0 %v566
      %588 = vmatmul.bf16.gmra.mxu0 %v569
      %v589 = vpop.f32.mrf.mxu0
      %v590 = vadd.f32 %v523, %v589
      %v591 = vpop.f32.mrf.mxu0
      %v592 = vadd.f32 %v525, %v591
      %593 = vmatmul.bf16.gmra.mxu0 %v572
      %v594 = vpop.f32.mrf.mxu0
      %v595 = vadd.f32 %v528, %v594
      %v596 = vpop.f32.mrf.mxu0
      %v597 = vadd.f32 %v530, %v596
      %598 = vmatmul.bf16.gmra.mxu0 %v575
      %v599 = vpop.f32.mrf.mxu0
      %v600 = vadd.f32 %v533, %v599
      %v601 = vpop.f32.mrf.mxu0
      %v602 = vadd.f32 %v535, %v601
      %603 = vmatmul.bf16.gmra.mxu0 %v578
      %v604 = vpop.f32.mrf.mxu0
      %v605 = vadd.f32 %v538, %v604
      %v606 = vpop.f32.mrf.mxu0
      %v607 = vadd.f32 %v540, %v606
      %608 = vdwg.mxu0
      %v609 = vld [vmem:[%s6] sm:$0x1]
      %v611 = vperm.slane %v609, 0
      %v613 = vadd.f32 %v590, %v611
      %v614 = vadd.f32 %v592, %v611
      %v615 = vadd.f32 %v595, %v611
      %v616 = vadd.f32 %v597, %v611
      %v617 = vadd.f32 %v600, %v611
      %v618 = vadd.f32 %v602, %v611
      %v619 = vadd.f32 %v605, %v611
      %v620 = vadd.f32 %v607, %v611
      %v621 = vld [vmem:[%s389] sm:$0xf]
      %v622 = vld [vmem:[%s389 + $0x4] sm:$0xf]
      %v623 = vld [vmem:[%s389 + $0x8] sm:$0xf]
      %v624 = vld [vmem:[%s389 + $0xc] sm:$0xf]
      %v625 = vld [vmem:[%s389 + $0x10] sm:$0xf]
      %v626 = vld [vmem:[%s389 + $0x14] sm:$0xf]
      %v627 = vld [vmem:[%s389 + $0x18] sm:$0xf]
      %v628 = vld [vmem:[%s389 + $0x1c] sm:$0xf]
      %v629 = vunpack.c.l.bf16 %v621
      %v630 = vunpack.c.l.bf16 %v622
      %v631 = vunpack.c.l.bf16 %v623
      %v632 = vunpack.c.l.bf16 %v624
      %v633 = vunpack.c.l.bf16 %v625
      %v634 = vunpack.c.l.bf16 %v626
      %v635 = vunpack.c.l.bf16 %v627
      %v636 = vunpack.c.l.bf16 %v628
      %v637 = vadd.f32 %v613, %v629
      %v638 = vadd.f32 %v614, %v630
      %v639 = vadd.f32 %v615, %v631
      %v640 = vadd.f32 %v616, %v632
      %v641 = vadd.f32 %v617, %v633
      %v642 = vadd.f32 %v618, %v634
      %v643 = vadd.f32 %v619, %v635
      %v644 = vadd.f32 %v620, %v636
      %v645 = vmax.f32 %v637, 0.0
      %v646 = vmax.f32 %v638, 0.0
      %v647 = vmax.f32 %v639, 0.0
      %v648 = vmax.f32 %v640, 0.0
      %v649 = vmax.f32 %v641, 0.0
      %v650 = vmax.f32 %v642, 0.0
      %v651 = vmax.f32 %v643, 0.0
      %v652 = vmax.f32 %v644, 0.0
      %v653 = vpack.c.bf16 %v645, %v645
      %v654 = vpack.c.bf16 %v646, %v646
      %v655 = vpack.c.bf16 %v647, %v647
      %v656 = vpack.c.bf16 %v648, %v648
      %v657 = vpack.c.bf16 %v649, %v649
      %v658 = vpack.c.bf16 %v650, %v650
      %v659 = vpack.c.bf16 %v651, %v651
      %v660 = vpack.c.bf16 %v652, %v652
      %vm661 = vcmask 519168
      %662 = vst.msk [vmem:[%s395] sm:$0xf] %vm661, %v653
      %663 = vst.msk [vmem:[%s395 + $0x4] sm:$0xf] %vm661, %v654
      %664 = vst.msk [vmem:[%s395 + $0x8] sm:$0xf] %vm661, %v655
      %665 = vst.msk [vmem:[%s395 + $0xc] sm:$0xf] %vm661, %v656
      %666 = vst.msk [vmem:[%s395 + $0x10] sm:$0xf] %vm661, %v657
      %667 = vst.msk [vmem:[%s395 + $0x14] sm:$0xf] %vm661, %v658
      %668 = vst.msk [vmem:[%s395 + $0x18] sm:$0xf] %vm661, %v659
      %669 = vst.msk [vmem:[%s395 + $0x1c] sm:$0xf] %vm661, %v660
      %s670 = smul.u32 8, %s19
      %p671 = scmp.lt.s32.totalorder %s670, 15
      %s672 = scalar_select %p671, %s670, 15
      %s673 = smul.addr %s672, 4
      %s674 = scalar_lea.vmem %s8, %s673
      // Predicated region
      $region53: #{_lambda_.23} parent=51 // pred_check
        %p675 = pneg %p230
      $region54: #{_lambda_.23} parent=51 // pred_check_branch
        %677 = sbr.rel (%p675) target = $region56
      $region55: #{_lambda_.23} parent=51 // pred_region
        %s678 = smul.u32 8, %s19
      $region56: #{_lambda_.23} parent=51 // pred_fallthru
        _
    $region52: #{_lambda_.23} parent=5 // pred_fallthru
      _
    %p679 = scmp.le.s32.totalorder 2, %s14
    // Predicated region
    $region57: #{_lambda_.23} parent=5 // pred_check
      %p680 = pneg %p679
    $region58: #{_lambda_.23} parent=5 // pred_check_branch
      %682 = sbr.rel (%p680) target = $region60
    $region59: #{_lambda_.23} parent=5 // pred_region
      %s683 = ssub.s32 %s14, 2
      // Predicated region
      $region61: #{_lambda_.23} parent=59 // pred_check
        %p684 = pneg %p236
      $region62: #{_lambda_.23} parent=59 // pred_check_branch
        %686 = sbr.rel (%p684) target = $region64
      $region63: #{_lambda_.23} parent=59 // pred_region
        %s687 = smul.u32 8, %s20
        %p688 = scmp.lt.s32.totalorder %s687, 15
        %s689 = scalar_select %p688, %s687, 15
        %s690 = smul.addr %s689, 4
        %s691 = scalar_lea.vmem %s8, %s690
      $region64: #{_lambda_.23} parent=59 // pred_fallthru
        _
    $region60: #{_lambda_.23} parent=5 // pred_fallthru
      _
  $region6: #{_lambda_.23} parent=0 // loop_footer
    %s18 = sadd.s32 1, %s14
  $region7: #{_lambda_.23} parent=0 // loop_footer_branch
    %13 = sbr.rel target = $region3
  $region8: #{_lambda_.23} parent=0 // loop_exit
    _

</llo_original>
